<compile_context>
chip_gen: v5e
topology: v5e:2x2
jax: 0.10.0
libtpu: 0.0.40
codegen_flags: <defaults>
</compile_context>

<pallas_src>
import jax
import jax.numpy as jnp
from jax.experimental import pallas as pl
from jax.experimental.pallas import tpu as pltpu

EPS = 1e-5          # PyTorch BatchNorm default eps
C = 30              # channels per neuron
KH = KW = 5         # conv kernel size
NTAP = KH * KW      # 25 taps
KC, KT = 3, 250     # conv2 K (= 25*30 = 750) pre-chunked into 3 x 250
NPIX = 81           # 9*9 pooled pixels after stage 2
CENTER = 40         # the only spatial index that feeds the output
TL1 = 256           # stage-1 lane tile


def _round_up(x, m):
    return (x + m - 1) // m * m


# --------------------------------------------------------------------------
# Stage 1: conv1 + maxpool + BN1 + sigmoid (all neurons fused, 90 channels)
# --------------------------------------------------------------------------

def _stage1_kernel(p_ref, w_ref, sc_ref, sh_ref, o_ref):
    # 4 pool-phase matmuls + elementwise max = conv + 2x2 maxpool,
    # then folded (bias + eval BatchNorm) affine + sigmoid.
    w = w_ref[...]                                              # (G*30, 25)
    m = jnp.dot(w, p_ref[0], preferred_element_type=jnp.float32)
    for s in range(1, 4):
        m = jnp.maximum(m, jnp.dot(w, p_ref[s], preferred_element_type=jnp.float32))
    o_ref[...] = jax.nn.sigmoid(m * sc_ref[...] + sh_ref[...])


def _stage1_patches(x):
    """x: (B,1,50,50) -> pool-phase im2col patches (4, 25, pad(B*529, TL1))."""
    B = x.shape[0]
    img = x[:, 0]                                               # (B, 50, 50)
    taps = []
    for di in range(KH):
        for dj in range(KW):
            taps.append(img[:, di:di + 46, dj:dj + 46].reshape(B, 23, 2, 23, 2))
    P = jnp.stack(taps, axis=0)                                 # (25, B, p, s1, q, s2)
    P = P.transpose(3, 5, 0, 1, 2, 4).reshape(4, NTAP, B * 529)
    nc = B * 529
    ncp = _round_up(nc, TL1)
    return jnp.pad(P, ((0, 0), (0, 0), (0, ncp - nc))), nc, ncp


def _stage1(x, pp):
    P, nc, ncp = _stage1_patches(x)
    GC = pp['w1'].shape[0]                                      # G * 30
    h1 = pl.pallas_call(
        _stage1_kernel,
        out_shape=jax.ShapeDtypeStruct((GC, ncp), jnp.float32),
        grid=(ncp // TL1,),
        in_specs=[pl.BlockSpec((4, NTAP, TL1), lambda i: (0, 0, i)),
                  pl.BlockSpec((GC, NTAP), lambda i: (0, 0)),
                  pl.BlockSpec((GC, 1), lambda i: (0, 0)),
                  pl.BlockSpec((GC, 1), lambda i: (0, 0))],
        out_specs=pl.BlockSpec((GC, TL1), lambda i: (0, i)),
        compiler_params=pltpu.CompilerParams(dimension_semantics=("parallel",)),
    )(P, pp['w1'], pp['sc1'], pp['sh1'])
    return h1[:, :nc]                                           # (G*30, B*529)


# --------------------------------------------------------------------------
# Stage 2 + tail: conv2 + pool + BN2 + sig + attention + BN3 + 1x1 convs + ctl
# --------------------------------------------------------------------------

def _stage2_patches(h1, B, G):
    """h1: (G*30, B*529) -> conv2 pool-phase im2col patches (G, B, 4, KC, KT, 81)."""
    h = h1.reshape(G, C, B, 23, 23)
    taps = []
    for di in range(KH):
        for dj in range(KW):
            taps.append(h[:, :, :, di:di + 18, dj:dj + 18].reshape(G, C, B, 9, 2, 9, 2))
    P = jnp.stack(taps, axis=0)                                 # (25, G, c, B, p, s1, q, s2)
    P = P.transpose(1, 3, 5, 7, 0, 2, 4, 6)                     # (G, B, s1, s2, tap, c, p, q)
    return P.reshape(G, B, 4, KC, KT, NPIX)


def _tail_kernel(p2_ref, w2_ref, sc2_ref, sh2_ref, wq_ref, bq_ref, wk_ref, bk_ref,
                 gam_ref, sc3_ref, sh3_ref, w3_ref, b3_ref, w4_ref, b4_ref,
                 wl_ref, bl_ref, o_ref):
    # ---- conv2 (5x5) + 2x2 maxpool as 4 pool-phase, K-chunked matmuls ----
    def phase(s):
        acc = jnp.dot(w2_ref[0, 0], p2_ref[0, 0, s, 0],
                      preferred_element_type=jnp.float32)
        for kc in range(1, KC):
            acc = acc + jnp.dot(w2_ref[0, kc], p2_ref[0, 0, s, kc],
                                preferred_element_type=jnp.float32)
        return acc                                              # (30, 81)

    m = phase(0)
    for s in range(1, 4):
        m = jnp.maximum(m, phase(s))
    h = jax.nn.sigmoid(m * sc2_ref[0] + sh2_ref[0])             # BN2 + sigmoid, (30, 81)

    # ---- self-attention (v_mapping=False -> value == h); only pixel 40 matters ----
    sel = jax.lax.broadcasted_iota(jnp.int32, (1, NPIX), 1) == CENTER
    h40 = jnp.sum(jnp.where(sel, h, 0.0), axis=1, keepdims=True)            # (30, 1)
    q40 = jnp.dot(wq_ref[0], h40, preferred_element_type=jnp.float32) + bq_ref[0]   # (5, 1)
    k = jnp.dot(wk_ref[0], h, preferred_element_type=jnp.float32) + bk_ref[0]       # (5, 81)
    e = jnp.sum(q40 * k, axis=0, keepdims=True)                 # energy row 40, (1, 81)
    e = e - jnp.max(e, axis=1, keepdims=True)
    p = jnp.exp(e)
    att = p / jnp.sum(p, axis=1, keepdims=True)                 # softmax
    out40 = jnp.sum(h * att, axis=1, keepdims=True)             # (30, 1)
    y = gam_ref[0] * out40 + h40                                # gamma * out + x

    # ---- BN3+sigmoid, two 1x1 convs (BN folded into weights) + sigmoid, ctl ----
    t = jax.nn.sigmoid(y * sc3_ref[0] + sh3_ref[0])
    t = jax.nn.sigmoid(jnp.dot(w3_ref[0], t, preferred_element_type=jnp.float32) + b3_ref[0])
    t = jax.nn.sigmoid(jnp.dot(w4_ref[0], t, preferred_element_type=jnp.float32) + b4_ref[0])
    o_ref[0, 0] = jnp.dot(wl_ref[0], t, preferred_element_type=jnp.float32) + bl_ref[0]


_TAIL_PARAMS = ('w2c', 'sc2', 'sh2', 'wq', 'bq', 'wk', 'bk', 'gam',
                'sc3', 'sh3', 'w3f', 'b3f', 'w4f', 'b4f', 'wl', 'bl')


def _per_neuron_spec(a):
    nd = a.ndim
    return pl.BlockSpec((1,) + a.shape[1:],
                        lambda g, b, _n=nd: (g,) + (0,) * (_n - 1))


def _tail(p2, pp, B, G):
    params = [pp[k] for k in _TAIL_PARAMS]
    in_specs = ([pl.BlockSpec((1, 1, 4, KC, KT, NPIX),
                              lambda g, b: (g, b, 0, 0, 0, 0))]
                + [_per_neuron_spec(a) for a in params])
    out = pl.pallas_call(
        _tail_kernel,
        out_shape=jax.ShapeDtypeStruct((G, B, 1, 1), jnp.float32),
        grid=(G, B),
        in_specs=in_specs,
        out_specs=pl.BlockSpec((1, 1, 1, 1), lambda g, b: (g, b, 0, 0)),
        compiler_params=pltpu.CompilerParams(
            dimension_semantics=("parallel", "parallel")),
    )(p2, *params)
    return out.reshape(G, B).T                                   # (B, G)


# --------------------------------------------------------------------------
# Parameter folding (hoisted: run once, outside the jitted forward)
# --------------------------------------------------------------------------

def _bn_fold(bn):
    g, beta, mean, var = bn
    s = g / jnp.sqrt(var + EPS)
    return s, beta - mean * s


def prepare_params(params_list):
    G = len(params_list)

    def stack(fn):
        return jnp.stack([fn(p) for p in params_list], axis=0)

    # stage 1: conv1 of all neurons fused into one (G*30, 25) weight matrix
    w1 = jnp.concatenate([p['w1'].reshape(C, NTAP) for p in params_list], axis=0)
    sc1, sh1 = [], []
    for p in params_list:
        s, t = _bn_fold(p['bn1'])
        sc1.append(s)
        sh1.append(p['b1'] * s + t)
    sc1 = jnp.concatenate(sc1).reshape(G * C, 1)
    sh1 = jnp.concatenate(sh1).reshape(G * C, 1)

    # stage 2: conv2 weights laid out as K = (tap*30 + cin), pre-chunked into KC x KT
    def w2_chunks(p):
        w = p['w2'].transpose(0, 2, 3, 1).reshape(C, NTAP * C)   # (cout, tap*30+cin)
        return w.reshape(C, KC, KT).transpose(1, 0, 2)           # (KC, 30, KT)

    def bn_sc(key):
        return lambda p: _bn_fold(p[key])[0].reshape(C, 1)

    def bn_sh(key):
        return lambda p: _bn_fold(p[key])[1].reshape(C, 1)

    def conv_bn_w(wkey, bnkey):
        def f(p):
            s, _ = _bn_fold(p[bnkey])
            return p[wkey] * s[:, None]
        return f

    def conv_bn_b(bkey, bnkey):
        def f(p):
            s, t = _bn_fold(p[bnkey])
            return (p[bkey] * s + t).reshape(C, 1)
        return f

    return dict(
        w1=w1, sc1=sc1, sh1=sh1,
        w2c=stack(w2_chunks),
        sc2=stack(bn_sc('bn2')),
        sh2=stack(lambda p: (p['b2'] * _bn_fold(p['bn2'])[0]
                             + _bn_fold(p['bn2'])[1]).reshape(C, 1)),
        wq=stack(lambda p: p['wq']),
        bq=stack(lambda p: p['bq'].reshape(-1, 1)),
        wk=stack(lambda p: p['wk']),
        bk=stack(lambda p: p['bk'].reshape(-1, 1)),
        gam=stack(lambda p: p['gamma'].reshape(1, 1)),
        sc3=stack(bn_sc('bn3')),
        sh3=stack(bn_sh('bn3')),
        w3f=stack(conv_bn_w('w3', 'bn4')),
        b3f=stack(conv_bn_b('b3', 'bn4')),
        w4f=stack(conv_bn_w('w4', 'bn5')),
        b4f=stack(conv_bn_b('b4', 'bn5')),
        wl=stack(lambda p: p['wl']),                             # (G, 1, 30)
        bl=stack(lambda p: p['bl'].reshape(1, 1)),
    )


# --------------------------------------------------------------------------
# Full forward
# --------------------------------------------------------------------------

@jax.jit
def model_forward(x, pp):
    B = x.shape[0]
    G = pp['wl'].shape[0]
    h1 = _stage1(x, pp)                    # (G*30, B*529)
    p2 = _stage2_patches(h1, B, G)         # (G, B, 4, KC, KT, 81)
    return _tail(p2, pp, B, G)             # (B, G)


# --------------------------------------------------------------------------
# Pure-JAX reference (NCHW, lax.conv) for correctness checking
# --------------------------------------------------------------------------

_HP = jax.lax.Precision.HIGHEST


def _ref_conv(x, w, b):
    y = jax.lax.conv_general_dilated(
        x, w, (1, 1), 'VALID',
        dimension_numbers=('NCHW', 'OIHW', 'NCHW'), precision=_HP)
    return y + b[None, :, None, None]


def _ref_bnsig(x, bn):
    g, beta, mean, var = bn
    y = (x - mean[None, :, None, None]) / jnp.sqrt(var[None, :, None, None] + EPS)
    return jax.nn.sigmoid(y * g[None, :, None, None] + beta[None, :, None, None])


def _ref_pool(x):
    B, Cc, H, W = x.shape
    x = x[:, :, :H // 2 * 2, :W // 2 * 2]
    return x.reshape(B, Cc, H // 2, 2, W // 2, 2).max(axis=(3, 5))


def ref_forward_one(x, p):
    h = _ref_conv(x, p['w1'], p['b1'])
    h = _ref_bnsig(_ref_pool(h), p['bn1'])
    h = _ref_conv(h, p['w2'], p['b2'])
    h = _ref_bnsig(_ref_pool(h), p['bn2'])
    B, Cc, H, W = h.shape
    N = H * W
    v = h.reshape(B, Cc, N)
    q = jnp.einsum('dc,bcn->bnd', p['wq'], v, precision=_HP) + p['bq'][None, None, :]
    k = jnp.einsum('dc,bcn->bdn', p['wk'], v, precision=_HP) + p['bk'][None, :, None]
    e = jnp.einsum('bnd,bdm->bnm', q, k, precision=_HP)
    att = jax.nn.softmax(e, axis=-1)
    out = jnp.einsum('bcn,bmn->bcm', v, att, precision=_HP)
    h = (p['gamma'] * out + v).reshape(B, Cc, H, W)
    h = _ref_bnsig(h, p['bn3'])
    h = _ref_conv(h, p['w3'][:, :, None, None], p['b3'])
    h = _ref_bnsig(h, p['bn4'])
    h = _ref_conv(h, p['w4'][:, :, None, None], p['b4'])
    h = _ref_bnsig(h, p['bn5'])
    feat = h.reshape(B, 30, N)[:, :, CENTER]
    return jnp.dot(feat, p['wl'].T, precision=_HP) + p['bl'][None, :]


def ref_model_forward(x, params_list):
    return jnp.concatenate([ref_forward_one(x, p) for p in params_list], axis=1)


# --------------------------------------------------------------------------
# Deterministic synthetic parameters (shapes follow the module's __init__)
# --------------------------------------------------------------------------

def init_neuron_params(key):
    ks = jax.random.split(key, 24)

    def nrm(k, shape, s=0.1):
        return s * jax.random.normal(k, shape, jnp.float32)

    def bn(k):
        k1, k2, k3, k4 = jax.random.split(k, 4)
        g = 1.0 + 0.1 * jax.random.normal(k1, (30,), jnp.float32)
        beta = 0.1 * jax.random.normal(k2, (30,), jnp.float32)
        mean = 0.1 * jax.random.normal(k3, (30,), jnp.float32)
        var = 1.0 + 0.1 * jnp.abs(jax.random.normal(k4, (30,), jnp.float32))
        return (g, beta, mean, var)

    # NOTE: attention gamma is initialized nonzero (PyTorch inits it to 0, which
    # would make the attention branch a no-op) so the attention path is tested;
    # value_conv / o_proj params are unused because v_mapping=False.
    return dict(
        w1=nrm(ks[0], (30, 1, 5, 5)), b1=nrm(ks[1], (30,)), bn1=bn(ks[2]),
        w2=nrm(ks[3], (30, 30, 5, 5), 0.05), b2=nrm(ks[4], (30,)), bn2=bn(ks[5]),
        wq=nrm(ks[6], (5, 30)), bq=nrm(ks[7], (5,)),
        wk=nrm(ks[8], (5, 30)), bk=nrm(ks[9], (5,)),
        gamma=0.5 + 0.1 * jax.random.normal(ks[10], (), jnp.float32),
        bn3=bn(ks[11]),
        w3=nrm(ks[12], (30, 30)), b3=nrm(ks[13], (30,)), bn4=bn(ks[14]),
        w4=nrm(ks[15], (30, 30)), b4=nrm(ks[16], (30,)), bn5=bn(ks[17]),
        wl=nrm(ks[18], (1, 30)), bl=nrm(ks[19], (1,)),
    )


if __name__ == "__main__":
    key = jax.random.PRNGKey(0)
    kx, kp = jax.random.split(key)

    # Input must be 50x50 so the network's reshape(-1, 30, 81) is valid:
    # 50 -conv5-> 46 -pool-> 23 -conv5-> 19 -pool-> 9  (9*9 = 81)
    B, H, W = 2, 50, 50
    num_neurons = 3
    x = jax.random.normal(kx, (B, 1, H, W), jnp.float32)
    params_list = [init_neuron_params(k) for k in jax.random.split(kp, num_neurons)]

    pp = prepare_params(params_list)       # hoisted parameter folding (once)
    out = model_forward(x, pp)
    out = jax.block_until_ready(out)

    assert out.shape == (B, num_neurons), out.shape
    ref = ref_model_forward(x, params_list)
    assert bool(jnp.all(jnp.isfinite(out)))
    assert bool(jnp.allclose(out, ref, rtol=5e-3, atol=5e-3)), (out, ref)

    print("KERNEL_OK")
</pallas_src>

<mosaic_0001>
module attributes {stable_mosaic.version = 11 : i64} {
  func.func @_stage1_kernel(%arg0: i32, %arg1: memref<4x25x256xf32, #tpu.memory_space<vmem>>, %arg2: memref<90x25xf32, #tpu.memory_space<vmem>>, %arg3: memref<90x1xf32, #tpu.memory_space<vmem>>, %arg4: memref<90x1xf32, #tpu.memory_space<vmem>>, %arg5: memref<90x256xf32, #tpu.memory_space<vmem>>) attributes {dimension_semantics = [#tpu.dimension_semantics<parallel>], iteration_bounds = array<i64: 5>, scalar_prefetch = 0 : i64, scratch_operands = 0 : i64, tpu.core_type = #tpu.core_type<tc>, window_params = [{transform_indices = @transform_0, window_bounds = array<i64: 4, 25, 256>}, {pipeline_mode = #tpu.pipeline_mode<synchronous>, transform_indices = @transform_1, window_bounds = array<i64: 90, 25>}, {pipeline_mode = #tpu.pipeline_mode<synchronous>, transform_indices = @transform_2, window_bounds = array<i64: 90, 1>}, {pipeline_mode = #tpu.pipeline_mode<synchronous>, transform_indices = @transform_3, window_bounds = array<i64: 90, 1>}, {transform_indices = @transform_4, window_bounds = array<i64: 90, 256>}]} {
    %c0 = arith.constant 0 : index
    %c0_0 = arith.constant 0 : index
    %0 = vector.load %arg2[%c0, %c0_0] : memref<90x25xf32, #tpu.memory_space<vmem>>, vector<90x25xf32>
    %c0_1 = arith.constant 0 : index
    %c0_2 = arith.constant 0 : index
    %c0_3 = arith.constant 0 : index
    %1 = vector.load %arg1[%c0_1, %c0_2, %c0_3] : memref<4x25x256xf32, #tpu.memory_space<vmem>>, vector<1x25x256xf32>
    %2 = vector.shape_cast %1 : vector<1x25x256xf32> to vector<25x256xf32>
    %cst = arith.constant dense<0.000000e+00> : vector<90x256xf32>
    %3 = tpu.matmul %0, %2, %cst {dimension_numbers = #tpu.dot_dimension_numbers<[1], [0], [0], [1], [0, 0, 1, 1], [], []>} : vector<90x25xf32>, vector<25x256xf32>, vector<90x256xf32> -> vector<90x256xf32>
    %c1 = arith.constant 1 : index
    %c0_4 = arith.constant 0 : index
    %c0_5 = arith.constant 0 : index
    %4 = vector.load %arg1[%c1, %c0_4, %c0_5] : memref<4x25x256xf32, #tpu.memory_space<vmem>>, vector<1x25x256xf32>
    %5 = vector.shape_cast %4 : vector<1x25x256xf32> to vector<25x256xf32>
    %cst_6 = arith.constant dense<0.000000e+00> : vector<90x256xf32>
    %6 = tpu.matmul %0, %5, %cst_6 {dimension_numbers = #tpu.dot_dimension_numbers<[1], [0], [0], [1], [0, 0, 1, 1], [], []>} : vector<90x25xf32>, vector<25x256xf32>, vector<90x256xf32> -> vector<90x256xf32>
    %7 = arith.maximumf %3, %6 : vector<90x256xf32>
    %c2 = arith.constant 2 : index
    %c0_7 = arith.constant 0 : index
    %c0_8 = arith.constant 0 : index
    %8 = vector.load %arg1[%c2, %c0_7, %c0_8] : memref<4x25x256xf32, #tpu.memory_space<vmem>>, vector<1x25x256xf32>
    %9 = vector.shape_cast %8 : vector<1x25x256xf32> to vector<25x256xf32>
    %cst_9 = arith.constant dense<0.000000e+00> : vector<90x256xf32>
    %10 = tpu.matmul %0, %9, %cst_9 {dimension_numbers = #tpu.dot_dimension_numbers<[1], [0], [0], [1], [0, 0, 1, 1], [], []>} : vector<90x25xf32>, vector<25x256xf32>, vector<90x256xf32> -> vector<90x256xf32>
    %11 = arith.maximumf %7, %10 : vector<90x256xf32>
    %c3 = arith.constant 3 : index
    %c0_10 = arith.constant 0 : index
    %c0_11 = arith.constant 0 : index
    %12 = vector.load %arg1[%c3, %c0_10, %c0_11] : memref<4x25x256xf32, #tpu.memory_space<vmem>>, vector<1x25x256xf32>
    %13 = vector.shape_cast %12 : vector<1x25x256xf32> to vector<25x256xf32>
    %cst_12 = arith.constant dense<0.000000e+00> : vector<90x256xf32>
    %14 = tpu.matmul %0, %13, %cst_12 {dimension_numbers = #tpu.dot_dimension_numbers<[1], [0], [0], [1], [0, 0, 1, 1], [], []>} : vector<90x25xf32>, vector<25x256xf32>, vector<90x256xf32> -> vector<90x256xf32>
    %15 = arith.maximumf %11, %14 : vector<90x256xf32>
    %c0_13 = arith.constant 0 : index
    %c0_14 = arith.constant 0 : index
    %16 = vector.load %arg3[%c0_13, %c0_14] : memref<90x1xf32, #tpu.memory_space<vmem>>, vector<90x1xf32>
    %17 = vector.broadcast %16 : vector<90x1xf32> to vector<90x256xf32>
    %18 = arith.mulf %15, %17 : vector<90x256xf32>
    %c0_15 = arith.constant 0 : index
    %c0_16 = arith.constant 0 : index
    %19 = vector.load %arg4[%c0_15, %c0_16] : memref<90x1xf32, #tpu.memory_space<vmem>>, vector<90x1xf32>
    %20 = vector.broadcast %19 : vector<90x1xf32> to vector<90x256xf32>
    %21 = arith.addf %18, %20 : vector<90x256xf32>
    %22 = arith.negf %21 : vector<90x256xf32>
    %23 = math.exp %22 : vector<90x256xf32>
    %cst_17 = arith.constant 1.000000e+00 : f32
    %24 = vector.broadcast %cst_17 : f32 to vector<90x256xf32>
    %25 = arith.addf %24, %23 : vector<90x256xf32>
    %26 = arith.divf %24, %25 : vector<90x256xf32>
    %c0_18 = arith.constant 0 : index
    %c0_19 = arith.constant 0 : index
    %27 = vector.load %arg5[%c0_18, %c0_19] : memref<90x256xf32, #tpu.memory_space<vmem>>, vector<90x256xf32>
    tpu.vector_store %arg5[%c0_18, %c0_19], %26 {strides = array<i32>} : memref<90x256xf32, #tpu.memory_space<vmem>>, vector<90x256xf32>,
    return
  }
  func.func @transform_0(%arg0: i32) -> (i32, i32, i32) {
    %c0_i32 = arith.constant 0 : i32
    %c0_i32_0 = arith.constant 0 : i32
    %c0_i32_1 = arith.constant 0 : i32
    return %c0_i32, %c0_i32_0, %arg0 : i32, i32, i32
  }
  func.func @transform_1(%arg0: i32) -> (i32, i32) {
    %c0_i32 = arith.constant 0 : i32
    %c0_i32_0 = arith.constant 0 : i32
    %c0_i32_1 = arith.constant 0 : i32
    return %c0_i32, %c0_i32_0 : i32, i32
  }
  func.func @transform_2(%arg0: i32) -> (i32, i32) {
    %c0_i32 = arith.constant 0 : i32
    %c0_i32_0 = arith.constant 0 : i32
    %c0_i32_1 = arith.constant 0 : i32
    return %c0_i32, %c0_i32_0 : i32, i32
  }
  func.func @transform_3(%arg0: i32) -> (i32, i32) {
    %c0_i32 = arith.constant 0 : i32
    %c0_i32_0 = arith.constant 0 : i32
    %c0_i32_1 = arith.constant 0 : i32
    return %c0_i32, %c0_i32_0 : i32, i32
  }
  func.func @transform_4(%arg0: i32) -> (i32, i32) {
    %c0_i32 = arith.constant 0 : i32
    %c0_i32_0 = arith.constant 0 : i32
    return %c0_i32, %arg0 : i32, i32
  }
}

module attributes {stable_mosaic.version = 11 : i64} {
  func.func @_tail_kernel(%arg0: i32, %arg1: i32, %arg2: memref<1x1x4x3x250x81xf32, #tpu.memory_space<vmem>>, %arg3: memref<1x3x30x250xf32, #tpu.memory_space<vmem>>, %arg4: memref<1x30x1xf32, #tpu.memory_space<vmem>>, %arg5: memref<1x30x1xf32, #tpu.memory_space<vmem>>, %arg6: memref<1x5x30xf32, #tpu.memory_space<vmem>>, %arg7: memref<1x5x1xf32, #tpu.memory_space<vmem>>, %arg8: memref<1x5x30xf32, #tpu.memory_space<vmem>>, %arg9: memref<1x5x1xf32, #tpu.memory_space<vmem>>, %arg10: memref<1x1x1xf32, #tpu.memory_space<vmem>>, %arg11: memref<1x30x1xf32, #tpu.memory_space<vmem>>, %arg12: memref<1x30x1xf32, #tpu.memory_space<vmem>>, %arg13: memref<1x30x30xf32, #tpu.memory_space<vmem>>, %arg14: memref<1x30x1xf32, #tpu.memory_space<vmem>>, %arg15: memref<1x30x30xf32, #tpu.memory_space<vmem>>, %arg16: memref<1x30x1xf32, #tpu.memory_space<vmem>>, %arg17: memref<1x1x30xf32, #tpu.memory_space<vmem>>, %arg18: memref<1x1x1xf32, #tpu.memory_space<vmem>>, %arg19: memref<1x1x1x1xf32, #tpu.memory_space<vmem>>) attributes {dimension_semantics = [#tpu.dimension_semantics<parallel>, #tpu.dimension_semantics<parallel>], iteration_bounds = array<i64: 3, 2>, scalar_prefetch = 0 : i64, scratch_operands = 0 : i64, tpu.core_type = #tpu.core_type<tc>, window_params = [{transform_indices = @transform_0, window_bounds = array<i64: 1, 1, 4, 3, 250, 81>}, {transform_indices = @transform_1, window_bounds = array<i64: 1, 3, 30, 250>}, {transform_indices = @transform_2, window_bounds = array<i64: 1, 30, 1>}, {transform_indices = @transform_3, window_bounds = array<i64: 1, 30, 1>}, {transform_indices = @transform_4, window_bounds = array<i64: 1, 5, 30>}, {transform_indices = @transform_5, window_bounds = array<i64: 1, 5, 1>}, {transform_indices = @transform_6, window_bounds = array<i64: 1, 5, 30>}, {transform_indices = @transform_7, window_bounds = array<i64: 1, 5, 1>}, {transform_indices = @transform_8, window_bounds = array<i64: 1, 1, 1>}, {transform_indices = @transform_9, window_bounds = array<i64: 1, 30, 1>}, {transform_indices = @transform_10, window_bounds = array<i64: 1, 30, 1>}, {transform_indices = @transform_11, window_bounds = array<i64: 1, 30, 30>}, {transform_indices = @transform_12, window_bounds = array<i64: 1, 30, 1>}, {transform_indices = @transform_13, window_bounds = array<i64: 1, 30, 30>}, {transform_indices = @transform_14, window_bounds = array<i64: 1, 30, 1>}, {transform_indices = @transform_15, window_bounds = array<i64: 1, 1, 30>}, {transform_indices = @transform_16, window_bounds = array<i64: 1, 1, 1>}, {transform_indices = @transform_17, window_bounds = array<i64: 1, 1, 1, 1>}]} {
    %c0 = arith.constant 0 : index
    %c0_0 = arith.constant 0 : index
    %c0_1 = arith.constant 0 : index
    %c0_2 = arith.constant 0 : index
    %0 = vector.load %arg3[%c0, %c0_0, %c0_1, %c0_2] : memref<1x3x30x250xf32, #tpu.memory_space<vmem>>, vector<1x1x30x250xf32>
    %1 = vector.shape_cast %0 : vector<1x1x30x250xf32> to vector<30x250xf32>
    %c0_3 = arith.constant 0 : index
    %c0_4 = arith.constant 0 : index
    %c0_5 = arith.constant 0 : index
    %c0_6 = arith.constant 0 : index
    %c0_7 = arith.constant 0 : index
    %c0_8 = arith.constant 0 : index
    %2 = vector.load %arg2[%c0_3, %c0_4, %c0_5, %c0_6, %c0_7, %c0_8] : memref<1x1x4x3x250x81xf32, #tpu.memory_space<vmem>>, vector<1x1x1x1x250x81xf32>
    %3 = vector.shape_cast %2 : vector<1x1x1x1x250x81xf32> to vector<250x81xf32>
    %cst = arith.constant dense<0.000000e+00> : vector<30x81xf32>
    %4 = tpu.matmul %1, %3, %cst {dimension_numbers = #tpu.dot_dimension_numbers<[1], [0], [0], [1], [0, 0, 1, 1], [], []>} : vector<30x250xf32>, vector<250x81xf32>, vector<30x81xf32> -> vector<30x81xf32>
    %c0_9 = arith.constant 0 : index
    %c1 = arith.constant 1 : index
    %c0_10 = arith.constant 0 : index
    %c0_11 = arith.constant 0 : index
    %5 = vector.load %arg3[%c0_9, %c1, %c0_10, %c0_11] : memref<1x3x30x250xf32, #tpu.memory_space<vmem>>, vector<1x1x30x250xf32>
    %6 = vector.shape_cast %5 : vector<1x1x30x250xf32> to vector<30x250xf32>
    %c0_12 = arith.constant 0 : index
    %c0_13 = arith.constant 0 : index
    %c0_14 = arith.constant 0 : index
    %c1_15 = arith.constant 1 : index
    %c0_16 = arith.constant 0 : index
    %c0_17 = arith.constant 0 : index
    %7 = vector.load %arg2[%c0_12, %c0_13, %c0_14, %c1_15, %c0_16, %c0_17] : memref<1x1x4x3x250x81xf32, #tpu.memory_space<vmem>>, vector<1x1x1x1x250x81xf32>
    %8 = vector.shape_cast %7 : vector<1x1x1x1x250x81xf32> to vector<250x81xf32>
    %cst_18 = arith.constant dense<0.000000e+00> : vector<30x81xf32>
    %9 = tpu.matmul %6, %8, %cst_18 {dimension_numbers = #tpu.dot_dimension_numbers<[1], [0], [0], [1], [0, 0, 1, 1], [], []>} : vector<30x250xf32>, vector<250x81xf32>, vector<30x81xf32> -> vector<30x81xf32>
    %10 = arith.addf %4, %9 : vector<30x81xf32>
    %c0_19 = arith.constant 0 : index
    %c2 = arith.constant 2 : index
    %c0_20 = arith.constant 0 : index
    %c0_21 = arith.constant 0 : index
    %11 = vector.load %arg3[%c0_19, %c2, %c0_20, %c0_21] : memref<1x3x30x250xf32, #tpu.memory_space<vmem>>, vector<1x1x30x250xf32>
    %12 = vector.shape_cast %11 : vector<1x1x30x250xf32> to vector<30x250xf32>
    %c0_22 = arith.constant 0 : index
    %c0_23 = arith.constant 0 : index
    %c0_24 = arith.constant 0 : index
    %c2_25 = arith.constant 2 : index
    %c0_26 = arith.constant 0 : index
    %c0_27 = arith.constant 0 : index
    %13 = vector.load %arg2[%c0_22, %c0_23, %c0_24, %c2_25, %c0_26, %c0_27] : memref<1x1x4x3x250x81xf32, #tpu.memory_space<vmem>>, vector<1x1x1x1x250x81xf32>
    %14 = vector.shape_cast %13 : vector<1x1x1x1x250x81xf32> to vector<250x81xf32>
    %cst_28 = arith.constant dense<0.000000e+00> : vector<30x81xf32>
    %15 = tpu.matmul %12, %14, %cst_28 {dimension_numbers = #tpu.dot_dimension_numbers<[1], [0], [0], [1], [0, 0, 1, 1], [], []>} : vector<30x250xf32>, vector<250x81xf32>, vector<30x81xf32> -> vector<30x81xf32>
    %16 = arith.addf %10, %15 : vector<30x81xf32>
    %c0_29 = arith.constant 0 : index
    %c0_30 = arith.constant 0 : index
    %c0_31 = arith.constant 0 : index
    %c0_32 = arith.constant 0 : index
    %17 = vector.load %arg3[%c0_29, %c0_30, %c0_31, %c0_32] : memref<1x3x30x250xf32, #tpu.memory_space<vmem>>, vector<1x1x30x250xf32>
    %18 = vector.shape_cast %17 : vector<1x1x30x250xf32> to vector<30x250xf32>
    %c0_33 = arith.constant 0 : index
    %c0_34 = arith.constant 0 : index
    %c1_35 = arith.constant 1 : index
    %c0_36 = arith.constant 0 : index
    %c0_37 = arith.constant 0 : index
    %c0_38 = arith.constant 0 : index
    %19 = vector.load %arg2[%c0_33, %c0_34, %c1_35, %c0_36, %c0_37, %c0_38] : memref<1x1x4x3x250x81xf32, #tpu.memory_space<vmem>>, vector<1x1x1x1x250x81xf32>
    %20 = vector.shape_cast %19 : vector<1x1x1x1x250x81xf32> to vector<250x81xf32>
    %cst_39 = arith.constant dense<0.000000e+00> : vector<30x81xf32>
    %21 = tpu.matmul %18, %20, %cst_39 {dimension_numbers = #tpu.dot_dimension_numbers<[1], [0], [0], [1], [0, 0, 1, 1], [], []>} : vector<30x250xf32>, vector<250x81xf32>, vector<30x81xf32> -> vector<30x81xf32>
    %c0_40 = arith.constant 0 : index
    %c1_41 = arith.constant 1 : index
    %c0_42 = arith.constant 0 : index
    %c0_43 = arith.constant 0 : index
    %22 = vector.load %arg3[%c0_40, %c1_41, %c0_42, %c0_43] : memref<1x3x30x250xf32, #tpu.memory_space<vmem>>, vector<1x1x30x250xf32>
    %23 = vector.shape_cast %22 : vector<1x1x30x250xf32> to vector<30x250xf32>
    %c0_44 = arith.constant 0 : index
    %c0_45 = arith.constant 0 : index
    %c1_46 = arith.constant 1 : index
    %c1_47 = arith.constant 1 : index
    %c0_48 = arith.constant 0 : index
    %c0_49 = arith.constant 0 : index
    %24 = vector.load %arg2[%c0_44, %c0_45, %c1_46, %c1_47, %c0_48, %c0_49] : memref<1x1x4x3x250x81xf32, #tpu.memory_space<vmem>>, vector<1x1x1x1x250x81xf32>
    %25 = vector.shape_cast %24 : vector<1x1x1x1x250x81xf32> to vector<250x81xf32>
    %cst_50 = arith.constant dense<0.000000e+00> : vector<30x81xf32>
    %26 = tpu.matmul %23, %25, %cst_50 {dimension_numbers = #tpu.dot_dimension_numbers<[1], [0], [0], [1], [0, 0, 1, 1], [], []>} : vector<30x250xf32>, vector<250x81xf32>, vector<30x81xf32> -> vector<30x81xf32>
    %27 = arith.addf %21, %26 : vector<30x81xf32>
    %c0_51 = arith.constant 0 : index
    %c2_52 = arith.constant 2 : index
    %c0_53 = arith.constant 0 : index
    %c0_54 = arith.constant 0 : index
    %28 = vector.load %arg3[%c0_51, %c2_52, %c0_53, %c0_54] : memref<1x3x30x250xf32, #tpu.memory_space<vmem>>, vector<1x1x30x250xf32>
    %29 = vector.shape_cast %28 : vector<1x1x30x250xf32> to vector<30x250xf32>
    %c0_55 = arith.constant 0 : index
    %c0_56 = arith.constant 0 : index
    %c1_57 = arith.constant 1 : index
    %c2_58 = arith.constant 2 : index
    %c0_59 = arith.constant 0 : index
    %c0_60 = arith.constant 0 : index
    %30 = vector.load %arg2[%c0_55, %c0_56, %c1_57, %c2_58, %c0_59, %c0_60] : memref<1x1x4x3x250x81xf32, #tpu.memory_space<vmem>>, vector<1x1x1x1x250x81xf32>
    %31 = vector.shape_cast %30 : vector<1x1x1x1x250x81xf32> to vector<250x81xf32>
    %cst_61 = arith.constant dense<0.000000e+00> : vector<30x81xf32>
    %32 = tpu.matmul %29, %31, %cst_61 {dimension_numbers = #tpu.dot_dimension_numbers<[1], [0], [0], [1], [0, 0, 1, 1], [], []>} : vector<30x250xf32>, vector<250x81xf32>, vector<30x81xf32> -> vector<30x81xf32>
    %33 = arith.addf %27, %32 : vector<30x81xf32>
    %34 = arith.maximumf %16, %33 : vector<30x81xf32>
    %c0_62 = arith.constant 0 : index
    %c0_63 = arith.constant 0 : index
    %c0_64 = arith.constant 0 : index
    %c0_65 = arith.constant 0 : index
    %35 = vector.load %arg3[%c0_62, %c0_63, %c0_64, %c0_65] : memref<1x3x30x250xf32, #tpu.memory_space<vmem>>, vector<1x1x30x250xf32>
    %36 = vector.shape_cast %35 : vector<1x1x30x250xf32> to vector<30x250xf32>
    %c0_66 = arith.constant 0 : index
    %c0_67 = arith.constant 0 : index
    %c2_68 = arith.constant 2 : index
    %c0_69 = arith.constant 0 : index
    %c0_70 = arith.constant 0 : index
    %c0_71 = arith.constant 0 : index
    %37 = vector.load %arg2[%c0_66, %c0_67, %c2_68, %c0_69, %c0_70, %c0_71] : memref<1x1x4x3x250x81xf32, #tpu.memory_space<vmem>>, vector<1x1x1x1x250x81xf32>
    %38 = vector.shape_cast %37 : vector<1x1x1x1x250x81xf32> to vector<250x81xf32>
    %cst_72 = arith.constant dense<0.000000e+00> : vector<30x81xf32>
    %39 = tpu.matmul %36, %38, %cst_72 {dimension_numbers = #tpu.dot_dimension_numbers<[1], [0], [0], [1], [0, 0, 1, 1], [], []>} : vector<30x250xf32>, vector<250x81xf32>, vector<30x81xf32> -> vector<30x81xf32>
    %c0_73 = arith.constant 0 : index
    %c1_74 = arith.constant 1 : index
    %c0_75 = arith.constant 0 : index
    %c0_76 = arith.constant 0 : index
    %40 = vector.load %arg3[%c0_73, %c1_74, %c0_75, %c0_76] : memref<1x3x30x250xf32, #tpu.memory_space<vmem>>, vector<1x1x30x250xf32>
    %41 = vector.shape_cast %40 : vector<1x1x30x250xf32> to vector<30x250xf32>
    %c0_77 = arith.constant 0 : index
    %c0_78 = arith.constant 0 : index
    %c2_79 = arith.constant 2 : index
    %c1_80 = arith.constant 1 : index
    %c0_81 = arith.constant 0 : index
    %c0_82 = arith.constant 0 : index
    %42 = vector.load %arg2[%c0_77, %c0_78, %c2_79, %c1_80, %c0_81, %c0_82] : memref<1x1x4x3x250x81xf32, #tpu.memory_space<vmem>>, vector<1x1x1x1x250x81xf32>
    %43 = vector.shape_cast %42 : vector<1x1x1x1x250x81xf32> to vector<250x81xf32>
    %cst_83 = arith.constant dense<0.000000e+00> : vector<30x81xf32>
    %44 = tpu.matmul %41, %43, %cst_83 {dimension_numbers = #tpu.dot_dimension_numbers<[1], [0], [0], [1], [0, 0, 1, 1], [], []>} : vector<30x250xf32>, vector<250x81xf32>, vector<30x81xf32> -> vector<30x81xf32>
    %45 = arith.addf %39, %44 : vector<30x81xf32>
    %c0_84 = arith.constant 0 : index
    %c2_85 = arith.constant 2 : index
    %c0_86 = arith.constant 0 : index
    %c0_87 = arith.constant 0 : index
    %46 = vector.load %arg3[%c0_84, %c2_85, %c0_86, %c0_87] : memref<1x3x30x250xf32, #tpu.memory_space<vmem>>, vector<1x1x30x250xf32>
    %47 = vector.shape_cast %46 : vector<1x1x30x250xf32> to vector<30x250xf32>
    %c0_88 = arith.constant 0 : index
    %c0_89 = arith.constant 0 : index
    %c2_90 = arith.constant 2 : index
    %c2_91 = arith.constant 2 : index
    %c0_92 = arith.constant 0 : index
    %c0_93 = arith.constant 0 : index
    %48 = vector.load %arg2[%c0_88, %c0_89, %c2_90, %c2_91, %c0_92, %c0_93] : memref<1x1x4x3x250x81xf32, #tpu.memory_space<vmem>>, vector<1x1x1x1x250x81xf32>
    %49 = vector.shape_cast %48 : vector<1x1x1x1x250x81xf32> to vector<250x81xf32>
    %cst_94 = arith.constant dense<0.000000e+00> : vector<30x81xf32>
    %50 = tpu.matmul %47, %49, %cst_94 {dimension_numbers = #tpu.dot_dimension_numbers<[1], [0], [0], [1], [0, 0, 1, 1], [], []>} : vector<30x250xf32>, vector<250x81xf32>, vector<30x81xf32> -> vector<30x81xf32>
    %51 = arith.addf %45, %50 : vector<30x81xf32>
    %52 = arith.maximumf %34, %51 : vector<30x81xf32>
    %c0_95 = arith.constant 0 : index
    %c0_96 = arith.constant 0 : index
    %c0_97 = arith.constant 0 : index
    %c0_98 = arith.constant 0 : index
    %53 = vector.load %arg3[%c0_95, %c0_96, %c0_97, %c0_98] : memref<1x3x30x250xf32, #tpu.memory_space<vmem>>, vector<1x1x30x250xf32>
    %54 = vector.shape_cast %53 : vector<1x1x30x250xf32> to vector<30x250xf32>
    %c0_99 = arith.constant 0 : index
    %c0_100 = arith.constant 0 : index
    %c3 = arith.constant 3 : index
    %c0_101 = arith.constant 0 : index
    %c0_102 = arith.constant 0 : index
    %c0_103 = arith.constant 0 : index
    %55 = vector.load %arg2[%c0_99, %c0_100, %c3, %c0_101, %c0_102, %c0_103] : memref<1x1x4x3x250x81xf32, #tpu.memory_space<vmem>>, vector<1x1x1x1x250x81xf32>
    %56 = vector.shape_cast %55 : vector<1x1x1x1x250x81xf32> to vector<250x81xf32>
    %cst_104 = arith.constant dense<0.000000e+00> : vector<30x81xf32>
    %57 = tpu.matmul %54, %56, %cst_104 {dimension_numbers = #tpu.dot_dimension_numbers<[1], [0], [0], [1], [0, 0, 1, 1], [], []>} : vector<30x250xf32>, vector<250x81xf32>, vector<30x81xf32> -> vector<30x81xf32>
    %c0_105 = arith.constant 0 : index
    %c1_106 = arith.constant 1 : index
    %c0_107 = arith.constant 0 : index
    %c0_108 = arith.constant 0 : index
    %58 = vector.load %arg3[%c0_105, %c1_106, %c0_107, %c0_108] : memref<1x3x30x250xf32, #tpu.memory_space<vmem>>, vector<1x1x30x250xf32>
    %59 = vector.shape_cast %58 : vector<1x1x30x250xf32> to vector<30x250xf32>
    %c0_109 = arith.constant 0 : index
    %c0_110 = arith.constant 0 : index
    %c3_111 = arith.constant 3 : index
    %c1_112 = arith.constant 1 : index
    %c0_113 = arith.constant 0 : index
    %c0_114 = arith.constant 0 : index
    %60 = vector.load %arg2[%c0_109, %c0_110, %c3_111, %c1_112, %c0_113, %c0_114] : memref<1x1x4x3x250x81xf32, #tpu.memory_space<vmem>>, vector<1x1x1x1x250x81xf32>
    %61 = vector.shape_cast %60 : vector<1x1x1x1x250x81xf32> to vector<250x81xf32>
    %cst_115 = arith.constant dense<0.000000e+00> : vector<30x81xf32>
    %62 = tpu.matmul %59, %61, %cst_115 {dimension_numbers = #tpu.dot_dimension_numbers<[1], [0], [0], [1], [0, 0, 1, 1], [], []>} : vector<30x250xf32>, vector<250x81xf32>, vector<30x81xf32> -> vector<30x81xf32>
    %63 = arith.addf %57, %62 : vector<30x81xf32>
    %c0_116 = arith.constant 0 : index
    %c2_117 = arith.constant 2 : index
    %c0_118 = arith.constant 0 : index
    %c0_119 = arith.constant 0 : index
    %64 = vector.load %arg3[%c0_116, %c2_117, %c0_118, %c0_119] : memref<1x3x30x250xf32, #tpu.memory_space<vmem>>, vector<1x1x30x250xf32>
    %65 = vector.shape_cast %64 : vector<1x1x30x250xf32> to vector<30x250xf32>
    %c0_120 = arith.constant 0 : index
    %c0_121 = arith.constant 0 : index
    %c3_122 = arith.constant 3 : index
    %c2_123 = arith.constant 2 : index
    %c0_124 = arith.constant 0 : index
    %c0_125 = arith.constant 0 : index
    %66 = vector.load %arg2[%c0_120, %c0_121, %c3_122, %c2_123, %c0_124, %c0_125] : memref<1x1x4x3x250x81xf32, #tpu.memory_space<vmem>>, vector<1x1x1x1x250x81xf32>
    %67 = vector.shape_cast %66 : vector<1x1x1x1x250x81xf32> to vector<250x81xf32>
    %cst_126 = arith.constant dense<0.000000e+00> : vector<30x81xf32>
    %68 = tpu.matmul %65, %67, %cst_126 {dimension_numbers = #tpu.dot_dimension_numbers<[1], [0], [0], [1], [0, 0, 1, 1], [], []>} : vector<30x250xf32>, vector<250x81xf32>, vector<30x81xf32> -> vector<30x81xf32>
    %69 = arith.addf %63, %68 : vector<30x81xf32>
    %70 = arith.maximumf %52, %69 : vector<30x81xf32>
    %c0_127 = arith.constant 0 : index
    %c0_128 = arith.constant 0 : index
    %c0_129 = arith.constant 0 : index
    %71 = vector.load %arg4[%c0_127, %c0_128, %c0_129] : memref<1x30x1xf32, #tpu.memory_space<vmem>>, vector<1x30x1xf32>
    %72 = vector.shape_cast %71 : vector<1x30x1xf32> to vector<30x1xf32>
    %73 = vector.broadcast %72 : vector<30x1xf32> to vector<30x81xf32>
    %74 = arith.mulf %70, %73 : vector<30x81xf32>
    %c0_130 = arith.constant 0 : index
    %c0_131 = arith.constant 0 : index
    %c0_132 = arith.constant 0 : index
    %75 = vector.load %arg5[%c0_130, %c0_131, %c0_132] : memref<1x30x1xf32, #tpu.memory_space<vmem>>, vector<1x30x1xf32>
    %76 = vector.shape_cast %75 : vector<1x30x1xf32> to vector<30x1xf32>
    %77 = vector.broadcast %76 : vector<30x1xf32> to vector<30x81xf32>
    %78 = arith.addf %74, %77 : vector<30x81xf32>
    %79 = arith.negf %78 : vector<30x81xf32>
    %80 = math.exp %79 : vector<30x81xf32>
    %cst_133 = arith.constant 1.000000e+00 : f32
    %81 = vector.broadcast %cst_133 : f32 to vector<30x81xf32>
    %82 = arith.addf %81, %80 : vector<30x81xf32>
    %83 = arith.divf %81, %82 : vector<30x81xf32>
    %84 = tpu.iota {dimensions = array<i32: 1>} : vector<1x81xi32>
    %c40_i32 = arith.constant 40 : i32
    %85 = vector.broadcast %c40_i32 : i32 to vector<1x81xi32>
    %86 = arith.cmpi eq, %84, %85 : vector<1x81xi32>
    %cst_134 = arith.constant 0.000000e+00 : f32
    %87 = vector.shape_cast %86 : vector<1x81xi1> to vector<1x81xi1>
    %88 = vector.broadcast %87 : vector<1x81xi1> to vector<30x81xi1>
    %89 = vector.broadcast %cst_134 : f32 to vector<30x81xf32>
    %90 = arith.select %88, %83, %89 : vector<30x81xi1>, vector<30x81xf32>
    %cst_135 = arith.constant dense<0.000000e+00> : vector<30xf32>
    %91 = vector.multi_reduction <add>, %90, %cst_135 [1] : vector<30x81xf32> to vector<30xf32>
    %92 = vector.shape_cast %91 : vector<30xf32> to vector<30x1xf32>
    %c0_136 = arith.constant 0 : index
    %c0_137 = arith.constant 0 : index
    %c0_138 = arith.constant 0 : index
    %93 = vector.load %arg6[%c0_136, %c0_137, %c0_138] : memref<1x5x30xf32, #tpu.memory_space<vmem>>, vector<1x5x30xf32>
    %94 = vector.shape_cast %93 : vector<1x5x30xf32> to vector<5x30xf32>
    %cst_139 = arith.constant dense<0.000000e+00> : vector<5x1xf32>
    %95 = tpu.matmul %94, %92, %cst_139 {dimension_numbers = #tpu.dot_dimension_numbers<[1], [0], [0], [1], [0, 0, 1, 1], [], []>} : vector<5x30xf32>, vector<30x1xf32>, vector<5x1xf32> -> vector<5x1xf32>
    %c0_140 = arith.constant 0 : index
    %c0_141 = arith.constant 0 : index
    %c0_142 = arith.constant 0 : index
    %96 = vector.load %arg7[%c0_140, %c0_141, %c0_142] : memref<1x5x1xf32, #tpu.memory_space<vmem>>, vector<1x5x1xf32>
    %97 = vector.shape_cast %96 : vector<1x5x1xf32> to vector<5x1xf32>
    %98 = arith.addf %95, %97 : vector<5x1xf32>
    %c0_143 = arith.constant 0 : index
    %c0_144 = arith.constant 0 : index
    %c0_145 = arith.constant 0 : index
    %99 = vector.load %arg8[%c0_143, %c0_144, %c0_145] : memref<1x5x30xf32, #tpu.memory_space<vmem>>, vector<1x5x30xf32>
    %100 = vector.shape_cast %99 : vector<1x5x30xf32> to vector<5x30xf32>
    %cst_146 = arith.constant dense<0.000000e+00> : vector<5x81xf32>
    %101 = tpu.matmul %100, %83, %cst_146 {dimension_numbers = #tpu.dot_dimension_numbers<[1], [0], [0], [1], [0, 0, 1, 1], [], []>} : vector<5x30xf32>, vector<30x81xf32>, vector<5x81xf32> -> vector<5x81xf32>
    %c0_147 = arith.constant 0 : index
    %c0_148 = arith.constant 0 : index
    %c0_149 = arith.constant 0 : index
    %102 = vector.load %arg9[%c0_147, %c0_148, %c0_149] : memref<1x5x1xf32, #tpu.memory_space<vmem>>, vector<1x5x1xf32>
    %103 = vector.shape_cast %102 : vector<1x5x1xf32> to vector<5x1xf32>
    %104 = vector.broadcast %103 : vector<5x1xf32> to vector<5x81xf32>
    %105 = arith.addf %101, %104 : vector<5x81xf32>
    %106 = vector.broadcast %98 : vector<5x1xf32> to vector<5x81xf32>
    %107 = arith.mulf %106, %105 : vector<5x81xf32>
    %cst_150 = arith.constant dense<0.000000e+00> : vector<81xf32>
    %108 = vector.multi_reduction <add>, %107, %cst_150 [0] : vector<5x81xf32> to vector<81xf32>
    %109 = vector.shape_cast %108 : vector<81xf32> to vector<1x81xf32>
    %cst_151 = arith.constant dense<0xFF800000> : vector<1xf32>
    %110 = vector.multi_reduction <maximumf>, %109, %cst_151 [1] : vector<1x81xf32> to vector<1xf32>
    %111 = vector.shape_cast %110 : vector<1xf32> to vector<1x1xf32>
    %112 = vector.broadcast %111 : vector<1x1xf32> to vector<1x81xf32>
    %113 = arith.subf %109, %112 : vector<1x81xf32>
    %114 = math.exp %113 : vector<1x81xf32>
    %cst_152 = arith.constant dense<0.000000e+00> : vector<1xf32>
    %115 = vector.multi_reduction <add>, %114, %cst_152 [1] : vector<1x81xf32> to vector<1xf32>
    %116 = vector.shape_cast %115 : vector<1xf32> to vector<1x1xf32>
    %117 = vector.broadcast %116 : vector<1x1xf32> to vector<1x81xf32>
    %118 = arith.divf %114, %117 : vector<1x81xf32>
    %119 = vector.broadcast %118 : vector<1x81xf32> to vector<30x81xf32>
    %120 = arith.mulf %83, %119 : vector<30x81xf32>
    %cst_153 = arith.constant dense<0.000000e+00> : vector<30xf32>
    %121 = vector.multi_reduction <add>, %120, %cst_153 [1] : vector<30x81xf32> to vector<30xf32>
    %122 = vector.shape_cast %121 : vector<30xf32> to vector<30x1xf32>
    %c0_154 = arith.constant 0 : index
    %c0_155 = arith.constant 0 : index
    %c0_156 = arith.constant 0 : index
    %123 = vector.load %arg10[%c0_154, %c0_155, %c0_156] : memref<1x1x1xf32, #tpu.memory_space<vmem>>, vector<1x1x1xf32>
    %124 = vector.shape_cast %123 : vector<1x1x1xf32> to vector<1x1xf32>
    %125 = vector.broadcast %124 : vector<1x1xf32> to vector<30x1xf32>
    %126 = arith.mulf %125, %122 : vector<30x1xf32>
    %127 = arith.addf %126, %92 : vector<30x1xf32>
    %c0_157 = arith.constant 0 : index
    %c0_158 = arith.constant 0 : index
    %c0_159 = arith.constant 0 : index
    %128 = vector.load %arg11[%c0_157, %c0_158, %c0_159] : memref<1x30x1xf32, #tpu.memory_space<vmem>>, vector<1x30x1xf32>
    %129 = vector.shape_cast %128 : vector<1x30x1xf32> to vector<30x1xf32>
    %130 = arith.mulf %127, %129 : vector<30x1xf32>
    %c0_160 = arith.constant 0 : index
    %c0_161 = arith.constant 0 : index
    %c0_162 = arith.constant 0 : index
    %131 = vector.load %arg12[%c0_160, %c0_161, %c0_162] : memref<1x30x1xf32, #tpu.memory_space<vmem>>, vector<1x30x1xf32>
    %132 = vector.shape_cast %131 : vector<1x30x1xf32> to vector<30x1xf32>
    %133 = arith.addf %130, %132 : vector<30x1xf32>
    %134 = arith.negf %133 : vector<30x1xf32>
    %135 = math.exp %134 : vector<30x1xf32>
    %cst_163 = arith.constant 1.000000e+00 : f32
    %136 = vector.broadcast %cst_163 : f32 to vector<30x1xf32>
    %137 = arith.addf %136, %135 : vector<30x1xf32>
    %138 = arith.divf %136, %137 : vector<30x1xf32>
    %c0_164 = arith.constant 0 : index
    %c0_165 = arith.constant 0 : index
    %c0_166 = arith.constant 0 : index
    %139 = vector.load %arg13[%c0_164, %c0_165, %c0_166] : memref<1x30x30xf32, #tpu.memory_space<vmem>>, vector<1x30x30xf32>
    %140 = vector.shape_cast %139 : vector<1x30x30xf32> to vector<30x30xf32>
    %cst_167 = arith.constant dense<0.000000e+00> : vector<30x1xf32>
    %141 = tpu.matmul %140, %138, %cst_167 {dimension_numbers = #tpu.dot_dimension_numbers<[1], [0], [0], [1], [0, 0, 1, 1], [], []>} : vector<30x30xf32>, vector<30x1xf32>, vector<30x1xf32> -> vector<30x1xf32>
    %c0_168 = arith.constant 0 : index
    %c0_169 = arith.constant 0 : index
    %c0_170 = arith.constant 0 : index
    %142 = vector.load %arg14[%c0_168, %c0_169, %c0_170] : memref<1x30x1xf32, #tpu.memory_space<vmem>>, vector<1x30x1xf32>
    %143 = vector.shape_cast %142 : vector<1x30x1xf32> to vector<30x1xf32>
    %144 = arith.addf %141, %143 : vector<30x1xf32>
    %145 = arith.negf %144 : vector<30x1xf32>
    %146 = math.exp %145 : vector<30x1xf32>
    %cst_171 = arith.constant 1.000000e+00 : f32
    %147 = vector.broadcast %cst_171 : f32 to vector<30x1xf32>
    %148 = arith.addf %147, %146 : vector<30x1xf32>
    %149 = arith.divf %147, %148 : vector<30x1xf32>
    %c0_172 = arith.constant 0 : index
    %c0_173 = arith.constant 0 : index
    %c0_174 = arith.constant 0 : index
    %150 = vector.load %arg15[%c0_172, %c0_173, %c0_174] : memref<1x30x30xf32, #tpu.memory_space<vmem>>, vector<1x30x30xf32>
    %151 = vector.shape_cast %150 : vector<1x30x30xf32> to vector<30x30xf32>
    %cst_175 = arith.constant dense<0.000000e+00> : vector<30x1xf32>
    %152 = tpu.matmul %151, %149, %cst_175 {dimension_numbers = #tpu.dot_dimension_numbers<[1], [0], [0], [1], [0, 0, 1, 1], [], []>} : vector<30x30xf32>, vector<30x1xf32>, vector<30x1xf32> -> vector<30x1xf32>
    %c0_176 = arith.constant 0 : index
    %c0_177 = arith.constant 0 : index
    %c0_178 = arith.constant 0 : index
    %153 = vector.load %arg16[%c0_176, %c0_177, %c0_178] : memref<1x30x1xf32, #tpu.memory_space<vmem>>, vector<1x30x1xf32>
    %154 = vector.shape_cast %153 : vector<1x30x1xf32> to vector<30x1xf32>
    %155 = arith.addf %152, %154 : vector<30x1xf32>
    %156 = arith.negf %155 : vector<30x1xf32>
    %157 = math.exp %156 : vector<30x1xf32>
    %cst_179 = arith.constant 1.000000e+00 : f32
    %158 = vector.broadcast %cst_179 : f32 to vector<30x1xf32>
    %159 = arith.addf %158, %157 : vector<30x1xf32>
    %160 = arith.divf %158, %159 : vector<30x1xf32>
    %c0_180 = arith.constant 0 : index
    %c0_181 = arith.constant 0 : index
    %c0_182 = arith.constant 0 : index
    %161 = vector.load %arg17[%c0_180, %c0_181, %c0_182] : memref<1x1x30xf32, #tpu.memory_space<vmem>>, vector<1x1x30xf32>
    %162 = vector.shape_cast %161 : vector<1x1x30xf32> to vector<1x30xf32>
    %cst_183 = arith.constant dense<0.000000e+00> : vector<1x1xf32>
    %163 = tpu.matmul %162, %160, %cst_183 {dimension_numbers = #tpu.dot_dimension_numbers<[1], [0], [0], [1], [0, 0, 1, 1], [], []>} : vector<1x30xf32>, vector<30x1xf32>, vector<1x1xf32> -> vector<1x1xf32>
    %c0_184 = arith.constant 0 : index
    %c0_185 = arith.constant 0 : index
    %c0_186 = arith.constant 0 : index
    %164 = vector.load %arg18[%c0_184, %c0_185, %c0_186] : memref<1x1x1xf32, #tpu.memory_space<vmem>>, vector<1x1x1xf32>
    %165 = vector.shape_cast %164 : vector<1x1x1xf32> to vector<1x1xf32>
    %166 = arith.addf %163, %165 : vector<1x1xf32>
    %c0_187 = arith.constant 0 : index
    %c0_188 = arith.constant 0 : index
    %c0_189 = arith.constant 0 : index
    %c0_190 = arith.constant 0 : index
    %167 = vector.load %arg19[%c0_187, %c0_188, %c0_189, %c0_190] : memref<1x1x1x1xf32, #tpu.memory_space<vmem>>, vector<1x1x1x1xf32>
    %168 = vector.shape_cast %167 : vector<1x1x1x1xf32> to vector<1x1xf32>
    %169 = vector.shape_cast %166 : vector<1x1xf32> to vector<1x1x1x1xf32>
    tpu.vector_store %arg19[%c0_187, %c0_188, %c0_189, %c0_190], %169 {strides = array<i32>} : memref<1x1x1x1xf32, #tpu.memory_space<vmem>>, vector<1x1x1x1xf32>,
    return
  }
  func.func @transform_0(%arg0: i32, %arg1: i32) -> (i32, i32, i32, i32, i32, i32) {
    %c0_i32 = arith.constant 0 : i32
    %c0_i32_0 = arith.constant 0 : i32
    %c0_i32_1 = arith.constant 0 : i32
    %c0_i32_2 = arith.constant 0 : i32
    %c0_i32_3 = arith.constant 0 : i32
    return %arg0, %arg1, %c0_i32, %c0_i32_0, %c0_i32_1, %c0_i32_2 : i32, i32, i32, i32, i32, i32
  }
  func.func @transform_1(%arg0: i32, %arg1: i32) -> (i32, i32, i32, i32) {
    %c0_i32 = arith.constant 0 : i32
    %c0_i32_0 = arith.constant 0 : i32
    %c0_i32_1 = arith.constant 0 : i32
    %c0_i32_2 = arith.constant 0 : i32
    return %arg0, %c0_i32, %c0_i32_0, %c0_i32_1 : i32, i32, i32, i32
  }
  func.func @transform_2(%arg0: i32, %arg1: i32) -> (i32, i32, i32) {
    %c0_i32 = arith.constant 0 : i32
    %c0_i32_0 = arith.constant 0 : i32
    %c0_i32_1 = arith.constant 0 : i32
    return %arg0, %c0_i32, %c0_i32_0 : i32, i32, i32
  }
  func.func @transform_3(%arg0: i32, %arg1: i32) -> (i32, i32, i32) {
    %c0_i32 = arith.constant 0 : i32
    %c0_i32_0 = arith.constant 0 : i32
    %c0_i32_1 = arith.constant 0 : i32
    return %arg0, %c0_i32, %c0_i32_0 : i32, i32, i32
  }
  func.func @transform_4(%arg0: i32, %arg1: i32) -> (i32, i32, i32) {
    %c0_i32 = arith.constant 0 : i32
    %c0_i32_0 = arith.constant 0 : i32
    %c0_i32_1 = arith.constant 0 : i32
    return %arg0, %c0_i32, %c0_i32_0 : i32, i32, i32
  }
  func.func @transform_5(%arg0: i32, %arg1: i32) -> (i32, i32, i32) {
    %c0_i32 = arith.constant 0 : i32
    %c0_i32_0 = arith.constant 0 : i32
    %c0_i32_1 = arith.constant 0 : i32
    return %arg0, %c0_i32, %c0_i32_0 : i32, i32, i32
  }
  func.func @transform_6(%arg0: i32, %arg1: i32) -> (i32, i32, i32) {
    %c0_i32 = arith.constant 0 : i32
    %c0_i32_0 = arith.constant 0 : i32
    %c0_i32_1 = arith.constant 0 : i32
    return %arg0, %c0_i32, %c0_i32_0 : i32, i32, i32
  }
  func.func @transform_7(%arg0: i32, %arg1: i32) -> (i32, i32, i32) {
    %c0_i32 = arith.constant 0 : i32
    %c0_i32_0 = arith.constant 0 : i32
    %c0_i32_1 = arith.constant 0 : i32
    return %arg0, %c0_i32, %c0_i32_0 : i32, i32, i32
  }
  func.func @transform_8(%arg0: i32, %arg1: i32) -> (i32, i32, i32) {
    %c0_i32 = arith.constant 0 : i32
    %c0_i32_0 = arith.constant 0 : i32
    %c0_i32_1 = arith.constant 0 : i32
    return %arg0, %c0_i32, %c0_i32_0 : i32, i32, i32
  }
  func.func @transform_9(%arg0: i32, %arg1: i32) -> (i32, i32, i32) {
    %c0_i32 = arith.constant 0 : i32
    %c0_i32_0 = arith.constant 0 : i32
    %c0_i32_1 = arith.constant 0 : i32
    return %arg0, %c0_i32, %c0_i32_0 : i32, i32, i32
  }
  func.func @transform_10(%arg0: i32, %arg1: i32) -> (i32, i32, i32) {
    %c0_i32 = arith.constant 0 : i32
    %c0_i32_0 = arith.constant 0 : i32
    %c0_i32_1 = arith.constant 0 : i32
    return %arg0, %c0_i32, %c0_i32_0 : i32, i32, i32
  }
  func.func @transform_11(%arg0: i32, %arg1: i32) -> (i32, i32, i32) {
    %c0_i32 = arith.constant 0 : i32
    %c0_i32_0 = arith.constant 0 : i32
    %c0_i32_1 = arith.constant 0 : i32
    return %arg0, %c0_i32, %c0_i32_0 : i32, i32, i32
  }
  func.func @transform_12(%arg0: i32, %arg1: i32) -> (i32, i32, i32) {
    %c0_i32 = arith.constant 0 : i32
    %c0_i32_0 = arith.constant 0 : i32
    %c0_i32_1 = arith.constant 0 : i32
    return %arg0, %c0_i32, %c0_i32_0 : i32, i32, i32
  }
  func.func @transform_13(%arg0: i32, %arg1: i32) -> (i32, i32, i32) {
    %c0_i32 = arith.constant 0 : i32
    %c0_i32_0 = arith.constant 0 : i32
    %c0_i32_1 = arith.constant 0 : i32
    return %arg0, %c0_i32, %c0_i32_0 : i32, i32, i32
  }
  func.func @transform_14(%arg0: i32, %arg1: i32) -> (i32, i32, i32) {
    %c0_i32 = arith.constant 0 : i32
    %c0_i32_0 = arith.constant 0 : i32
    %c0_i32_1 = arith.constant 0 : i32
    return %arg0, %c0_i32, %c0_i32_0 : i32, i32, i32
  }
  func.func @transform_15(%arg0: i32, %arg1: i32) -> (i32, i32, i32) {
    %c0_i32 = arith.constant 0 : i32
    %c0_i32_0 = arith.constant 0 : i32
    %c0_i32_1 = arith.constant 0 : i32
    return %arg0, %c0_i32, %c0_i32_0 : i32, i32, i32
  }
  func.func @transform_16(%arg0: i32, %arg1: i32) -> (i32, i32, i32) {
    %c0_i32 = arith.constant 0 : i32
    %c0_i32_0 = arith.constant 0 : i32
    %c0_i32_1 = arith.constant 0 : i32
    return %arg0, %c0_i32, %c0_i32_0 : i32, i32, i32
  }
  func.func @transform_17(%arg0: i32, %arg1: i32) -> (i32, i32, i32, i32) {
    %c0_i32 = arith.constant 0 : i32
    %c0_i32_0 = arith.constant 0 : i32
    %c0_i32_1 = arith.constant 0 : i32
    return %arg0, %arg1, %c0_i32, %c0_i32_0 : i32, i32, i32, i32
  }
}

</mosaic_0001>

<llo_original>
// kernel: model_forward.2
$region0: #{model_forward.2}
  #allocation0 [shape = 'u32[]', space=smem, size = 0x4, offset = 0x4, fixed_abs, tag = 'smem constant byte address 0x4 - core index']
  #allocation1 [shape = 'u32[72,128]{1,0:T(1,128)}', space=vmem, size = 0x9000, scoped, tag = 'internal scratch']
  %s0 = inlined_call_operand.vmem [shape: f32[4,25,1280], index: 0, kind: input, shape index: {}]
  %s1 = inlined_call_operand.vmem [shape: f32[90,25], index: 1, kind: input, shape index: {}]
  %s2 = inlined_call_operand.vmem [shape: f32[90,1], index: 2, kind: input, shape index: {}]
  %s3 = inlined_call_operand.vmem [shape: f32[90,1], index: 3, kind: input, shape index: {}]
  %s4 = inlined_call_operand.vmem [shape: f32[90,1280], index: 4, kind: output, shape index: {}]
  %s5 = sld [smem:[#allocation0]]
  $region91: #{model_forward.2} parent=0
    _
  %s7 = ssub.s32 1, %s5
  %s8 = scalar_select 0, %s7, %s5
  $region1: #{model_forward.2} parent=0
    #allocation2 [shape = 'u8[262144]{0}', space=vmem, size = 0x40000, scoped, tag = 'input window, operand 0']
    #allocation3 [shape = 'u8[196608]{0}', space=vmem, size = 0x30000, scoped, tag = 'output window, operand 0']
    loop: start=0, step=1, limit=7
    $region2: #{model_forward.2} parent=1 // loop_pre_header
      _
    $region3: #{model_forward.2} parent=1 // loop_header
      %s10 = sphi 0, %s14
      %p11 = scmp.ge.s32.totalorder %s10, 7
      %s20 = sphi 0, %s22
      %s23 = sphi 0, %s20
      %s24 = sphi 0, %s23
      %s40 = sphi 0, %s24
      %s44 = sphi 0, %s44
      %s46 = sphi 0, %s44
      %s47 = sphi 0, %s46
      %s61 = sphi 0, %s47
      %s65 = sphi 0, %s65
      %s67 = sphi 0, %s65
      %s68 = sphi 0, %s67
      %s82 = sphi 0, %s68
      %s86 = sphi 0, %s86
      %s88 = sphi 0, %s86
      %s89 = sphi 0, %s88
      %s103 = sphi 0, %s89
      %s109 = sphi 0, %s111
      %s112 = sphi 0, %s109
      %s113 = sphi 0, %s112
      %s129 = sphi 0, %s113
    $region4: #{model_forward.2} parent=1 // loop_header_branch
      %13 = sbr.rel (%p11) target = $region8
    $region5: #{model_forward.2} parent=1 // loop_body
      %s15 = ssub.s32 %s10, 1
      %s16 = ssub.s32 %s10, 2
      %s17 = sadd.s32 %s10, 1
      %s18 = ssub.s32 %s10, %s17
      %p19 = scmp.eq.s32.totalorder %s18, 0
      %s21 = sadd.s32 %s20, 1
      %s22 = scalar_select %p19, %s20, %s21
      %p25 = pneg %p19
      %p26 = scmp.eq.s32.totalorder %s10, 4
      %p27 = por %p25, %p26
      %p28 = scmp.ne.s32.totalorder %s20, %s23
      %p29 = scmp.eq.s32.totalorder %s10, 0
      %p30 = por %p28, %p29
      %p31 = scmp.ne.s32.totalorder %s20, %s23
      %p32 = scmp.eq.s32.totalorder %s15, 4
      %p33 = por %p31, %p32
      %p34 = scmp.ne.s32.totalorder %s23, %s24
      %p35 = scmp.eq.s32.totalorder %s15, 0
      %p36 = por %p34, %p35
      %p37 = scmp.ne.s32.totalorder %s23, %s24
      %p38 = scmp.eq.s32.totalorder %s16, 4
      %p39 = por %p37, %p38
      %p41 = scmp.ne.s32.totalorder %s24, %s40
      %p42 = scmp.eq.s32.totalorder %s16, 0
      %p43 = por %p41, %p42
      %s45 = sadd.s32 %s44, 1
      %p48 = scmp.eq.s32.totalorder %s10, 4
      %p49 = scmp.ne.s32.totalorder %s44, %s46
      %p50 = scmp.eq.s32.totalorder %s10, 0
      %p51 = por %p49, %p50
      %p52 = scmp.ne.s32.totalorder %s44, %s46
      %p53 = scmp.eq.s32.totalorder %s15, 4
      %p54 = por %p52, %p53
      %p55 = scmp.ne.s32.totalorder %s46, %s47
      %p56 = scmp.eq.s32.totalorder %s15, 0
      %p57 = por %p55, %p56
      %p58 = scmp.ne.s32.totalorder %s46, %s47
      %p59 = scmp.eq.s32.totalorder %s16, 4
      %p60 = por %p58, %p59
      %p62 = scmp.ne.s32.totalorder %s47, %s61
      %p63 = scmp.eq.s32.totalorder %s16, 0
      %p64 = por %p62, %p63
      %s66 = sadd.s32 %s65, 1
      %p69 = scmp.eq.s32.totalorder %s10, 4
      %p70 = scmp.ne.s32.totalorder %s65, %s67
      %p71 = scmp.eq.s32.totalorder %s10, 0
      %p72 = por %p70, %p71
      %p73 = scmp.ne.s32.totalorder %s65, %s67
      %p74 = scmp.eq.s32.totalorder %s15, 4
      %p75 = por %p73, %p74
      %p76 = scmp.ne.s32.totalorder %s67, %s68
      %p77 = scmp.eq.s32.totalorder %s15, 0
      %p78 = por %p76, %p77
      %p79 = scmp.ne.s32.totalorder %s67, %s68
      %p80 = scmp.eq.s32.totalorder %s16, 4
      %p81 = por %p79, %p80
      %p83 = scmp.ne.s32.totalorder %s68, %s82
      %p84 = scmp.eq.s32.totalorder %s16, 0
      %p85 = por %p83, %p84
      %s87 = sadd.s32 %s86, 1
      %p90 = scmp.eq.s32.totalorder %s10, 4
      %p91 = scmp.ne.s32.totalorder %s86, %s88
      %p92 = scmp.eq.s32.totalorder %s10, 0
      %p93 = por %p91, %p92
      %p94 = scmp.ne.s32.totalorder %s86, %s88
      %p95 = scmp.eq.s32.totalorder %s15, 4
      %p96 = por %p94, %p95
      %p97 = scmp.ne.s32.totalorder %s88, %s89
      %p98 = scmp.eq.s32.totalorder %s15, 0
      %p99 = por %p97, %p98
      %p100 = scmp.ne.s32.totalorder %s88, %s89
      %p101 = scmp.eq.s32.totalorder %s16, 4
      %p102 = por %p100, %p101
      %p104 = scmp.ne.s32.totalorder %s89, %s103
      %p105 = scmp.eq.s32.totalorder %s16, 0
      %p106 = por %p104, %p105
      %s107 = ssub.s32 %s10, %s17
      %p108 = scmp.eq.s32.totalorder %s107, 0
      %s110 = sadd.s32 %s109, 1
      %s111 = scalar_select %p108, %s109, %s110
      %p114 = pneg %p108
      %p115 = scmp.eq.s32.totalorder %s10, 4
      %p116 = por %p114, %p115
      %p117 = scmp.ne.s32.totalorder %s109, %s112
      %p118 = scmp.eq.s32.totalorder %s10, 0
      %p119 = por %p117, %p118
      %p120 = scmp.ne.s32.totalorder %s109, %s112
      %p121 = scmp.eq.s32.totalorder %s15, 4
      %p122 = por %p120, %p121
      %p123 = scmp.ne.s32.totalorder %s112, %s113
      %p124 = scmp.eq.s32.totalorder %s15, 0
      %p125 = por %p123, %p124
      %p126 = scmp.ne.s32.totalorder %s112, %s113
      %p127 = scmp.eq.s32.totalorder %s16, 4
      %p128 = por %p126, %p127
      %p130 = scmp.ne.s32.totalorder %s113, %s129
      %p131 = scmp.eq.s32.totalorder %s16, 0
      %p132 = por %p130, %p131
      %p133 = scmp.le.s32.totalorder 1, %s10
      %p134 = scmp.lt.s32.totalorder %s10, 6
      %p135 = pnand %p133, %p134
      %p136 = pneg %p135
      // Predicated region
      $region9: #{model_forward.2} parent=5 // pred_check
        _
      $region10: #{model_forward.2} parent=5 // pred_check_branch
        %138 = sbr.rel (%p135) target = $region12
      $region11: #{model_forward.2} parent=5 // pred_region
        %s139 = ssub.s32 %s10, 1
        // Predicated region
        $region13: #{model_forward.2} parent=11 // pred_check
          %p140 = pneg %p57
        $region14: #{model_forward.2} parent=11 // pred_check_branch
          %142 = sbr.rel (%p140) target = $region16
        $region15: #{model_forward.2} parent=11 // pred_region
          _
        $region16: #{model_forward.2} parent=11 // pred_fallthru
          _
        // Predicated region
        $region17: #{model_forward.2} parent=11 // pred_check
          %p143 = pneg %p78
        $region18: #{model_forward.2} parent=11 // pred_check_branch
          %145 = sbr.rel (%p143) target = $region20
        $region19: #{model_forward.2} parent=11 // pred_region
          _
        $region20: #{model_forward.2} parent=11 // pred_fallthru
          _
        // Predicated region
        $region21: #{model_forward.2} parent=11 // pred_check
          %p146 = pneg %p99
        $region22: #{model_forward.2} parent=11 // pred_check_branch
          %148 = sbr.rel (%p146) target = $region24
        $region23: #{model_forward.2} parent=11 // pred_region
          _
        $region24: #{model_forward.2} parent=11 // pred_fallthru
          _
      $region12: #{model_forward.2} parent=5 // pred_fallthru
        _
      %p149 = scmp.lt.s32.totalorder %s10, 5
      // Predicated region
      $region25: #{model_forward.2} parent=5 // pred_check
        %p150 = pneg %p149
      $region26: #{model_forward.2} parent=5 // pred_check_branch
        %152 = sbr.rel (%p150) target = $region28
      $region27: #{model_forward.2} parent=5 // pred_region
        // Predicated region
        $region29: #{model_forward.2} parent=27 // pred_check
          %p153 = pneg %p30
        $region30: #{model_forward.2} parent=27 // pred_check_branch
          %155 = sbr.rel (%p153) target = $region32
        $region31: #{model_forward.2} parent=27 // pred_region
          %s156 = sand.u32 %s20, 1
          %s157 = sand.u32 %s20, 1
          %s158 = smul.addr %s157, 256
          %s159 = scalar_lea.vmem [#allocation2], %s158
          %s160 = smul.u32 2, %s10
          %s161 = smul.addr %s160, 8
          %s162 = scalar_lea.vmem %s0, %s161
          // Predicated region
          $region33: #{model_forward.2} parent=31 // pred_check
            _
          $region34: #{model_forward.2} parent=31 // pred_check_branch
            %164 = sbr.rel (0) target = $region36
          $region35: #{model_forward.2} parent=31 // pred_region
            // Predicated region
            $region37: #{model_forward.2} parent=35 // pred_check
              _
            $region38: #{model_forward.2} parent=35 // pred_check_branch
              %166 = sbr.rel (0) target = $region40
            $region39: #{model_forward.2} parent=35 // pred_region
              loop: start=0, step=1, limit=1
              $region41: #{model_forward.2} parent=39 // loop_pre_header
                _
              $region42: #{model_forward.2} parent=39 // loop_header
                %s168 = sphi 0, %s172
                %p169 = scmp.ge.s32.totalorder %s168, 1
                %s173 = sphi %s162, %s162
                %s174 = sphi %s159, %s159
              $region43: #{model_forward.2} parent=39 // loop_header_branch
                %171 = sbr.rel (%p169) target = $region47
              $region44: #{model_forward.2} parent=39 // loop_body
                %v175 = vld [vmem:[%s173] sm:$0xff]
                %176 = vst [vmem:[%s174] sm:$0xff] %v175
                %v177 = vld [vmem:[%s173 + $0x8] sm:$0xff]
                %178 = vst [vmem:[%s174 + $0x8] sm:$0xff] %v177
                %v179 = vld [vmem:[%s173 + $0x50] sm:$0xff]
                %180 = vst [vmem:[%s174 + $0x10] sm:$0xff] %v179
                %v181 = vld [vmem:[%s173 + $0x58] sm:$0xff]
                %182 = vst [vmem:[%s174 + $0x18] sm:$0xff] %v181
                %v183 = vld [vmem:[%s173 + $0xa0] sm:$0xff]
                %184 = vst [vmem:[%s174 + $0x20] sm:$0xff] %v183
                %v185 = vld [vmem:[%s173 + $0xa8] sm:$0xff]
                %186 = vst [vmem:[%s174 + $0x28] sm:$0xff] %v185
                %v187 = vld [vmem:[%s173 + $0xf0] sm:$0xff]
                %188 = vst [vmem:[%s174 + $0x30] sm:$0xff] %v187
                %v189 = vld [vmem:[%s173 + $0xf8] sm:$0xff]
                %190 = vst [vmem:[%s174 + $0x38] sm:$0xff] %v189
                %v191 = vld [vmem:[%s173 + $0x140] sm:$0xff]
                %192 = vst [vmem:[%s174 + $0x40] sm:$0xff] %v191
                %v193 = vld [vmem:[%s173 + $0x148] sm:$0xff]
                %194 = vst [vmem:[%s174 + $0x48] sm:$0xff] %v193
                %v195 = vld [vmem:[%s173 + $0x190] sm:$0xff]
                %196 = vst [vmem:[%s174 + $0x50] sm:$0xff] %v195
                %v197 = vld [vmem:[%s173 + $0x198] sm:$0xff]
                %198 = vst [vmem:[%s174 + $0x58] sm:$0xff] %v197
                %v199 = vld [vmem:[%s173 + $0x1e0] sm:$0xff]
                %200 = vst [vmem:[%s174 + $0x60] sm:$0xff] %v199
                %v201 = vld [vmem:[%s173 + $0x1e8] sm:$0xff]
                %202 = vst [vmem:[%s174 + $0x68] sm:$0xff] %v201
                %v203 = vld [vmem:[%s173 + $0x230] sm:$0xff]
                %204 = vst [vmem:[%s174 + $0x70] sm:$0xff] %v203
                %v205 = vld [vmem:[%s173 + $0x238] sm:$0xff]
                %206 = vst [vmem:[%s174 + $0x78] sm:$0xff] %v205
                %v207 = vld [vmem:[%s173 + $0x280] sm:$0xff]
                %208 = vst [vmem:[%s174 + $0x80] sm:$0xff] %v207
                %v209 = vld [vmem:[%s173 + $0x288] sm:$0xff]
                %210 = vst [vmem:[%s174 + $0x88] sm:$0xff] %v209
                %v211 = vld [vmem:[%s173 + $0x2d0] sm:$0xff]
                %212 = vst [vmem:[%s174 + $0x90] sm:$0xff] %v211
                %v213 = vld [vmem:[%s173 + $0x2d8] sm:$0xff]
                %214 = vst [vmem:[%s174 + $0x98] sm:$0xff] %v213
                %v215 = vld [vmem:[%s173 + $0x320] sm:$0xff]
                %216 = vst [vmem:[%s174 + $0xa0] sm:$0xff] %v215
                %v217 = vld [vmem:[%s173 + $0x328] sm:$0xff]
                %218 = vst [vmem:[%s174 + $0xa8] sm:$0xff] %v217
                %v219 = vld [vmem:[%s173 + $0x370] sm:$0xff]
                %220 = vst [vmem:[%s174 + $0xb0] sm:$0xff] %v219
                %v221 = vld [vmem:[%s173 + $0x378] sm:$0xff]
                %222 = vst [vmem:[%s174 + $0xb8] sm:$0xff] %v221
                %v223 = vld [vmem:[%s173 + $0x3c0] sm:$0xff]
                %224 = vst [vmem:[%s174 + $0xc0] sm:$0xff] %v223
                %v225 = vld [vmem:[%s173 + $0x3c8] sm:$0xff]
                %226 = vst [vmem:[%s174 + $0xc8] sm:$0xff] %v225
                %v227 = vld [vmem:[%s173 + $0x410] sm:$0xff]
                %228 = vst [vmem:[%s174 + $0xd0] sm:$0xff] %v227
                %v229 = vld [vmem:[%s173 + $0x418] sm:$0xff]
                %230 = vst [vmem:[%s174 + $0xd8] sm:$0xff] %v229
                %v231 = vld [vmem:[%s173 + $0x460] sm:$0xff]
                %232 = vst [vmem:[%s174 + $0xe0] sm:$0xff] %v231
                %v233 = vld [vmem:[%s173 + $0x468] sm:$0xff]
                %234 = vst [vmem:[%s174 + $0xe8] sm:$0xff] %v233
                %v235 = vld [vmem:[%s173 + $0x4b0] sm:$0xff]
                %236 = vst [vmem:[%s174 + $0xf0] sm:$0xff] %v235
                %v237 = vld [vmem:[%s173 + $0x4b8] sm:$0xff]
                %238 = vst [vmem:[%s174 + $0xf8] sm:$0xff] %v237
              $region45: #{model_forward.2} parent=39 // loop_footer
                %s172 = sadd.s32 1, %s168
              $region46: #{model_forward.2} parent=39 // loop_footer_branch
                %167 = sbr.rel target = $region42
              $region47: #{model_forward.2} parent=39 // loop_exit
                _
            $region40: #{model_forward.2} parent=35 // pred_fallthru
              _
            // Predicated region
            $region48: #{model_forward.2} parent=35 // pred_check
              _
            $region49: #{model_forward.2} parent=35 // pred_check_branch
              %240 = sbr.rel target = $region51
            $region50: #{model_forward.2} parent=35 // pred_region
              _
            $region51: #{model_forward.2} parent=35 // pred_fallthru
              _
          $region36: #{model_forward.2} parent=31 // pred_fallthru
            _
          %241 = vnop
        $region32: #{model_forward.2} parent=27 // pred_fallthru
          _
      $region28: #{model_forward.2} parent=5 // pred_fallthru
        _
      %p242 = scmp.le.s32.totalorder 1, %s10
      %p243 = scmp.lt.s32.totalorder %s10, 6
      %p244 = pnand %p242, %p243
      %p245 = pneg %p244
      // Predicated region
      $region52: #{model_forward.2} parent=5 // pred_check
        _
      $region53: #{model_forward.2} parent=5 // pred_check_branch
        %247 = sbr.rel (%p244) target = $region55
      $region54: #{model_forward.2} parent=5 // pred_region
        %s248 = ssub.s32 %s10, 1
        %s249 = sand.u32 %s23, 1
        %s250 = sand.u32 %s23, 1
        %s251 = smul.addr %s250, 256
        %s252 = scalar_lea.vmem [#allocation2], %s251
        // Predicated region
        $region56: #{model_forward.2} parent=54 // pred_check
          %p253 = pneg %p36
        $region57: #{model_forward.2} parent=54 // pred_check_branch
          %255 = sbr.rel (%p253) target = $region59
        $region58: #{model_forward.2} parent=54 // pred_region
          _
        $region59: #{model_forward.2} parent=54 // pred_fallthru
          _
        %s256 = sand.u32 %s23, 1
        %s257 = sand.u32 %s23, 1
        %s258 = smul.addr %s257, 256
        %s259 = scalar_lea.vmem [#allocation2], %s258
        %p260 = pneg %p36
        %p261 = pneg %p33
        %p262 = pneg %p57
        %p263 = pneg %p54
        %p264 = pneg %p78
        %p265 = pneg %p75
        %p266 = pneg %p99
        %p267 = pneg %p96
        %p268 = pneg %p125
        %p269 = pneg %p122
        %s270 = sand.u32 %s112, 1
        %s271 = sand.u32 %s112, 1
        %s272 = smul.addr %s271, 192
        %s273 = scalar_lea.vmem [#allocation3], %s272
        %s274 = smul.u32 2, %s15
        %s275 = smul.u32 2, %s15
        %v276 = vld [vmem:[%s1] sm:$0xff]
        %v277 = vld [vmem:[%s1 + $0x8] sm:$0xff]
        %v278 = vld [vmem:[%s1 + $0x10] sm:$0xff]
        %v279 = vld [vmem:[%s1 + $0x18] sm:$0xff]
        %v280 = vld [vmem:[%s1 + $0x20] sm:$0xff]
        %v281 = vld [vmem:[%s1 + $0x28] sm:$0xff]
        %v282 = vld [vmem:[%s1 + $0x30] sm:$0xff]
        %v283 = vld [vmem:[%s1 + $0x38] sm:$0xff]
        %v284 = vld [vmem:[%s1 + $0x40] sm:$0xff]
        %v285 = vld [vmem:[%s1 + $0x48] sm:$0xff]
        %v286 = vld [vmem:[%s1 + $0x50] sm:$0xff]
        %v287 = vld [vmem:[%s1 + $0x58] sm:$0x3]
        %v288 = vld [vmem:[%s252] sm:$0xff]
        %v289 = vld [vmem:[%s252 + $0x8] sm:$0xff]
        %v290 = vld [vmem:[%s252 + $0x10] sm:$0xff]
        %v291 = vld [vmem:[%s252 + $0x18] sm:$0xff]
        %v292 = vld [vmem:[%s252 + $0x20] sm:$0xff]
        %v293 = vld [vmem:[%s252 + $0x28] sm:$0xff]
        %v294 = vld [vmem:[%s252 + $0x30] sm:$0x1]
        %v295 = vld [vmem:[%s252 + $0x38] sm:$0x1]
        %vm296 = vcmask 203776
        %v298 = vsel %vm296, %v276, 0
        %v301 = vsel %vm296, %v277, 0
        %v304 = vsel %vm296, %v278, 0
        %v307 = vsel %vm296, %v279, 0
        %v310 = vsel %vm296, %v280, 0
        %v313 = vsel %vm296, %v281, 0
        %v316 = vsel %vm296, %v282, 0
        %v319 = vsel %vm296, %v283, 0
        %v322 = vsel %vm296, %v284, 0
        %v325 = vsel %vm296, %v285, 0
        %v328 = vsel %vm296, %v286, 0
        %v331 = vsel %vm296, %v287, 0
        %vm333 = vcmask 1040384
        %v335 = vsel %vm333, %v294, 0
        %v338 = vsel %vm333, %v295, 0
        %340 = vmatpush.msra.mxu0 0.0
        %341 = vmatpush.msra.mxu0 0.0
        %342 = vmatpush.msra.mxu0 0.0
        %343 = vmatpush.msra.mxu0 0.0
        %344 = vmatpush.msra.mxu0 0.0
        %345 = vmatpush.msra.mxu0 0.0
        %346 = vmatpush.msra.mxu0 0.0
        %347 = vmatpush.msra.mxu0 0.0
        %348 = vmatpush.msra.mxu0 0.0
        %349 = vmatpush.msra.mxu0 0.0
        %350 = vmatpush.msra.mxu0 0.0
        %351 = vmatpush.msra.mxu0 0.0
        %352 = vmatpush.msra.mxu0 %v335
        %353 = vmatpush.msra.mxu0 %v292
        %354 = vmatpush.msra.mxu0 %v290
        %355 = vmatpush.msra.mxu0 %v288
        %356 = vmatmul.f32.gmra.mxu0 %v298
        %v357 = vpop.f32.mrf.mxu0
        %v358 = vadd.f32 0.0, %v357
        %359 = vmatmul.f32.gmra.mxu0 %v301
        %v360 = vpop.f32.mrf.mxu0
        %v361 = vadd.f32 0.0, %v360
        %362 = vmatmul.f32.gmra.mxu0 %v304
        %v363 = vpop.f32.mrf.mxu0
        %v364 = vadd.f32 0.0, %v363
        %365 = vmatmul.f32.gmra.mxu0 %v307
        %v366 = vpop.f32.mrf.mxu0
        %v367 = vadd.f32 0.0, %v366
        %368 = vmatmul.f32.gmra.mxu0 %v310
        %v369 = vpop.f32.mrf.mxu0
        %v370 = vadd.f32 0.0, %v369
        %371 = vmatmul.f32.gmra.mxu0 %v313
        %v372 = vpop.f32.mrf.mxu0
        %v373 = vadd.f32 0.0, %v372
        %374 = vmatmul.f32.gmra.mxu0 %v316
        %v375 = vpop.f32.mrf.mxu0
        %v376 = vadd.f32 0.0, %v375
        %377 = vmatmul.f32.gmra.mxu0 %v319
        %v378 = vpop.f32.mrf.mxu0
        %v379 = vadd.f32 0.0, %v378
        %380 = vmatmul.f32.gmra.mxu0 %v322
        %v381 = vpop.f32.mrf.mxu0
        %v382 = vadd.f32 0.0, %v381
        %383 = vmatmul.f32.gmra.mxu0 %v325
        %v384 = vpop.f32.mrf.mxu0
        %v385 = vadd.f32 0.0, %v384
        %386 = vmatmul.f32.gmra.mxu0 %v328
        %v387 = vpop.f32.mrf.mxu0
        %v388 = vadd.f32 0.0, %v387
        %389 = vmatmul.f32.gmra.mxu0 %v331
        %v390 = vpop.f32.mrf.mxu0
        %v391 = vadd.f32 0.0, %v390
        %392 = vdwg.mxu0
        %393 = vmatpush.msra.mxu0 0.0
        %394 = vmatpush.msra.mxu0 0.0
        %395 = vmatpush.msra.mxu0 0.0
        %396 = vmatpush.msra.mxu0 0.0
        %397 = vmatpush.msra.mxu0 0.0
        %398 = vmatpush.msra.mxu0 0.0
        %399 = vmatpush.msra.mxu0 0.0
        %400 = vmatpush.msra.mxu0 0.0
        %401 = vmatpush.msra.mxu0 0.0
        %402 = vmatpush.msra.mxu0 0.0
        %403 = vmatpush.msra.mxu0 0.0
        %404 = vmatpush.msra.mxu0 0.0
        %405 = vmatpush.msra.mxu0 %v338
        %406 = vmatpush.msra.mxu0 %v293
        %407 = vmatpush.msra.mxu0 %v291
        %408 = vmatpush.msra.mxu0 %v289
        %409 = vmatmul.f32.gmra.mxu0 %v298
        %v410 = vpop.f32.mrf.mxu0
        %v411 = vadd.f32 0.0, %v410
        %412 = vmatmul.f32.gmra.mxu0 %v301
        %v413 = vpop.f32.mrf.mxu0
        %v414 = vadd.f32 0.0, %v413
        %415 = vmatmul.f32.gmra.mxu0 %v304
        %v416 = vpop.f32.mrf.mxu0
        %v417 = vadd.f32 0.0, %v416
        %418 = vmatmul.f32.gmra.mxu0 %v307
        %v419 = vpop.f32.mrf.mxu0
        %v420 = vadd.f32 0.0, %v419
        %421 = vmatmul.f32.gmra.mxu0 %v310
        %v422 = vpop.f32.mrf.mxu0
        %v423 = vadd.f32 0.0, %v422
        %424 = vmatmul.f32.gmra.mxu0 %v313
        %v425 = vpop.f32.mrf.mxu0
        %v426 = vadd.f32 0.0, %v425
        %427 = vmatmul.f32.gmra.mxu0 %v316
        %v428 = vpop.f32.mrf.mxu0
        %v429 = vadd.f32 0.0, %v428
        %430 = vmatmul.f32.gmra.mxu0 %v319
        %v431 = vpop.f32.mrf.mxu0
        %v432 = vadd.f32 0.0, %v431
        %433 = vmatmul.f32.gmra.mxu0 %v322
        %v434 = vpop.f32.mrf.mxu0
        %v435 = vadd.f32 0.0, %v434
        %436 = vmatmul.f32.gmra.mxu0 %v325
        %v437 = vpop.f32.mrf.mxu0
        %v438 = vadd.f32 0.0, %v437
        %439 = vmatmul.f32.gmra.mxu0 %v328
        %v440 = vpop.f32.mrf.mxu0
        %v441 = vadd.f32 0.0, %v440
        %442 = vmatmul.f32.gmra.mxu0 %v331
        %v443 = vpop.f32.mrf.mxu0
        %v444 = vadd.f32 0.0, %v443
        %445 = vdwg.mxu0
        %s446 = scalar_lea.vmem %s252, 64 [#allocation2]
        %v447 = vld [vmem:[%s446] sm:$0xff]
        %v448 = vld [vmem:[%s446 + $0x8] sm:$0xff]
        %v449 = vld [vmem:[%s446 + $0x10] sm:$0xff]
        %v450 = vld [vmem:[%s446 + $0x18] sm:$0xff]
        %v451 = vld [vmem:[%s446 + $0x20] sm:$0xff]
        %v452 = vld [vmem:[%s446 + $0x28] sm:$0xff]
        %v453 = vld [vmem:[%s446 + $0x30] sm:$0x1]
        %v454 = vld [vmem:[%s446 + $0x38] sm:$0x1]
        %v456 = vsel %vm333, %v453, 0
        %v459 = vsel %vm333, %v454, 0
        %461 = vmatpush.msra.mxu0 0.0
        %462 = vmatpush.msra.mxu0 0.0
        %463 = vmatpush.msra.mxu0 0.0
        %464 = vmatpush.msra.mxu0 0.0
        %465 = vmatpush.msra.mxu0 0.0
        %466 = vmatpush.msra.mxu0 0.0
        %467 = vmatpush.msra.mxu0 0.0
        %468 = vmatpush.msra.mxu0 0.0
        %469 = vmatpush.msra.mxu0 0.0
        %470 = vmatpush.msra.mxu0 0.0
        %471 = vmatpush.msra.mxu0 0.0
        %472 = vmatpush.msra.mxu0 0.0
        %473 = vmatpush.msra.mxu0 %v456
        %474 = vmatpush.msra.mxu0 %v451
        %475 = vmatpush.msra.mxu0 %v449
        %476 = vmatpush.msra.mxu0 %v447
        %477 = vmatmul.f32.gmra.mxu0 %v298
        %v478 = vpop.f32.mrf.mxu0
        %v479 = vadd.f32 0.0, %v478
        %480 = vmatmul.f32.gmra.mxu0 %v301
        %v481 = vpop.f32.mrf.mxu0
        %v482 = vadd.f32 0.0, %v481
        %483 = vmatmul.f32.gmra.mxu0 %v304
        %v484 = vpop.f32.mrf.mxu0
        %v485 = vadd.f32 0.0, %v484
        %486 = vmatmul.f32.gmra.mxu0 %v307
        %v487 = vpop.f32.mrf.mxu0
        %v488 = vadd.f32 0.0, %v487
        %489 = vmatmul.f32.gmra.mxu0 %v310
        %v490 = vpop.f32.mrf.mxu0
        %v491 = vadd.f32 0.0, %v490
        %492 = vmatmul.f32.gmra.mxu0 %v313
        %v493 = vpop.f32.mrf.mxu0
        %v494 = vadd.f32 0.0, %v493
        %495 = vmatmul.f32.gmra.mxu0 %v316
        %v496 = vpop.f32.mrf.mxu0
        %v497 = vadd.f32 0.0, %v496
        %498 = vmatmul.f32.gmra.mxu0 %v319
        %v499 = vpop.f32.mrf.mxu0
        %v500 = vadd.f32 0.0, %v499
        %501 = vmatmul.f32.gmra.mxu0 %v322
        %v502 = vpop.f32.mrf.mxu0
        %v503 = vadd.f32 0.0, %v502
        %504 = vmatmul.f32.gmra.mxu0 %v325
        %v505 = vpop.f32.mrf.mxu0
        %v506 = vadd.f32 0.0, %v505
        %507 = vmatmul.f32.gmra.mxu0 %v328
        %v508 = vpop.f32.mrf.mxu0
        %v509 = vadd.f32 0.0, %v508
        %510 = vmatmul.f32.gmra.mxu0 %v331
        %v511 = vpop.f32.mrf.mxu0
        %v512 = vadd.f32 0.0, %v511
        %513 = vdwg.mxu0
        %514 = vmatpush.msra.mxu0 0.0
        %515 = vmatpush.msra.mxu0 0.0
        %516 = vmatpush.msra.mxu0 0.0
        %517 = vmatpush.msra.mxu0 0.0
        %518 = vmatpush.msra.mxu0 0.0
        %519 = vmatpush.msra.mxu0 0.0
        %520 = vmatpush.msra.mxu0 0.0
        %521 = vmatpush.msra.mxu0 0.0
        %522 = vmatpush.msra.mxu0 0.0
        %523 = vmatpush.msra.mxu0 0.0
        %524 = vmatpush.msra.mxu0 0.0
        %525 = vmatpush.msra.mxu0 0.0
        %526 = vmatpush.msra.mxu0 %v459
        %527 = vmatpush.msra.mxu0 %v452
        %528 = vmatpush.msra.mxu0 %v450
        %529 = vmatpush.msra.mxu0 %v448
        %530 = vmatmul.f32.gmra.mxu0 %v298
        %v531 = vpop.f32.mrf.mxu0
        %v532 = vadd.f32 0.0, %v531
        %533 = vmatmul.f32.gmra.mxu0 %v301
        %v534 = vpop.f32.mrf.mxu0
        %v535 = vadd.f32 0.0, %v534
        %536 = vmatmul.f32.gmra.mxu0 %v304
        %v537 = vpop.f32.mrf.mxu0
        %v538 = vadd.f32 0.0, %v537
        %539 = vmatmul.f32.gmra.mxu0 %v307
        %v540 = vpop.f32.mrf.mxu0
        %v541 = vadd.f32 0.0, %v540
        %542 = vmatmul.f32.gmra.mxu0 %v310
        %v543 = vpop.f32.mrf.mxu0
        %v544 = vadd.f32 0.0, %v543
        %545 = vmatmul.f32.gmra.mxu0 %v313
        %v546 = vpop.f32.mrf.mxu0
        %v547 = vadd.f32 0.0, %v546
        %548 = vmatmul.f32.gmra.mxu0 %v316
        %v549 = vpop.f32.mrf.mxu0
        %v550 = vadd.f32 0.0, %v549
        %551 = vmatmul.f32.gmra.mxu0 %v319
        %v552 = vpop.f32.mrf.mxu0
        %v553 = vadd.f32 0.0, %v552
        %554 = vmatmul.f32.gmra.mxu0 %v322
        %v555 = vpop.f32.mrf.mxu0
        %v556 = vadd.f32 0.0, %v555
        %557 = vmatmul.f32.gmra.mxu0 %v325
        %v558 = vpop.f32.mrf.mxu0
        %v559 = vadd.f32 0.0, %v558
        %560 = vmatmul.f32.gmra.mxu0 %v328
        %v561 = vpop.f32.mrf.mxu0
        %v562 = vadd.f32 0.0, %v561
        %563 = vmatmul.f32.gmra.mxu0 %v331
        %v564 = vpop.f32.mrf.mxu0
        %v565 = vadd.f32 0.0, %v564
        %566 = vdwg.mxu0
        %v567 = vmax.f32 %v358, %v479
        %v568 = vmax.f32 %v411, %v532
        %v569 = vmax.f32 %v361, %v482
        %v570 = vmax.f32 %v414, %v535
        %v571 = vmax.f32 %v364, %v485
        %v572 = vmax.f32 %v417, %v538
        %v573 = vmax.f32 %v367, %v488
        %v574 = vmax.f32 %v420, %v541
        %v575 = vmax.f32 %v370, %v491
        %v576 = vmax.f32 %v423, %v544
        %v577 = vmax.f32 %v373, %v494
        %v578 = vmax.f32 %v426, %v547
        %v579 = vmax.f32 %v376, %v497
        %v580 = vmax.f32 %v429, %v550
        %v581 = vmax.f32 %v379, %v500
        %v582 = vmax.f32 %v432, %v553
        %v583 = vmax.f32 %v382, %v503
        %v584 = vmax.f32 %v435, %v556
        %v585 = vmax.f32 %v385, %v506
        %v586 = vmax.f32 %v438, %v559
        %v587 = vmax.f32 %v388, %v509
        %v588 = vmax.f32 %v441, %v562
        %v589 = vmax.f32 %v391, %v512
        %v590 = vmax.f32 %v444, %v565
        %s591 = scalar_lea.vmem %s252, 128 [#allocation2]
        %v592 = vld [vmem:[%s591] sm:$0xff]
        %v593 = vld [vmem:[%s591 + $0x8] sm:$0xff]
        %v594 = vld [vmem:[%s591 + $0x10] sm:$0xff]
        %v595 = vld [vmem:[%s591 + $0x18] sm:$0xff]
        %v596 = vld [vmem:[%s591 + $0x20] sm:$0xff]
        %v597 = vld [vmem:[%s591 + $0x28] sm:$0xff]
        %v598 = vld [vmem:[%s591 + $0x30] sm:$0x1]
        %v599 = vld [vmem:[%s591 + $0x38] sm:$0x1]
        %v601 = vsel %vm333, %v598, 0
        %v604 = vsel %vm333, %v599, 0
        %606 = vmatpush.msra.mxu0 0.0
        %607 = vmatpush.msra.mxu0 0.0
        %608 = vmatpush.msra.mxu0 0.0
        %609 = vmatpush.msra.mxu0 0.0
        %610 = vmatpush.msra.mxu0 0.0
        %611 = vmatpush.msra.mxu0 0.0
        %612 = vmatpush.msra.mxu0 0.0
        %613 = vmatpush.msra.mxu0 0.0
        %614 = vmatpush.msra.mxu0 0.0
        %615 = vmatpush.msra.mxu0 0.0
        %616 = vmatpush.msra.mxu0 0.0
        %617 = vmatpush.msra.mxu0 0.0
        %618 = vmatpush.msra.mxu0 %v601
        %619 = vmatpush.msra.mxu0 %v596
        %620 = vmatpush.msra.mxu0 %v594
        %621 = vmatpush.msra.mxu0 %v592
        %622 = vmatmul.f32.gmra.mxu0 %v298
        %v623 = vpop.f32.mrf.mxu0
        %v624 = vadd.f32 0.0, %v623
        %625 = vmatmul.f32.gmra.mxu0 %v301
        %v626 = vpop.f32.mrf.mxu0
        %v627 = vadd.f32 0.0, %v626
        %628 = vmatmul.f32.gmra.mxu0 %v304
        %v629 = vpop.f32.mrf.mxu0
        %v630 = vadd.f32 0.0, %v629
        %631 = vmatmul.f32.gmra.mxu0 %v307
        %v632 = vpop.f32.mrf.mxu0
        %v633 = vadd.f32 0.0, %v632
        %634 = vmatmul.f32.gmra.mxu0 %v310
        %v635 = vpop.f32.mrf.mxu0
        %v636 = vadd.f32 0.0, %v635
        %637 = vmatmul.f32.gmra.mxu0 %v313
        %v638 = vpop.f32.mrf.mxu0
        %v639 = vadd.f32 0.0, %v638
        %640 = vmatmul.f32.gmra.mxu0 %v316
        %v641 = vpop.f32.mrf.mxu0
        %v642 = vadd.f32 0.0, %v641
        %643 = vmatmul.f32.gmra.mxu0 %v319
        %v644 = vpop.f32.mrf.mxu0
        %v645 = vadd.f32 0.0, %v644
        %646 = vmatmul.f32.gmra.mxu0 %v322
        %v647 = vpop.f32.mrf.mxu0
        %v648 = vadd.f32 0.0, %v647
        %649 = vmatmul.f32.gmra.mxu0 %v325
        %v650 = vpop.f32.mrf.mxu0
        %v651 = vadd.f32 0.0, %v650
        %652 = vmatmul.f32.gmra.mxu0 %v328
        %v653 = vpop.f32.mrf.mxu0
        %v654 = vadd.f32 0.0, %v653
        %655 = vmatmul.f32.gmra.mxu0 %v331
        %v656 = vpop.f32.mrf.mxu0
        %v657 = vadd.f32 0.0, %v656
        %658 = vdwg.mxu0
        %659 = vmatpush.msra.mxu0 0.0
        %660 = vmatpush.msra.mxu0 0.0
        %661 = vmatpush.msra.mxu0 0.0
        %662 = vmatpush.msra.mxu0 0.0
        %663 = vmatpush.msra.mxu0 0.0
        %664 = vmatpush.msra.mxu0 0.0
        %665 = vmatpush.msra.mxu0 0.0
        %666 = vmatpush.msra.mxu0 0.0
        %667 = vmatpush.msra.mxu0 0.0
        %668 = vmatpush.msra.mxu0 0.0
        %669 = vmatpush.msra.mxu0 0.0
        %670 = vmatpush.msra.mxu0 0.0
        %671 = vmatpush.msra.mxu0 %v604
        %672 = vmatpush.msra.mxu0 %v597
        %673 = vmatpush.msra.mxu0 %v595
        %674 = vmatpush.msra.mxu0 %v593
        %675 = vmatmul.f32.gmra.mxu0 %v298
        %v676 = vpop.f32.mrf.mxu0
        %v677 = vadd.f32 0.0, %v676
        %678 = vmatmul.f32.gmra.mxu0 %v301
        %v679 = vpop.f32.mrf.mxu0
        %v680 = vadd.f32 0.0, %v679
        %681 = vmatmul.f32.gmra.mxu0 %v304
        %v682 = vpop.f32.mrf.mxu0
        %v683 = vadd.f32 0.0, %v682
        %684 = vmatmul.f32.gmra.mxu0 %v307
        %v685 = vpop.f32.mrf.mxu0
        %v686 = vadd.f32 0.0, %v685
        %687 = vmatmul.f32.gmra.mxu0 %v310
        %v688 = vpop.f32.mrf.mxu0
        %v689 = vadd.f32 0.0, %v688
        %690 = vmatmul.f32.gmra.mxu0 %v313
        %v691 = vpop.f32.mrf.mxu0
        %v692 = vadd.f32 0.0, %v691
        %693 = vmatmul.f32.gmra.mxu0 %v316
        %v694 = vpop.f32.mrf.mxu0
        %v695 = vadd.f32 0.0, %v694
        %696 = vmatmul.f32.gmra.mxu0 %v319
        %v697 = vpop.f32.mrf.mxu0
        %v698 = vadd.f32 0.0, %v697
        %699 = vmatmul.f32.gmra.mxu0 %v322
        %v700 = vpop.f32.mrf.mxu0
        %v701 = vadd.f32 0.0, %v700
        %702 = vmatmul.f32.gmra.mxu0 %v325
        %v703 = vpop.f32.mrf.mxu0
        %v704 = vadd.f32 0.0, %v703
        %705 = vmatmul.f32.gmra.mxu0 %v328
        %v706 = vpop.f32.mrf.mxu0
        %v707 = vadd.f32 0.0, %v706
        %708 = vmatmul.f32.gmra.mxu0 %v331
        %v709 = vpop.f32.mrf.mxu0
        %v710 = vadd.f32 0.0, %v709
        %711 = vdwg.mxu0
        %v712 = vmax.f32 %v567, %v624
        %v713 = vmax.f32 %v568, %v677
        %v714 = vmax.f32 %v569, %v627
        %v715 = vmax.f32 %v570, %v680
        %v716 = vmax.f32 %v571, %v630
        %v717 = vmax.f32 %v572, %v683
        %v718 = vmax.f32 %v573, %v633
        %v719 = vmax.f32 %v574, %v686
        %v720 = vmax.f32 %v575, %v636
        %v721 = vmax.f32 %v576, %v689
        %v722 = vmax.f32 %v577, %v639
        %v723 = vmax.f32 %v578, %v692
        %v724 = vmax.f32 %v579, %v642
        %v725 = vmax.f32 %v580, %v695
        %v726 = vmax.f32 %v581, %v645
        %v727 = vmax.f32 %v582, %v698
        %v728 = vmax.f32 %v583, %v648
        %v729 = vmax.f32 %v584, %v701
        %v730 = vmax.f32 %v585, %v651
        %v731 = vmax.f32 %v586, %v704
        %v732 = vmax.f32 %v587, %v654
        %v733 = vmax.f32 %v588, %v707
        %v734 = vmax.f32 %v589, %v657
        %v735 = vmax.f32 %v590, %v710
        %s736 = scalar_lea.vmem %s252, 192 [#allocation2]
        %v737 = vld [vmem:[%s736] sm:$0xff]
        %v738 = vld [vmem:[%s736 + $0x8] sm:$0xff]
        %v739 = vld [vmem:[%s736 + $0x10] sm:$0xff]
        %v740 = vld [vmem:[%s736 + $0x18] sm:$0xff]
        %v741 = vld [vmem:[%s736 + $0x20] sm:$0xff]
        %v742 = vld [vmem:[%s736 + $0x28] sm:$0xff]
        %v743 = vld [vmem:[%s736 + $0x30] sm:$0x1]
        %v744 = vld [vmem:[%s736 + $0x38] sm:$0x1]
        %v746 = vsel %vm333, %v743, 0
        %v749 = vsel %vm333, %v744, 0
        %751 = vmatpush.msra.mxu0 0.0
        %752 = vmatpush.msra.mxu0 0.0
        %753 = vmatpush.msra.mxu0 0.0
        %754 = vmatpush.msra.mxu0 0.0
        %755 = vmatpush.msra.mxu0 0.0
        %756 = vmatpush.msra.mxu0 0.0
        %757 = vmatpush.msra.mxu0 0.0
        %758 = vmatpush.msra.mxu0 0.0
        %759 = vmatpush.msra.mxu0 0.0
        %760 = vmatpush.msra.mxu0 0.0
        %761 = vmatpush.msra.mxu0 0.0
        %762 = vmatpush.msra.mxu0 0.0
        %763 = vmatpush.msra.mxu0 %v746
        %764 = vmatpush.msra.mxu0 %v741
        %765 = vmatpush.msra.mxu0 %v739
        %766 = vmatpush.msra.mxu0 %v737
        %767 = vmatmul.f32.gmra.mxu0 %v298
        %v768 = vpop.f32.mrf.mxu0
        %v769 = vadd.f32 0.0, %v768
        %770 = vmatmul.f32.gmra.mxu0 %v301
        %v771 = vpop.f32.mrf.mxu0
        %v772 = vadd.f32 0.0, %v771
        %773 = vmatmul.f32.gmra.mxu0 %v304
        %v774 = vpop.f32.mrf.mxu0
        %v775 = vadd.f32 0.0, %v774
        %776 = vmatmul.f32.gmra.mxu0 %v307
        %v777 = vpop.f32.mrf.mxu0
        %v778 = vadd.f32 0.0, %v777
        %779 = vmatmul.f32.gmra.mxu0 %v310
        %v780 = vpop.f32.mrf.mxu0
        %v781 = vadd.f32 0.0, %v780
        %782 = vmatmul.f32.gmra.mxu0 %v313
        %v783 = vpop.f32.mrf.mxu0
        %v784 = vadd.f32 0.0, %v783
        %785 = vmatmul.f32.gmra.mxu0 %v316
        %v786 = vpop.f32.mrf.mxu0
        %v787 = vadd.f32 0.0, %v786
        %788 = vmatmul.f32.gmra.mxu0 %v319
        %v789 = vpop.f32.mrf.mxu0
        %v790 = vadd.f32 0.0, %v789
        %791 = vmatmul.f32.gmra.mxu0 %v322
        %v792 = vpop.f32.mrf.mxu0
        %v793 = vadd.f32 0.0, %v792
        %794 = vmatmul.f32.gmra.mxu0 %v325
        %v795 = vpop.f32.mrf.mxu0
        %v796 = vadd.f32 0.0, %v795
        %797 = vmatmul.f32.gmra.mxu0 %v328
        %v798 = vpop.f32.mrf.mxu0
        %v799 = vadd.f32 0.0, %v798
        %800 = vmatmul.f32.gmra.mxu0 %v331
        %v801 = vpop.f32.mrf.mxu0
        %v802 = vadd.f32 0.0, %v801
        %803 = vdwg.mxu0
        %804 = vmatpush.msra.mxu0 0.0
        %805 = vmatpush.msra.mxu0 0.0
        %806 = vmatpush.msra.mxu0 0.0
        %807 = vmatpush.msra.mxu0 0.0
        %808 = vmatpush.msra.mxu0 0.0
        %809 = vmatpush.msra.mxu0 0.0
        %810 = vmatpush.msra.mxu0 0.0
        %811 = vmatpush.msra.mxu0 0.0
        %812 = vmatpush.msra.mxu0 0.0
        %813 = vmatpush.msra.mxu0 0.0
        %814 = vmatpush.msra.mxu0 0.0
        %815 = vmatpush.msra.mxu0 0.0
        %816 = vmatpush.msra.mxu0 %v749
        %817 = vmatpush.msra.mxu0 %v742
        %818 = vmatpush.msra.mxu0 %v740
        %819 = vmatpush.msra.mxu0 %v738
        %820 = vmatmul.f32.gmra.mxu0 %v298
        %v821 = vpop.f32.mrf.mxu0
        %v822 = vadd.f32 0.0, %v821
        %823 = vmatmul.f32.gmra.mxu0 %v301
        %v824 = vpop.f32.mrf.mxu0
        %v825 = vadd.f32 0.0, %v824
        %826 = vmatmul.f32.gmra.mxu0 %v304
        %v827 = vpop.f32.mrf.mxu0
        %v828 = vadd.f32 0.0, %v827
        %829 = vmatmul.f32.gmra.mxu0 %v307
        %v830 = vpop.f32.mrf.mxu0
        %v831 = vadd.f32 0.0, %v830
        %832 = vmatmul.f32.gmra.mxu0 %v310
        %v833 = vpop.f32.mrf.mxu0
        %v834 = vadd.f32 0.0, %v833
        %835 = vmatmul.f32.gmra.mxu0 %v313
        %v836 = vpop.f32.mrf.mxu0
        %v837 = vadd.f32 0.0, %v836
        %838 = vmatmul.f32.gmra.mxu0 %v316
        %v839 = vpop.f32.mrf.mxu0
        %v840 = vadd.f32 0.0, %v839
        %841 = vmatmul.f32.gmra.mxu0 %v319
        %v842 = vpop.f32.mrf.mxu0
        %v843 = vadd.f32 0.0, %v842
        %844 = vmatmul.f32.gmra.mxu0 %v322
        %v845 = vpop.f32.mrf.mxu0
        %v846 = vadd.f32 0.0, %v845
        %847 = vmatmul.f32.gmra.mxu0 %v325
        %v848 = vpop.f32.mrf.mxu0
        %v849 = vadd.f32 0.0, %v848
        %850 = vmatmul.f32.gmra.mxu0 %v328
        %v851 = vpop.f32.mrf.mxu0
        %v852 = vadd.f32 0.0, %v851
        %853 = vmatmul.f32.gmra.mxu0 %v331
        %v854 = vpop.f32.mrf.mxu0
        %v855 = vadd.f32 0.0, %v854
        %856 = vdwg.mxu0
        %v857 = vmax.f32 %v712, %v769
        %v858 = vmax.f32 %v713, %v822
        %v859 = vmax.f32 %v714, %v772
        %v860 = vmax.f32 %v715, %v825
        %v861 = vmax.f32 %v716, %v775
        %v862 = vmax.f32 %v717, %v828
        %v863 = vmax.f32 %v718, %v778
        %v864 = vmax.f32 %v719, %v831
        %v865 = vmax.f32 %v720, %v781
        %v866 = vmax.f32 %v721, %v834
        %v867 = vmax.f32 %v722, %v784
        %v868 = vmax.f32 %v723, %v837
        %v869 = vmax.f32 %v724, %v787
        %v870 = vmax.f32 %v725, %v840
        %v871 = vmax.f32 %v726, %v790
        %v872 = vmax.f32 %v727, %v843
        %v873 = vmax.f32 %v728, %v793
        %v874 = vmax.f32 %v729, %v846
        %v875 = vmax.f32 %v730, %v796
        %v876 = vmax.f32 %v731, %v849
        %v877 = vmax.f32 %v732, %v799
        %v878 = vmax.f32 %v733, %v852
        %v879 = vmax.f32 %v734, %v802
        %v880 = vmax.f32 %v735, %v855
        %v881 = vld [vmem:[%s2] sm:$0xff]
        %v882 = vld [vmem:[%s2 + $0x8] sm:$0xff]
        %v883 = vld [vmem:[%s2 + $0x10] sm:$0xff]
        %v884 = vld [vmem:[%s2 + $0x18] sm:$0xff]
        %v885 = vld [vmem:[%s2 + $0x20] sm:$0xff]
        %v886 = vld [vmem:[%s2 + $0x28] sm:$0xff]
        %v887 = vld [vmem:[%s2 + $0x30] sm:$0xff]
        %v888 = vld [vmem:[%s2 + $0x38] sm:$0xff]
        %v889 = vld [vmem:[%s2 + $0x40] sm:$0xff]
        %v890 = vld [vmem:[%s2 + $0x48] sm:$0xff]
        %v891 = vld [vmem:[%s2 + $0x50] sm:$0xff]
        %v892 = vld [vmem:[%s2 + $0x58] sm:$0x3]
        %894 = vset.pattern.permute.xlu0 0
        %895 = vperm.xlu0 %894, %v881
        %v896 = vpop.permute.xlu0 %895
        %899 = vset.pattern.permute.xlu0 0
        %900 = vperm.xlu0 %899, %v882
        %v901 = vpop.permute.xlu0 %900
        %904 = vset.pattern.permute.xlu0 0
        %905 = vperm.xlu0 %904, %v883
        %v906 = vpop.permute.xlu0 %905
        %909 = vset.pattern.permute.xlu0 0
        %910 = vperm.xlu0 %909, %v884
        %v911 = vpop.permute.xlu0 %910
        %914 = vset.pattern.permute.xlu0 0
        %915 = vperm.xlu0 %914, %v885
        %v916 = vpop.permute.xlu0 %915
        %919 = vset.pattern.permute.xlu0 0
        %920 = vperm.xlu0 %919, %v886
        %v921 = vpop.permute.xlu0 %920
        %924 = vset.pattern.permute.xlu0 0
        %925 = vperm.xlu0 %924, %v887
        %v926 = vpop.permute.xlu0 %925
        %929 = vset.pattern.permute.xlu0 0
        %930 = vperm.xlu0 %929, %v888
        %v931 = vpop.permute.xlu0 %930
        %934 = vset.pattern.permute.xlu0 0
        %935 = vperm.xlu0 %934, %v889
        %v936 = vpop.permute.xlu0 %935
        %939 = vset.pattern.permute.xlu0 0
        %940 = vperm.xlu0 %939, %v890
        %v941 = vpop.permute.xlu0 %940
        %944 = vset.pattern.permute.xlu0 0
        %945 = vperm.xlu0 %944, %v891
        %v946 = vpop.permute.xlu0 %945
        %949 = vset.pattern.permute.xlu0 0
        %950 = vperm.xlu0 %949, %v892
        %v951 = vpop.permute.xlu0 %950
        %v953 = vmul.f32 %v857, %v896
        %v954 = vmul.f32 %v858, %v896
        %v955 = vmul.f32 %v859, %v901
        %v956 = vmul.f32 %v860, %v901
        %v957 = vmul.f32 %v861, %v906
        %v958 = vmul.f32 %v862, %v906
        %v959 = vmul.f32 %v863, %v911
        %v960 = vmul.f32 %v864, %v911
        %v961 = vmul.f32 %v865, %v916
        %v962 = vmul.f32 %v866, %v916
        %v963 = vmul.f32 %v867, %v921
        %v964 = vmul.f32 %v868, %v921
        %v965 = vmul.f32 %v869, %v926
        %v966 = vmul.f32 %v870, %v926
        %v967 = vmul.f32 %v871, %v931
        %v968 = vmul.f32 %v872, %v931
        %v969 = vmul.f32 %v873, %v936
        %v970 = vmul.f32 %v874, %v936
        %v971 = vmul.f32 %v875, %v941
        %v972 = vmul.f32 %v876, %v941
        %v973 = vmul.f32 %v877, %v946
        %v974 = vmul.f32 %v878, %v946
        %v975 = vmul.f32 %v879, %v951
        %v976 = vmul.f32 %v880, %v951
        %v977 = vld [vmem:[%s3] sm:$0xff]
        %v978 = vld [vmem:[%s3 + $0x8] sm:$0xff]
        %v979 = vld [vmem:[%s3 + $0x10] sm:$0xff]
        %v980 = vld [vmem:[%s3 + $0x18] sm:$0xff]
        %v981 = vld [vmem:[%s3 + $0x20] sm:$0xff]
        %v982 = vld [vmem:[%s3 + $0x28] sm:$0xff]
        %v983 = vld [vmem:[%s3 + $0x30] sm:$0xff]
        %v984 = vld [vmem:[%s3 + $0x38] sm:$0xff]
        %v985 = vld [vmem:[%s3 + $0x40] sm:$0xff]
        %v986 = vld [vmem:[%s3 + $0x48] sm:$0xff]
        %v987 = vld [vmem:[%s3 + $0x50] sm:$0xff]
        %v988 = vld [vmem:[%s3 + $0x58] sm:$0x3]
        %990 = vset.pattern.permute.xlu0 0
        %991 = vperm.xlu0 %990, %v977
        %v992 = vpop.permute.xlu0 %991
        %995 = vset.pattern.permute.xlu0 0
        %996 = vperm.xlu0 %995, %v978
        %v997 = vpop.permute.xlu0 %996
        %1000 = vset.pattern.permute.xlu0 0
        %1001 = vperm.xlu0 %1000, %v979
        %v1002 = vpop.permute.xlu0 %1001
        %1005 = vset.pattern.permute.xlu0 0
        %1006 = vperm.xlu0 %1005, %v980
        %v1007 = vpop.permute.xlu0 %1006
        %1010 = vset.pattern.permute.xlu0 0
        %1011 = vperm.xlu0 %1010, %v981
        %v1012 = vpop.permute.xlu0 %1011
        %1015 = vset.pattern.permute.xlu0 0
        %1016 = vperm.xlu0 %1015, %v982
        %v1017 = vpop.permute.xlu0 %1016
        %1020 = vset.pattern.permute.xlu0 0
        %1021 = vperm.xlu0 %1020, %v983
        %v1022 = vpop.permute.xlu0 %1021
        %1025 = vset.pattern.permute.xlu0 0
        %1026 = vperm.xlu0 %1025, %v984
        %v1027 = vpop.permute.xlu0 %1026
        %1030 = vset.pattern.permute.xlu0 0
        %1031 = vperm.xlu0 %1030, %v985
        %v1032 = vpop.permute.xlu0 %1031
        %1035 = vset.pattern.permute.xlu0 0
        %1036 = vperm.xlu0 %1035, %v986
        %v1037 = vpop.permute.xlu0 %1036
        %1040 = vset.pattern.permute.xlu0 0
        %1041 = vperm.xlu0 %1040, %v987
        %v1042 = vpop.permute.xlu0 %1041
        %1045 = vset.pattern.permute.xlu0 0
        %1046 = vperm.xlu0 %1045, %v988
        %v1047 = vpop.permute.xlu0 %1046
        %v1049 = vadd.f32 %v953, %v992
        %v1050 = vadd.f32 %v954, %v992
        %v1051 = vadd.f32 %v955, %v997
        %v1052 = vadd.f32 %v956, %v997
        %v1053 = vadd.f32 %v957, %v1002
        %v1054 = vadd.f32 %v958, %v1002
        %v1055 = vadd.f32 %v959, %v1007
        %v1056 = vadd.f32 %v960, %v1007
        %v1057 = vadd.f32 %v961, %v1012
        %v1058 = vadd.f32 %v962, %v1012
        %v1059 = vadd.f32 %v963, %v1017
        %v1060 = vadd.f32 %v964, %v1017
        %v1061 = vadd.f32 %v965, %v1022
        %v1062 = vadd.f32 %v966, %v1022
        %v1063 = vadd.f32 %v967, %v1027
        %v1064 = vadd.f32 %v968, %v1027
        %v1065 = vadd.f32 %v969, %v1032
        %v1066 = vadd.f32 %v970, %v1032
        %v1067 = vadd.f32 %v971, %v1037
        %v1068 = vadd.f32 %v972, %v1037
        %v1069 = vadd.f32 %v973, %v1042
        %v1070 = vadd.f32 %v974, %v1042
        %v1071 = vadd.f32 %v975, %v1047
        %v1072 = vadd.f32 %v976, %v1047
        %v1073 = vxor.u32 %v1049, 2147483648
        %v1074 = vxor.u32 %v1050, 2147483648
        %v1075 = vxor.u32 %v1051, 2147483648
        %v1076 = vxor.u32 %v1052, 2147483648
        %v1077 = vxor.u32 %v1053, 2147483648
        %v1078 = vxor.u32 %v1054, 2147483648
        %v1079 = vxor.u32 %v1055, 2147483648
        %v1080 = vxor.u32 %v1056, 2147483648
        %v1081 = vxor.u32 %v1057, 2147483648
        %v1082 = vxor.u32 %v1058, 2147483648
        %v1083 = vxor.u32 %v1059, 2147483648
        %v1084 = vxor.u32 %v1060, 2147483648
        %v1085 = vxor.u32 %v1061, 2147483648
        %v1086 = vxor.u32 %v1062, 2147483648
        %v1087 = vxor.u32 %v1063, 2147483648
        %v1088 = vxor.u32 %v1064, 2147483648
        %v1089 = vxor.u32 %v1065, 2147483648
        %v1090 = vxor.u32 %v1066, 2147483648
        %v1091 = vxor.u32 %v1067, 2147483648
        %v1092 = vxor.u32 %v1068, 2147483648
        %v1093 = vxor.u32 %v1069, 2147483648
        %v1094 = vxor.u32 %v1070, 2147483648
        %v1095 = vxor.u32 %v1071, 2147483648
        %v1096 = vxor.u32 %v1072, 2147483648
        %v1097 = vmul.f32 %v1073, 1.442695
        %v1098 = vpow.pop %v1097
        %v1099 = vmul.f32 %v1074, 1.442695
        %v1100 = vpow.pop %v1099
        %v1101 = vmul.f32 %v1075, 1.442695
        %v1102 = vpow.pop %v1101
        %v1103 = vmul.f32 %v1076, 1.442695
        %v1104 = vpow.pop %v1103
        %v1105 = vmul.f32 %v1077, 1.442695
        %v1106 = vpow.pop %v1105
        %v1107 = vmul.f32 %v1078, 1.442695
        %v1108 = vpow.pop %v1107
        %v1109 = vmul.f32 %v1079, 1.442695
        %v1110 = vpow.pop %v1109
        %v1111 = vmul.f32 %v1080, 1.442695
        %v1112 = vpow.pop %v1111
        %v1113 = vmul.f32 %v1081, 1.442695
        %v1114 = vpow.pop %v1113
        %v1115 = vmul.f32 %v1082, 1.442695
        %v1116 = vpow.pop %v1115
        %v1117 = vmul.f32 %v1083, 1.442695
        %v1118 = vpow.pop %v1117
        %v1119 = vmul.f32 %v1084, 1.442695
        %v1120 = vpow.pop %v1119
        %v1121 = vmul.f32 %v1085, 1.442695
        %v1122 = vpow.pop %v1121
        %v1123 = vmul.f32 %v1086, 1.442695
        %v1124 = vpow.pop %v1123
        %v1125 = vmul.f32 %v1087, 1.442695
        %v1126 = vpow.pop %v1125
        %v1127 = vmul.f32 %v1088, 1.442695
        %v1128 = vpow.pop %v1127
        %v1129 = vmul.f32 %v1089, 1.442695
        %v1130 = vpow.pop %v1129
        %v1131 = vmul.f32 %v1090, 1.442695
        %v1132 = vpow.pop %v1131
        %v1133 = vmul.f32 %v1091, 1.442695
        %v1134 = vpow.pop %v1133
        %v1135 = vmul.f32 %v1092, 1.442695
        %v1136 = vpow.pop %v1135
        %v1137 = vmul.f32 %v1093, 1.442695
        %v1138 = vpow.pop %v1137
        %v1139 = vmul.f32 %v1094, 1.442695
        %v1140 = vpow.pop %v1139
        %v1141 = vmul.f32 %v1095, 1.442695
        %v1142 = vpow.pop %v1141
        %v1143 = vmul.f32 %v1096, 1.442695
        %v1144 = vpow.pop %v1143
        %v1145 = vadd.f32 %v1098, 1.0
        %v1146 = vadd.f32 %v1100, 1.0
        %v1147 = vadd.f32 %v1102, 1.0
        %v1148 = vadd.f32 %v1104, 1.0
        %v1149 = vadd.f32 %v1106, 1.0
        %v1150 = vadd.f32 %v1108, 1.0
        %v1151 = vadd.f32 %v1110, 1.0
        %v1152 = vadd.f32 %v1112, 1.0
        %v1153 = vadd.f32 %v1114, 1.0
        %v1154 = vadd.f32 %v1116, 1.0
        %v1155 = vadd.f32 %v1118, 1.0
        %v1156 = vadd.f32 %v1120, 1.0
        %v1157 = vadd.f32 %v1122, 1.0
        %v1158 = vadd.f32 %v1124, 1.0
        %v1159 = vadd.f32 %v1126, 1.0
        %v1160 = vadd.f32 %v1128, 1.0
        %v1161 = vadd.f32 %v1130, 1.0
        %v1162 = vadd.f32 %v1132, 1.0
        %v1163 = vadd.f32 %v1134, 1.0
        %v1164 = vadd.f32 %v1136, 1.0
        %v1165 = vadd.f32 %v1138, 1.0
        %v1166 = vadd.f32 %v1140, 1.0
        %v1167 = vadd.f32 %v1142, 1.0
        %v1168 = vadd.f32 %v1144, 1.0
        %v1169 = vrcp.pop %v1145
        %v1170 = vmul.f32 %v1145, %v1169
        %v1171 = vsub.f32 1.0, %v1170
        %v1172 = vmul.f32 %v1169, %v1171
        %v1173 = vadd.f32 %v1169, %v1172
        %vm1174 = vweird.f32 %v1145
        %vm1175 = vweird.f32 %v1169
        %vm1176 = vmor %vm1174, %vm1175
        %v1177 = vsel %vm1176, %v1169, %v1173
        %v1178 = vand.u32 2147483647, %v1145
        %vm1179 = vcmp.eq.f32.partialorder %v1178, 8.507059e+37
        %v1180 = vand.u32 %v1145, 2147483648
        %v1181 = vor.u32 1.1754944e-38, %v1180
        %v1182 = vsel %vm1179, %v1181, %v1177
        %v1183 = vmul.f32 1.0, %v1182
        %v1184 = vrcp.pop %v1146
        %v1185 = vmul.f32 %v1146, %v1184
        %v1186 = vsub.f32 1.0, %v1185
        %v1187 = vmul.f32 %v1184, %v1186
        %v1188 = vadd.f32 %v1184, %v1187
        %vm1189 = vweird.f32 %v1146
        %vm1190 = vweird.f32 %v1184
        %vm1191 = vmor %vm1189, %vm1190
        %v1192 = vsel %vm1191, %v1184, %v1188
        %v1193 = vand.u32 2147483647, %v1146
        %vm1194 = vcmp.eq.f32.partialorder %v1193, 8.507059e+37
        %v1195 = vand.u32 %v1146, 2147483648
        %v1196 = vor.u32 1.1754944e-38, %v1195
        %v1197 = vsel %vm1194, %v1196, %v1192
        %v1198 = vmul.f32 1.0, %v1197
        %v1199 = vrcp.pop %v1147
        %v1200 = vmul.f32 %v1147, %v1199
        %v1201 = vsub.f32 1.0, %v1200
        %v1202 = vmul.f32 %v1199, %v1201
        %v1203 = vadd.f32 %v1199, %v1202
        %vm1204 = vweird.f32 %v1147
        %vm1205 = vweird.f32 %v1199
        %vm1206 = vmor %vm1204, %vm1205
        %v1207 = vsel %vm1206, %v1199, %v1203
        %v1208 = vand.u32 2147483647, %v1147
        %vm1209 = vcmp.eq.f32.partialorder %v1208, 8.507059e+37
        %v1210 = vand.u32 %v1147, 2147483648
        %v1211 = vor.u32 1.1754944e-38, %v1210
        %v1212 = vsel %vm1209, %v1211, %v1207
        %v1213 = vmul.f32 1.0, %v1212
        %v1214 = vrcp.pop %v1148
        %v1215 = vmul.f32 %v1148, %v1214
        %v1216 = vsub.f32 1.0, %v1215
        %v1217 = vmul.f32 %v1214, %v1216
        %v1218 = vadd.f32 %v1214, %v1217
        %vm1219 = vweird.f32 %v1148
        %vm1220 = vweird.f32 %v1214
        %vm1221 = vmor %vm1219, %vm1220
        %v1222 = vsel %vm1221, %v1214, %v1218
        %v1223 = vand.u32 2147483647, %v1148
        %vm1224 = vcmp.eq.f32.partialorder %v1223, 8.507059e+37
        %v1225 = vand.u32 %v1148, 2147483648
        %v1226 = vor.u32 1.1754944e-38, %v1225
        %v1227 = vsel %vm1224, %v1226, %v1222
        %v1228 = vmul.f32 1.0, %v1227
        %v1229 = vrcp.pop %v1149
        %v1230 = vmul.f32 %v1149, %v1229
        %v1231 = vsub.f32 1.0, %v1230
        %v1232 = vmul.f32 %v1229, %v1231
        %v1233 = vadd.f32 %v1229, %v1232
        %vm1234 = vweird.f32 %v1149
        %vm1235 = vweird.f32 %v1229
        %vm1236 = vmor %vm1234, %vm1235
        %v1237 = vsel %vm1236, %v1229, %v1233
        %v1238 = vand.u32 2147483647, %v1149
        %vm1239 = vcmp.eq.f32.partialorder %v1238, 8.507059e+37
        %v1240 = vand.u32 %v1149, 2147483648
        %v1241 = vor.u32 1.1754944e-38, %v1240
        %v1242 = vsel %vm1239, %v1241, %v1237
        %v1243 = vmul.f32 1.0, %v1242
        %v1244 = vrcp.pop %v1150
        %v1245 = vmul.f32 %v1150, %v1244
        %v1246 = vsub.f32 1.0, %v1245
        %v1247 = vmul.f32 %v1244, %v1246
        %v1248 = vadd.f32 %v1244, %v1247
        %vm1249 = vweird.f32 %v1150
        %vm1250 = vweird.f32 %v1244
        %vm1251 = vmor %vm1249, %vm1250
        %v1252 = vsel %vm1251, %v1244, %v1248
        %v1253 = vand.u32 2147483647, %v1150
        %vm1254 = vcmp.eq.f32.partialorder %v1253, 8.507059e+37
        %v1255 = vand.u32 %v1150, 2147483648
        %v1256 = vor.u32 1.1754944e-38, %v1255
        %v1257 = vsel %vm1254, %v1256, %v1252
        %v1258 = vmul.f32 1.0, %v1257
        %v1259 = vrcp.pop %v1151
        %v1260 = vmul.f32 %v1151, %v1259
        %v1261 = vsub.f32 1.0, %v1260
        %v1262 = vmul.f32 %v1259, %v1261
        %v1263 = vadd.f32 %v1259, %v1262
        %vm1264 = vweird.f32 %v1151
        %vm1265 = vweird.f32 %v1259
        %vm1266 = vmor %vm1264, %vm1265
        %v1267 = vsel %vm1266, %v1259, %v1263
        %v1268 = vand.u32 2147483647, %v1151
        %vm1269 = vcmp.eq.f32.partialorder %v1268, 8.507059e+37
        %v1270 = vand.u32 %v1151, 2147483648
        %v1271 = vor.u32 1.1754944e-38, %v1270
        %v1272 = vsel %vm1269, %v1271, %v1267
        %v1273 = vmul.f32 1.0, %v1272
        %v1274 = vrcp.pop %v1152
        %v1275 = vmul.f32 %v1152, %v1274
        %v1276 = vsub.f32 1.0, %v1275
        %v1277 = vmul.f32 %v1274, %v1276
        %v1278 = vadd.f32 %v1274, %v1277
        %vm1279 = vweird.f32 %v1152
        %vm1280 = vweird.f32 %v1274
        %vm1281 = vmor %vm1279, %vm1280
        %v1282 = vsel %vm1281, %v1274, %v1278
        %v1283 = vand.u32 2147483647, %v1152
        %vm1284 = vcmp.eq.f32.partialorder %v1283, 8.507059e+37
        %v1285 = vand.u32 %v1152, 2147483648
        %v1286 = vor.u32 1.1754944e-38, %v1285
        %v1287 = vsel %vm1284, %v1286, %v1282
        %v1288 = vmul.f32 1.0, %v1287
        %v1289 = vrcp.pop %v1153
        %v1290 = vmul.f32 %v1153, %v1289
        %v1291 = vsub.f32 1.0, %v1290
        %v1292 = vmul.f32 %v1289, %v1291
        %v1293 = vadd.f32 %v1289, %v1292
        %vm1294 = vweird.f32 %v1153
        %vm1295 = vweird.f32 %v1289
        %vm1296 = vmor %vm1294, %vm1295
        %v1297 = vsel %vm1296, %v1289, %v1293
        %v1298 = vand.u32 2147483647, %v1153
        %vm1299 = vcmp.eq.f32.partialorder %v1298, 8.507059e+37
        %v1300 = vand.u32 %v1153, 2147483648
        %v1301 = vor.u32 1.1754944e-38, %v1300
        %v1302 = vsel %vm1299, %v1301, %v1297
        %v1303 = vmul.f32 1.0, %v1302
        %v1304 = vrcp.pop %v1154
        %v1305 = vmul.f32 %v1154, %v1304
        %v1306 = vsub.f32 1.0, %v1305
        %v1307 = vmul.f32 %v1304, %v1306
        %v1308 = vadd.f32 %v1304, %v1307
        %vm1309 = vweird.f32 %v1154
        %vm1310 = vweird.f32 %v1304
        %vm1311 = vmor %vm1309, %vm1310
        %v1312 = vsel %vm1311, %v1304, %v1308
        %v1313 = vand.u32 2147483647, %v1154
        %vm1314 = vcmp.eq.f32.partialorder %v1313, 8.507059e+37
        %v1315 = vand.u32 %v1154, 2147483648
        %v1316 = vor.u32 1.1754944e-38, %v1315
        %v1317 = vsel %vm1314, %v1316, %v1312
        %v1318 = vmul.f32 1.0, %v1317
        %v1319 = vrcp.pop %v1155
        %v1320 = vmul.f32 %v1155, %v1319
        %v1321 = vsub.f32 1.0, %v1320
        %v1322 = vmul.f32 %v1319, %v1321
        %v1323 = vadd.f32 %v1319, %v1322
        %vm1324 = vweird.f32 %v1155
        %vm1325 = vweird.f32 %v1319
        %vm1326 = vmor %vm1324, %vm1325
        %v1327 = vsel %vm1326, %v1319, %v1323
        %v1328 = vand.u32 2147483647, %v1155
        %vm1329 = vcmp.eq.f32.partialorder %v1328, 8.507059e+37
        %v1330 = vand.u32 %v1155, 2147483648
        %v1331 = vor.u32 1.1754944e-38, %v1330
        %v1332 = vsel %vm1329, %v1331, %v1327
        %v1333 = vmul.f32 1.0, %v1332
        %v1334 = vrcp.pop %v1156
        %v1335 = vmul.f32 %v1156, %v1334
        %v1336 = vsub.f32 1.0, %v1335
        %v1337 = vmul.f32 %v1334, %v1336
        %v1338 = vadd.f32 %v1334, %v1337
        %vm1339 = vweird.f32 %v1156
        %vm1340 = vweird.f32 %v1334
        %vm1341 = vmor %vm1339, %vm1340
        %v1342 = vsel %vm1341, %v1334, %v1338
        %v1343 = vand.u32 2147483647, %v1156
        %vm1344 = vcmp.eq.f32.partialorder %v1343, 8.507059e+37
        %v1345 = vand.u32 %v1156, 2147483648
        %v1346 = vor.u32 1.1754944e-38, %v1345
        %v1347 = vsel %vm1344, %v1346, %v1342
        %v1348 = vmul.f32 1.0, %v1347
        %v1349 = vrcp.pop %v1157
        %v1350 = vmul.f32 %v1157, %v1349
        %v1351 = vsub.f32 1.0, %v1350
        %v1352 = vmul.f32 %v1349, %v1351
        %v1353 = vadd.f32 %v1349, %v1352
        %vm1354 = vweird.f32 %v1157
        %vm1355 = vweird.f32 %v1349
        %vm1356 = vmor %vm1354, %vm1355
        %v1357 = vsel %vm1356, %v1349, %v1353
        %v1358 = vand.u32 2147483647, %v1157
        %vm1359 = vcmp.eq.f32.partialorder %v1358, 8.507059e+37
        %v1360 = vand.u32 %v1157, 2147483648
        %v1361 = vor.u32 1.1754944e-38, %v1360
        %v1362 = vsel %vm1359, %v1361, %v1357
        %v1363 = vmul.f32 1.0, %v1362
        %v1364 = vrcp.pop %v1158
        %v1365 = vmul.f32 %v1158, %v1364
        %v1366 = vsub.f32 1.0, %v1365
        %v1367 = vmul.f32 %v1364, %v1366
        %v1368 = vadd.f32 %v1364, %v1367
        %vm1369 = vweird.f32 %v1158
        %vm1370 = vweird.f32 %v1364
        %vm1371 = vmor %vm1369, %vm1370
        %v1372 = vsel %vm1371, %v1364, %v1368
        %v1373 = vand.u32 2147483647, %v1158
        %vm1374 = vcmp.eq.f32.partialorder %v1373, 8.507059e+37
        %v1375 = vand.u32 %v1158, 2147483648
        %v1376 = vor.u32 1.1754944e-38, %v1375
        %v1377 = vsel %vm1374, %v1376, %v1372
        %v1378 = vmul.f32 1.0, %v1377
        %v1379 = vrcp.pop %v1159
        %v1380 = vmul.f32 %v1159, %v1379
        %v1381 = vsub.f32 1.0, %v1380
        %v1382 = vmul.f32 %v1379, %v1381
        %v1383 = vadd.f32 %v1379, %v1382
        %vm1384 = vweird.f32 %v1159
        %vm1385 = vweird.f32 %v1379
        %vm1386 = vmor %vm1384, %vm1385
        %v1387 = vsel %vm1386, %v1379, %v1383
        %v1388 = vand.u32 2147483647, %v1159
        %vm1389 = vcmp.eq.f32.partialorder %v1388, 8.507059e+37
        %v1390 = vand.u32 %v1159, 2147483648
        %v1391 = vor.u32 1.1754944e-38, %v1390
        %v1392 = vsel %vm1389, %v1391, %v1387
        %v1393 = vmul.f32 1.0, %v1392
        %v1394 = vrcp.pop %v1160
        %v1395 = vmul.f32 %v1160, %v1394
        %v1396 = vsub.f32 1.0, %v1395
        %v1397 = vmul.f32 %v1394, %v1396
        %v1398 = vadd.f32 %v1394, %v1397
        %vm1399 = vweird.f32 %v1160
        %vm1400 = vweird.f32 %v1394
        %vm1401 = vmor %vm1399, %vm1400
        %v1402 = vsel %vm1401, %v1394, %v1398
        %v1403 = vand.u32 2147483647, %v1160
        %vm1404 = vcmp.eq.f32.partialorder %v1403, 8.507059e+37
        %v1405 = vand.u32 %v1160, 2147483648
        %v1406 = vor.u32 1.1754944e-38, %v1405
        %v1407 = vsel %vm1404, %v1406, %v1402
        %v1408 = vmul.f32 1.0, %v1407
        %v1409 = vrcp.pop %v1161
        %v1410 = vmul.f32 %v1161, %v1409
        %v1411 = vsub.f32 1.0, %v1410
        %v1412 = vmul.f32 %v1409, %v1411
        %v1413 = vadd.f32 %v1409, %v1412
        %vm1414 = vweird.f32 %v1161
        %vm1415 = vweird.f32 %v1409
        %vm1416 = vmor %vm1414, %vm1415
        %v1417 = vsel %vm1416, %v1409, %v1413
        %v1418 = vand.u32 2147483647, %v1161
        %vm1419 = vcmp.eq.f32.partialorder %v1418, 8.507059e+37
        %v1420 = vand.u32 %v1161, 2147483648
        %v1421 = vor.u32 1.1754944e-38, %v1420
        %v1422 = vsel %vm1419, %v1421, %v1417
        %v1423 = vmul.f32 1.0, %v1422
        %v1424 = vrcp.pop %v1162
        %v1425 = vmul.f32 %v1162, %v1424
        %v1426 = vsub.f32 1.0, %v1425
        %v1427 = vmul.f32 %v1424, %v1426
        %v1428 = vadd.f32 %v1424, %v1427
        %vm1429 = vweird.f32 %v1162
        %vm1430 = vweird.f32 %v1424
        %vm1431 = vmor %vm1429, %vm1430
        %v1432 = vsel %vm1431, %v1424, %v1428
        %v1433 = vand.u32 2147483647, %v1162
        %vm1434 = vcmp.eq.f32.partialorder %v1433, 8.507059e+37
        %v1435 = vand.u32 %v1162, 2147483648
        %v1436 = vor.u32 1.1754944e-38, %v1435
        %v1437 = vsel %vm1434, %v1436, %v1432
        %v1438 = vmul.f32 1.0, %v1437
        %v1439 = vrcp.pop %v1163
        %v1440 = vmul.f32 %v1163, %v1439
        %v1441 = vsub.f32 1.0, %v1440
        %v1442 = vmul.f32 %v1439, %v1441
        %v1443 = vadd.f32 %v1439, %v1442
        %vm1444 = vweird.f32 %v1163
        %vm1445 = vweird.f32 %v1439
        %vm1446 = vmor %vm1444, %vm1445
        %v1447 = vsel %vm1446, %v1439, %v1443
        %v1448 = vand.u32 2147483647, %v1163
        %vm1449 = vcmp.eq.f32.partialorder %v1448, 8.507059e+37
        %v1450 = vand.u32 %v1163, 2147483648
        %v1451 = vor.u32 1.1754944e-38, %v1450
        %v1452 = vsel %vm1449, %v1451, %v1447
        %v1453 = vmul.f32 1.0, %v1452
        %v1454 = vrcp.pop %v1164
        %v1455 = vmul.f32 %v1164, %v1454
        %v1456 = vsub.f32 1.0, %v1455
        %v1457 = vmul.f32 %v1454, %v1456
        %v1458 = vadd.f32 %v1454, %v1457
        %vm1459 = vweird.f32 %v1164
        %vm1460 = vweird.f32 %v1454
        %vm1461 = vmor %vm1459, %vm1460
        %v1462 = vsel %vm1461, %v1454, %v1458
        %v1463 = vand.u32 2147483647, %v1164
        %vm1464 = vcmp.eq.f32.partialorder %v1463, 8.507059e+37
        %v1465 = vand.u32 %v1164, 2147483648
        %v1466 = vor.u32 1.1754944e-38, %v1465
        %v1467 = vsel %vm1464, %v1466, %v1462
        %v1468 = vmul.f32 1.0, %v1467
        %v1469 = vrcp.pop %v1165
        %v1470 = vmul.f32 %v1165, %v1469
        %v1471 = vsub.f32 1.0, %v1470
        %v1472 = vmul.f32 %v1469, %v1471
        %v1473 = vadd.f32 %v1469, %v1472
        %vm1474 = vweird.f32 %v1165
        %vm1475 = vweird.f32 %v1469
        %vm1476 = vmor %vm1474, %vm1475
        %v1477 = vsel %vm1476, %v1469, %v1473
        %v1478 = vand.u32 2147483647, %v1165
        %vm1479 = vcmp.eq.f32.partialorder %v1478, 8.507059e+37
        %v1480 = vand.u32 %v1165, 2147483648
        %v1481 = vor.u32 1.1754944e-38, %v1480
        %v1482 = vsel %vm1479, %v1481, %v1477
        %v1483 = vmul.f32 1.0, %v1482
        %v1484 = vrcp.pop %v1166
        %v1485 = vmul.f32 %v1166, %v1484
        %v1486 = vsub.f32 1.0, %v1485
        %v1487 = vmul.f32 %v1484, %v1486
        %v1488 = vadd.f32 %v1484, %v1487
        %vm1489 = vweird.f32 %v1166
        %vm1490 = vweird.f32 %v1484
        %vm1491 = vmor %vm1489, %vm1490
        %v1492 = vsel %vm1491, %v1484, %v1488
        %v1493 = vand.u32 2147483647, %v1166
        %vm1494 = vcmp.eq.f32.partialorder %v1493, 8.507059e+37
        %v1495 = vand.u32 %v1166, 2147483648
        %v1496 = vor.u32 1.1754944e-38, %v1495
        %v1497 = vsel %vm1494, %v1496, %v1492
        %v1498 = vmul.f32 1.0, %v1497
        %v1499 = vrcp.pop %v1167
        %v1500 = vmul.f32 %v1167, %v1499
        %v1501 = vsub.f32 1.0, %v1500
        %v1502 = vmul.f32 %v1499, %v1501
        %v1503 = vadd.f32 %v1499, %v1502
        %vm1504 = vweird.f32 %v1167
        %vm1505 = vweird.f32 %v1499
        %vm1506 = vmor %vm1504, %vm1505
        %v1507 = vsel %vm1506, %v1499, %v1503
        %v1508 = vand.u32 2147483647, %v1167
        %vm1509 = vcmp.eq.f32.partialorder %v1508, 8.507059e+37
        %v1510 = vand.u32 %v1167, 2147483648
        %v1511 = vor.u32 1.1754944e-38, %v1510
        %v1512 = vsel %vm1509, %v1511, %v1507
        %v1513 = vmul.f32 1.0, %v1512
        %v1514 = vrcp.pop %v1168
        %v1515 = vmul.f32 %v1168, %v1514
        %v1516 = vsub.f32 1.0, %v1515
        %v1517 = vmul.f32 %v1514, %v1516
        %v1518 = vadd.f32 %v1514, %v1517
        %vm1519 = vweird.f32 %v1168
        %vm1520 = vweird.f32 %v1514
        %vm1521 = vmor %vm1519, %vm1520
        %v1522 = vsel %vm1521, %v1514, %v1518
        %v1523 = vand.u32 2147483647, %v1168
        %vm1524 = vcmp.eq.f32.partialorder %v1523, 8.507059e+37
        %v1525 = vand.u32 %v1168, 2147483648
        %v1526 = vor.u32 1.1754944e-38, %v1525
        %v1527 = vsel %vm1524, %v1526, %v1522
        %v1528 = vmul.f32 1.0, %v1527
        %1529 = vst [vmem:[%s273] sm:$0xff] %v1183
        %1530 = vst [vmem:[%s273 + $0x8] sm:$0xff] %v1198
        %1531 = vst [vmem:[%s273 + $0x10] sm:$0xff] %v1213
        %1532 = vst [vmem:[%s273 + $0x18] sm:$0xff] %v1228
        %1533 = vst [vmem:[%s273 + $0x20] sm:$0xff] %v1243
        %1534 = vst [vmem:[%s273 + $0x28] sm:$0xff] %v1258
        %1535 = vst [vmem:[%s273 + $0x30] sm:$0xff] %v1273
        %1536 = vst [vmem:[%s273 + $0x38] sm:$0xff] %v1288
        %1537 = vst [vmem:[%s273 + $0x40] sm:$0xff] %v1303
        %1538 = vst [vmem:[%s273 + $0x48] sm:$0xff] %v1318
        %1539 = vst [vmem:[%s273 + $0x50] sm:$0xff] %v1333
        %1540 = vst [vmem:[%s273 + $0x58] sm:$0xff] %v1348
        %1541 = vst [vmem:[%s273 + $0x60] sm:$0xff] %v1363
        %1542 = vst [vmem:[%s273 + $0x68] sm:$0xff] %v1378
        %1543 = vst [vmem:[%s273 + $0x70] sm:$0xff] %v1393
        %1544 = vst [vmem:[%s273 + $0x78] sm:$0xff] %v1408
        %1545 = vst [vmem:[%s273 + $0x80] sm:$0xff] %v1423
        %1546 = vst [vmem:[%s273 + $0x88] sm:$0xff] %v1438
        %1547 = vst [vmem:[%s273 + $0x90] sm:$0xff] %v1453
        %1548 = vst [vmem:[%s273 + $0x98] sm:$0xff] %v1468
        %1549 = vst [vmem:[%s273 + $0xa0] sm:$0xff] %v1483
        %1550 = vst [vmem:[%s273 + $0xa8] sm:$0xff] %v1498
        %1551 = vst [vmem:[%s273 + $0xb0] sm:$0x3] %v1513
        %1552 = vst [vmem:[%s273 + $0xb8] sm:$0x3] %v1528
        %s1553 = sand.u32 %s112, 1
        %s1554 = sand.u32 %s112, 1
        %s1555 = smul.addr %s1554, 192
        %s1556 = scalar_lea.vmem [#allocation3], %s1555
        // Predicated region
        $region60: #{model_forward.2} parent=54 // pred_check
          %p1557 = pneg %p122
        $region61: #{model_forward.2} parent=54 // pred_check_branch
          %1559 = sbr.rel (%p1557) target = $region63
        $region62: #{model_forward.2} parent=54 // pred_region
          %s1560 = smul.u32 2, %s15
          %s1561 = smul.addr %s1560, 8
          %s1562 = scalar_lea.vmem %s4, %s1561
          // Predicated region
          $region64: #{model_forward.2} parent=62 // pred_check
            _
          $region65: #{model_forward.2} parent=62 // pred_check_branch
            %1564 = sbr.rel (0) target = $region67
          $region66: #{model_forward.2} parent=62 // pred_region
            // Predicated region
            $region68: #{model_forward.2} parent=66 // pred_check
              _
            $region69: #{model_forward.2} parent=66 // pred_check_branch
              %1566 = sbr.rel (0) target = $region71
            $region70: #{model_forward.2} parent=66 // pred_region
              loop: start=0, step=1, limit=1
              $region72: #{model_forward.2} parent=70 // loop_pre_header
                _
              $region73: #{model_forward.2} parent=70 // loop_header
                %s1568 = sphi 0, %s1572
                %p1569 = scmp.ge.s32.totalorder %s1568, 1
                %s1573 = sphi %s1556, %s1556
                %s1574 = sphi %s1562, %s1562
              $region74: #{model_forward.2} parent=70 // loop_header_branch
                %1571 = sbr.rel (%p1569) target = $region78
              $region75: #{model_forward.2} parent=70 // loop_body
                %v1575 = vld [vmem:[%s1573] sm:$0xff]
                %1576 = vst [vmem:[%s1574] sm:$0xff] %v1575
                %v1577 = vld [vmem:[%s1573 + $0x8] sm:$0xff]
                %1578 = vst [vmem:[%s1574 + $0x8] sm:$0xff] %v1577
                %v1579 = vld [vmem:[%s1573 + $0x10] sm:$0xff]
                %1580 = vst [vmem:[%s1574 + $0x50] sm:$0xff] %v1579
                %v1581 = vld [vmem:[%s1573 + $0x18] sm:$0xff]
                %1582 = vst [vmem:[%s1574 + $0x58] sm:$0xff] %v1581
                %v1583 = vld [vmem:[%s1573 + $0x20] sm:$0xff]
                %1584 = vst [vmem:[%s1574 + $0xa0] sm:$0xff] %v1583
                %v1585 = vld [vmem:[%s1573 + $0x28] sm:$0xff]
                %1586 = vst [vmem:[%s1574 + $0xa8] sm:$0xff] %v1585
                %v1587 = vld [vmem:[%s1573 + $0x30] sm:$0xff]
                %1588 = vst [vmem:[%s1574 + $0xf0] sm:$0xff] %v1587
                %v1589 = vld [vmem:[%s1573 + $0x38] sm:$0xff]
                %1590 = vst [vmem:[%s1574 + $0xf8] sm:$0xff] %v1589
                %v1591 = vld [vmem:[%s1573 + $0x40] sm:$0xff]
                %1592 = vst [vmem:[%s1574 + $0x140] sm:$0xff] %v1591
                %v1593 = vld [vmem:[%s1573 + $0x48] sm:$0xff]
                %1594 = vst [vmem:[%s1574 + $0x148] sm:$0xff] %v1593
                %v1595 = vld [vmem:[%s1573 + $0x50] sm:$0xff]
                %1596 = vst [vmem:[%s1574 + $0x190] sm:$0xff] %v1595
                %v1597 = vld [vmem:[%s1573 + $0x58] sm:$0xff]
                %1598 = vst [vmem:[%s1574 + $0x198] sm:$0xff] %v1597
                %v1599 = vld [vmem:[%s1573 + $0x60] sm:$0xff]
                %1600 = vst [vmem:[%s1574 + $0x1e0] sm:$0xff] %v1599
                %v1601 = vld [vmem:[%s1573 + $0x68] sm:$0xff]
                %1602 = vst [vmem:[%s1574 + $0x1e8] sm:$0xff] %v1601
                %v1603 = vld [vmem:[%s1573 + $0x70] sm:$0xff]
                %1604 = vst [vmem:[%s1574 + $0x230] sm:$0xff] %v1603
                %v1605 = vld [vmem:[%s1573 + $0x78] sm:$0xff]
                %1606 = vst [vmem:[%s1574 + $0x238] sm:$0xff] %v1605
                %v1607 = vld [vmem:[%s1573 + $0x80] sm:$0xff]
                %1608 = vst [vmem:[%s1574 + $0x280] sm:$0xff] %v1607
                %v1609 = vld [vmem:[%s1573 + $0x88] sm:$0xff]
                %1610 = vst [vmem:[%s1574 + $0x288] sm:$0xff] %v1609
                %v1611 = vld [vmem:[%s1573 + $0x90] sm:$0xff]
                %1612 = vst [vmem:[%s1574 + $0x2d0] sm:$0xff] %v1611
                %v1613 = vld [vmem:[%s1573 + $0x98] sm:$0xff]
                %1614 = vst [vmem:[%s1574 + $0x2d8] sm:$0xff] %v1613
                %v1615 = vld [vmem:[%s1573 + $0xa0] sm:$0xff]
                %1616 = vst [vmem:[%s1574 + $0x320] sm:$0xff] %v1615
                %v1617 = vld [vmem:[%s1573 + $0xa8] sm:$0xff]
                %1618 = vst [vmem:[%s1574 + $0x328] sm:$0xff] %v1617
                %v1619 = vld [vmem:[%s1573 + $0xb0] sm:$0xff]
                %1620 = vst [vmem:[%s1574 + $0x370] sm:$0xff] %v1619
                %v1621 = vld [vmem:[%s1573 + $0xb8] sm:$0xff]
                %1622 = vst [vmem:[%s1574 + $0x378] sm:$0xff] %v1621
              $region76: #{model_forward.2} parent=70 // loop_footer
                %s1572 = sadd.s32 1, %s1568
              $region77: #{model_forward.2} parent=70 // loop_footer_branch
                %1567 = sbr.rel target = $region73
              $region78: #{model_forward.2} parent=70 // loop_exit
                _
            $region71: #{model_forward.2} parent=66 // pred_fallthru
              _
            // Predicated region
            $region79: #{model_forward.2} parent=66 // pred_check
              _
            $region80: #{model_forward.2} parent=66 // pred_check_branch
              %1624 = sbr.rel target = $region82
            $region81: #{model_forward.2} parent=66 // pred_region
              _
            $region82: #{model_forward.2} parent=66 // pred_fallthru
              _
          $region67: #{model_forward.2} parent=62 // pred_fallthru
            _
          %1625 = vnop
        $region63: #{model_forward.2} parent=54 // pred_fallthru
          _
      $region55: #{model_forward.2} parent=5 // pred_fallthru
        _
      %p1626 = scmp.le.s32.totalorder 2, %s10
      // Predicated region
      $region83: #{model_forward.2} parent=5 // pred_check
        %p1627 = pneg %p1626
      $region84: #{model_forward.2} parent=5 // pred_check_branch
        %1629 = sbr.rel (%p1627) target = $region86
      $region85: #{model_forward.2} parent=5 // pred_region
        %s1630 = ssub.s32 %s10, 2
        // Predicated region
        $region87: #{model_forward.2} parent=85 // pred_check
          %p1631 = pneg %p128
        $region88: #{model_forward.2} parent=85 // pred_check_branch
          %1633 = sbr.rel (%p1631) target = $region90
        $region89: #{model_forward.2} parent=85 // pred_region
          %s1634 = sand.u32 %s113, 1
          %s1635 = sand.u32 %s113, 1
          %s1636 = smul.addr %s1635, 192
          %s1637 = scalar_lea.vmem [#allocation3], %s1636
        $region90: #{model_forward.2} parent=85 // pred_fallthru
          _
      $region86: #{model_forward.2} parent=5 // pred_fallthru
        _
    $region6: #{model_forward.2} parent=1 // loop_footer
      %s14 = sadd.s32 1, %s10
    $region7: #{model_forward.2} parent=1 // loop_footer_branch
      %9 = sbr.rel target = $region3
    $region8: #{model_forward.2} parent=1 // loop_exit
      _

// kernel: model_forward.3
$region0: #{model_forward.3}
  #allocation0 [shape = 'u32[]', space=smem, size = 0x4, offset = 0x4, fixed_abs, tag = 'smem constant byte address 0x4 - core index']
  #allocation1 [shape = 'u32[72,128]{1,0:T(1,128)}', space=vmem, size = 0x9000, scoped, tag = 'internal scratch']
  %s0 = inlined_call_operand.vmem [shape: f32[3,2,4,3,250,81], index: 0, kind: input, shape index: {}]
  %s1 = inlined_call_operand.vmem [shape: f32[3,3,30,250], index: 1, kind: input, shape index: {}]
  %s2 = inlined_call_operand.vmem [shape: f32[3,30,1], index: 2, kind: input, shape index: {}]
  %s3 = inlined_call_operand.vmem [shape: f32[3,30,1], index: 3, kind: input, shape index: {}]
  %s4 = inlined_call_operand.vmem [shape: f32[3,5,30], index: 4, kind: input, shape index: {}]
  %s5 = inlined_call_operand.vmem [shape: f32[3,5,1], index: 5, kind: input, shape index: {}]
  %s6 = inlined_call_operand.vmem [shape: f32[3,5,30], index: 6, kind: input, shape index: {}]
  %s7 = inlined_call_operand.vmem [shape: f32[3,5,1], index: 7, kind: input, shape index: {}]
  %s8 = inlined_call_operand.vmem [shape: f32[3,1,1], index: 8, kind: input, shape index: {}]
  %s9 = inlined_call_operand.vmem [shape: f32[3,30,1], index: 9, kind: input, shape index: {}]
  %s10 = inlined_call_operand.vmem [shape: f32[3,30,1], index: 10, kind: input, shape index: {}]
  %s11 = inlined_call_operand.vmem [shape: f32[3,30,30], index: 11, kind: input, shape index: {}]
  %s12 = inlined_call_operand.vmem [shape: f32[3,30,1], index: 12, kind: input, shape index: {}]
  %s13 = inlined_call_operand.vmem [shape: f32[3,30,30], index: 13, kind: input, shape index: {}]
  %s14 = inlined_call_operand.vmem [shape: f32[3,30,1], index: 14, kind: input, shape index: {}]
  %s15 = inlined_call_operand.vmem [shape: f32[3,1,30], index: 15, kind: input, shape index: {}]
  %s16 = inlined_call_operand.vmem [shape: f32[3,1,1], index: 16, kind: input, shape index: {}]
  %s17 = inlined_call_operand.vmem [shape: f32[3,2,1,1], index: 17, kind: output, shape index: {}]
  %s18 = sld [smem:[#allocation0]]
  $region101: #{model_forward.3} parent=0
    _
  %s20 = ssub.s32 1, %s18
  %s21 = scalar_select 0, %s20, %s18
  loop: start=0, step=1, limit=8
  $region2: #{model_forward.3} parent=0 // loop_pre_header
    _
  $region3: #{model_forward.3} parent=0 // loop_header
    %s23 = sphi 0, %s27
    %p24 = scmp.ge.s32.totalorder %s23, 8
    %s30 = sphi 0, %s42
    %s31 = sphi 0, %s38
    %s32 = sphi 0, %s30
    %s33 = sphi 0, %s31
    %s34 = sphi 0, %s32
    %s35 = sphi 0, %s33
    %s47 = sphi 0, %s49
    %s50 = sphi 0, %s47
    %s51 = sphi 0, %s50
    %s67 = sphi 0, %s51
    %s73 = sphi 0, %s75
    %s76 = sphi 0, %s73
    %s77 = sphi 0, %s76
    %s93 = sphi 0, %s77
    %s99 = sphi 0, %s101
    %s102 = sphi 0, %s99
    %s103 = sphi 0, %s102
    %s119 = sphi 0, %s103
    %s125 = sphi 0, %s127
    %s128 = sphi 0, %s125
    %s129 = sphi 0, %s128
    %s145 = sphi 0, %s129
    %s151 = sphi 0, %s153
    %s154 = sphi 0, %s151
    %s155 = sphi 0, %s154
    %s171 = sphi 0, %s155
    %s177 = sphi 0, %s179
    %s180 = sphi 0, %s177
    %s181 = sphi 0, %s180
    %s197 = sphi 0, %s181
    %s203 = sphi 0, %s205
    %s206 = sphi 0, %s203
    %s207 = sphi 0, %s206
    %s223 = sphi 0, %s207
    %s229 = sphi 0, %s231
    %s232 = sphi 0, %s229
    %s233 = sphi 0, %s232
    %s249 = sphi 0, %s233
    %s255 = sphi 0, %s257
    %s258 = sphi 0, %s255
    %s259 = sphi 0, %s258
    %s275 = sphi 0, %s259
    %s281 = sphi 0, %s283
    %s284 = sphi 0, %s281
    %s285 = sphi 0, %s284
    %s301 = sphi 0, %s285
    %s307 = sphi 0, %s309
    %s310 = sphi 0, %s307
    %s311 = sphi 0, %s310
    %s327 = sphi 0, %s311
    %s333 = sphi 0, %s335
    %s336 = sphi 0, %s333
    %s337 = sphi 0, %s336
    %s353 = sphi 0, %s337
    %s359 = sphi 0, %s361
    %s362 = sphi 0, %s359
    %s363 = sphi 0, %s362
    %s379 = sphi 0, %s363
    %s385 = sphi 0, %s387
    %s388 = sphi 0, %s385
    %s389 = sphi 0, %s388
    %s405 = sphi 0, %s389
    %s411 = sphi 0, %s413
    %s414 = sphi 0, %s411
    %s415 = sphi 0, %s414
    %s431 = sphi 0, %s415
    %s437 = sphi 0, %s439
    %s440 = sphi 0, %s437
    %s441 = sphi 0, %s440
    %s457 = sphi 0, %s441
    %s463 = sphi 0, %s465
    %s466 = sphi 0, %s463
    %s467 = sphi 0, %s466
    %s483 = sphi 0, %s467
    %s491 = sphi 0, %s493
    %s494 = sphi 0, %s491
    %s495 = sphi 0, %s494
    %s511 = sphi 0, %s495
  $region4: #{model_forward.3} parent=0 // loop_header_branch
    %26 = sbr.rel (%p24) target = $region8
  $region5: #{model_forward.3} parent=0 // loop_body
    %s28 = ssub.s32 %s23, 1
    %s29 = ssub.s32 %s23, 2
    %s36 = sadd.s32 1, %s31
    %p37 = scmp.ge.s32.totalorder %s36, 2
    %s38 = scalar_select %p37, 0, %s36
    %s39 = sadd.s32 1, %s30
    %s40 = scalar_select %p37, %s39, %s30
    %p41 = scmp.ge.s32.totalorder %s40, 3
    %s42 = scalar_select %p41, 0, %s40
    %s43 = ssub.s32 %s30, %s42
    %s44 = ssub.s32 %s31, %s38
    %s45 = sor.u32 %s43, %s44
    %p46 = scmp.eq.s32.totalorder %s45, 0
    %s48 = sadd.s32 %s47, 1
    %s49 = scalar_select %p46, %s47, %s48
    %p52 = pneg %p46
    %p53 = scmp.eq.s32.totalorder %s23, 5
    %p54 = por %p52, %p53
    %p55 = scmp.ne.s32.totalorder %s47, %s50
    %p56 = scmp.eq.s32.totalorder %s23, 0
    %p57 = por %p55, %p56
    %p58 = scmp.ne.s32.totalorder %s47, %s50
    %p59 = scmp.eq.s32.totalorder %s28, 5
    %p60 = por %p58, %p59
    %p61 = scmp.ne.s32.totalorder %s50, %s51
    %p62 = scmp.eq.s32.totalorder %s28, 0
    %p63 = por %p61, %p62
    %p64 = scmp.ne.s32.totalorder %s50, %s51
    %p65 = scmp.eq.s32.totalorder %s29, 5
    %p66 = por %p64, %p65
    %p68 = scmp.ne.s32.totalorder %s51, %s67
    %p69 = scmp.eq.s32.totalorder %s29, 0
    %p70 = por %p68, %p69
    %s71 = ssub.s32 %s30, %s42
    %p72 = scmp.eq.s32.totalorder %s71, 0
    %s74 = sadd.s32 %s73, 1
    %s75 = scalar_select %p72, %s73, %s74
    %p78 = pneg %p72
    %p79 = scmp.eq.s32.totalorder %s23, 5
    %p80 = por %p78, %p79
    %p81 = scmp.ne.s32.totalorder %s73, %s76
    %p82 = scmp.eq.s32.totalorder %s23, 0
    %p83 = por %p81, %p82
    %p84 = scmp.ne.s32.totalorder %s73, %s76
    %p85 = scmp.eq.s32.totalorder %s28, 5
    %p86 = por %p84, %p85
    %p87 = scmp.ne.s32.totalorder %s76, %s77
    %p88 = scmp.eq.s32.totalorder %s28, 0
    %p89 = por %p87, %p88
    %p90 = scmp.ne.s32.totalorder %s76, %s77
    %p91 = scmp.eq.s32.totalorder %s29, 5
    %p92 = por %p90, %p91
    %p94 = scmp.ne.s32.totalorder %s77, %s93
    %p95 = scmp.eq.s32.totalorder %s29, 0
    %p96 = por %p94, %p95
    %s97 = ssub.s32 %s30, %s42
    %p98 = scmp.eq.s32.totalorder %s97, 0
    %s100 = sadd.s32 %s99, 1
    %s101 = scalar_select %p98, %s99, %s100
    %p104 = pneg %p98
    %p105 = scmp.eq.s32.totalorder %s23, 5
    %p106 = por %p104, %p105
    %p107 = scmp.ne.s32.totalorder %s99, %s102
    %p108 = scmp.eq.s32.totalorder %s23, 0
    %p109 = por %p107, %p108
    %p110 = scmp.ne.s32.totalorder %s99, %s102
    %p111 = scmp.eq.s32.totalorder %s28, 5
    %p112 = por %p110, %p111
    %p113 = scmp.ne.s32.totalorder %s102, %s103
    %p114 = scmp.eq.s32.totalorder %s28, 0
    %p115 = por %p113, %p114
    %p116 = scmp.ne.s32.totalorder %s102, %s103
    %p117 = scmp.eq.s32.totalorder %s29, 5
    %p118 = por %p116, %p117
    %p120 = scmp.ne.s32.totalorder %s103, %s119
    %p121 = scmp.eq.s32.totalorder %s29, 0
    %p122 = por %p120, %p121
    %s123 = ssub.s32 %s30, %s42
    %p124 = scmp.eq.s32.totalorder %s123, 0
    %s126 = sadd.s32 %s125, 1
    %s127 = scalar_select %p124, %s125, %s126
    %p130 = pneg %p124
    %p131 = scmp.eq.s32.totalorder %s23, 5
    %p132 = por %p130, %p131
    %p133 = scmp.ne.s32.totalorder %s125, %s128
    %p134 = scmp.eq.s32.totalorder %s23, 0
    %p135 = por %p133, %p134
    %p136 = scmp.ne.s32.totalorder %s125, %s128
    %p137 = scmp.eq.s32.totalorder %s28, 5
    %p138 = por %p136, %p137
    %p139 = scmp.ne.s32.totalorder %s128, %s129
    %p140 = scmp.eq.s32.totalorder %s28, 0
    %p141 = por %p139, %p140
    %p142 = scmp.ne.s32.totalorder %s128, %s129
    %p143 = scmp.eq.s32.totalorder %s29, 5
    %p144 = por %p142, %p143
    %p146 = scmp.ne.s32.totalorder %s129, %s145
    %p147 = scmp.eq.s32.totalorder %s29, 0
    %p148 = por %p146, %p147
    %s149 = ssub.s32 %s30, %s42
    %p150 = scmp.eq.s32.totalorder %s149, 0
    %s152 = sadd.s32 %s151, 1
    %s153 = scalar_select %p150, %s151, %s152
    %p156 = pneg %p150
    %p157 = scmp.eq.s32.totalorder %s23, 5
    %p158 = por %p156, %p157
    %p159 = scmp.ne.s32.totalorder %s151, %s154
    %p160 = scmp.eq.s32.totalorder %s23, 0
    %p161 = por %p159, %p160
    %p162 = scmp.ne.s32.totalorder %s151, %s154
    %p163 = scmp.eq.s32.totalorder %s28, 5
    %p164 = por %p162, %p163
    %p165 = scmp.ne.s32.totalorder %s154, %s155
    %p166 = scmp.eq.s32.totalorder %s28, 0
    %p167 = por %p165, %p166
    %p168 = scmp.ne.s32.totalorder %s154, %s155
    %p169 = scmp.eq.s32.totalorder %s29, 5
    %p170 = por %p168, %p169
    %p172 = scmp.ne.s32.totalorder %s155, %s171
    %p173 = scmp.eq.s32.totalorder %s29, 0
    %p174 = por %p172, %p173
    %s175 = ssub.s32 %s30, %s42
    %p176 = scmp.eq.s32.totalorder %s175, 0
    %s178 = sadd.s32 %s177, 1
    %s179 = scalar_select %p176, %s177, %s178
    %p182 = pneg %p176
    %p183 = scmp.eq.s32.totalorder %s23, 5
    %p184 = por %p182, %p183
    %p185 = scmp.ne.s32.totalorder %s177, %s180
    %p186 = scmp.eq.s32.totalorder %s23, 0
    %p187 = por %p185, %p186
    %p188 = scmp.ne.s32.totalorder %s177, %s180
    %p189 = scmp.eq.s32.totalorder %s28, 5
    %p190 = por %p188, %p189
    %p191 = scmp.ne.s32.totalorder %s180, %s181
    %p192 = scmp.eq.s32.totalorder %s28, 0
    %p193 = por %p191, %p192
    %p194 = scmp.ne.s32.totalorder %s180, %s181
    %p195 = scmp.eq.s32.totalorder %s29, 5
    %p196 = por %p194, %p195
    %p198 = scmp.ne.s32.totalorder %s181, %s197
    %p199 = scmp.eq.s32.totalorder %s29, 0
    %p200 = por %p198, %p199
    %s201 = ssub.s32 %s30, %s42
    %p202 = scmp.eq.s32.totalorder %s201, 0
    %s204 = sadd.s32 %s203, 1
    %s205 = scalar_select %p202, %s203, %s204
    %p208 = pneg %p202
    %p209 = scmp.eq.s32.totalorder %s23, 5
    %p210 = por %p208, %p209
    %p211 = scmp.ne.s32.totalorder %s203, %s206
    %p212 = scmp.eq.s32.totalorder %s23, 0
    %p213 = por %p211, %p212
    %p214 = scmp.ne.s32.totalorder %s203, %s206
    %p215 = scmp.eq.s32.totalorder %s28, 5
    %p216 = por %p214, %p215
    %p217 = scmp.ne.s32.totalorder %s206, %s207
    %p218 = scmp.eq.s32.totalorder %s28, 0
    %p219 = por %p217, %p218
    %p220 = scmp.ne.s32.totalorder %s206, %s207
    %p221 = scmp.eq.s32.totalorder %s29, 5
    %p222 = por %p220, %p221
    %p224 = scmp.ne.s32.totalorder %s207, %s223
    %p225 = scmp.eq.s32.totalorder %s29, 0
    %p226 = por %p224, %p225
    %s227 = ssub.s32 %s30, %s42
    %p228 = scmp.eq.s32.totalorder %s227, 0
    %s230 = sadd.s32 %s229, 1
    %s231 = scalar_select %p228, %s229, %s230
    %p234 = pneg %p228
    %p235 = scmp.eq.s32.totalorder %s23, 5
    %p236 = por %p234, %p235
    %p237 = scmp.ne.s32.totalorder %s229, %s232
    %p238 = scmp.eq.s32.totalorder %s23, 0
    %p239 = por %p237, %p238
    %p240 = scmp.ne.s32.totalorder %s229, %s232
    %p241 = scmp.eq.s32.totalorder %s28, 5
    %p242 = por %p240, %p241
    %p243 = scmp.ne.s32.totalorder %s232, %s233
    %p244 = scmp.eq.s32.totalorder %s28, 0
    %p245 = por %p243, %p244
    %p246 = scmp.ne.s32.totalorder %s232, %s233
    %p247 = scmp.eq.s32.totalorder %s29, 5
    %p248 = por %p246, %p247
    %p250 = scmp.ne.s32.totalorder %s233, %s249
    %p251 = scmp.eq.s32.totalorder %s29, 0
    %p252 = por %p250, %p251
    %s253 = ssub.s32 %s30, %s42
    %p254 = scmp.eq.s32.totalorder %s253, 0
    %s256 = sadd.s32 %s255, 1
    %s257 = scalar_select %p254, %s255, %s256
    %p260 = pneg %p254
    %p261 = scmp.eq.s32.totalorder %s23, 5
    %p262 = por %p260, %p261
    %p263 = scmp.ne.s32.totalorder %s255, %s258
    %p264 = scmp.eq.s32.totalorder %s23, 0
    %p265 = por %p263, %p264
    %p266 = scmp.ne.s32.totalorder %s255, %s258
    %p267 = scmp.eq.s32.totalorder %s28, 5
    %p268 = por %p266, %p267
    %p269 = scmp.ne.s32.totalorder %s258, %s259
    %p270 = scmp.eq.s32.totalorder %s28, 0
    %p271 = por %p269, %p270
    %p272 = scmp.ne.s32.totalorder %s258, %s259
    %p273 = scmp.eq.s32.totalorder %s29, 5
    %p274 = por %p272, %p273
    %p276 = scmp.ne.s32.totalorder %s259, %s275
    %p277 = scmp.eq.s32.totalorder %s29, 0
    %p278 = por %p276, %p277
    %s279 = ssub.s32 %s30, %s42
    %p280 = scmp.eq.s32.totalorder %s279, 0
    %s282 = sadd.s32 %s281, 1
    %s283 = scalar_select %p280, %s281, %s282
    %p286 = pneg %p280
    %p287 = scmp.eq.s32.totalorder %s23, 5
    %p288 = por %p286, %p287
    %p289 = scmp.ne.s32.totalorder %s281, %s284
    %p290 = scmp.eq.s32.totalorder %s23, 0
    %p291 = por %p289, %p290
    %p292 = scmp.ne.s32.totalorder %s281, %s284
    %p293 = scmp.eq.s32.totalorder %s28, 5
    %p294 = por %p292, %p293
    %p295 = scmp.ne.s32.totalorder %s284, %s285
    %p296 = scmp.eq.s32.totalorder %s28, 0
    %p297 = por %p295, %p296
    %p298 = scmp.ne.s32.totalorder %s284, %s285
    %p299 = scmp.eq.s32.totalorder %s29, 5
    %p300 = por %p298, %p299
    %p302 = scmp.ne.s32.totalorder %s285, %s301
    %p303 = scmp.eq.s32.totalorder %s29, 0
    %p304 = por %p302, %p303
    %s305 = ssub.s32 %s30, %s42
    %p306 = scmp.eq.s32.totalorder %s305, 0
    %s308 = sadd.s32 %s307, 1
    %s309 = scalar_select %p306, %s307, %s308
    %p312 = pneg %p306
    %p313 = scmp.eq.s32.totalorder %s23, 5
    %p314 = por %p312, %p313
    %p315 = scmp.ne.s32.totalorder %s307, %s310
    %p316 = scmp.eq.s32.totalorder %s23, 0
    %p317 = por %p315, %p316
    %p318 = scmp.ne.s32.totalorder %s307, %s310
    %p319 = scmp.eq.s32.totalorder %s28, 5
    %p320 = por %p318, %p319
    %p321 = scmp.ne.s32.totalorder %s310, %s311
    %p322 = scmp.eq.s32.totalorder %s28, 0
    %p323 = por %p321, %p322
    %p324 = scmp.ne.s32.totalorder %s310, %s311
    %p325 = scmp.eq.s32.totalorder %s29, 5
    %p326 = por %p324, %p325
    %p328 = scmp.ne.s32.totalorder %s311, %s327
    %p329 = scmp.eq.s32.totalorder %s29, 0
    %p330 = por %p328, %p329
    %s331 = ssub.s32 %s30, %s42
    %p332 = scmp.eq.s32.totalorder %s331, 0
    %s334 = sadd.s32 %s333, 1
    %s335 = scalar_select %p332, %s333, %s334
    %p338 = pneg %p332
    %p339 = scmp.eq.s32.totalorder %s23, 5
    %p340 = por %p338, %p339
    %p341 = scmp.ne.s32.totalorder %s333, %s336
    %p342 = scmp.eq.s32.totalorder %s23, 0
    %p343 = por %p341, %p342
    %p344 = scmp.ne.s32.totalorder %s333, %s336
    %p345 = scmp.eq.s32.totalorder %s28, 5
    %p346 = por %p344, %p345
    %p347 = scmp.ne.s32.totalorder %s336, %s337
    %p348 = scmp.eq.s32.totalorder %s28, 0
    %p349 = por %p347, %p348
    %p350 = scmp.ne.s32.totalorder %s336, %s337
    %p351 = scmp.eq.s32.totalorder %s29, 5
    %p352 = por %p350, %p351
    %p354 = scmp.ne.s32.totalorder %s337, %s353
    %p355 = scmp.eq.s32.totalorder %s29, 0
    %p356 = por %p354, %p355
    %s357 = ssub.s32 %s30, %s42
    %p358 = scmp.eq.s32.totalorder %s357, 0
    %s360 = sadd.s32 %s359, 1
    %s361 = scalar_select %p358, %s359, %s360
    %p364 = pneg %p358
    %p365 = scmp.eq.s32.totalorder %s23, 5
    %p366 = por %p364, %p365
    %p367 = scmp.ne.s32.totalorder %s359, %s362
    %p368 = scmp.eq.s32.totalorder %s23, 0
    %p369 = por %p367, %p368
    %p370 = scmp.ne.s32.totalorder %s359, %s362
    %p371 = scmp.eq.s32.totalorder %s28, 5
    %p372 = por %p370, %p371
    %p373 = scmp.ne.s32.totalorder %s362, %s363
    %p374 = scmp.eq.s32.totalorder %s28, 0
    %p375 = por %p373, %p374
    %p376 = scmp.ne.s32.totalorder %s362, %s363
    %p377 = scmp.eq.s32.totalorder %s29, 5
    %p378 = por %p376, %p377
    %p380 = scmp.ne.s32.totalorder %s363, %s379
    %p381 = scmp.eq.s32.totalorder %s29, 0
    %p382 = por %p380, %p381
    %s383 = ssub.s32 %s30, %s42
    %p384 = scmp.eq.s32.totalorder %s383, 0
    %s386 = sadd.s32 %s385, 1
    %s387 = scalar_select %p384, %s385, %s386
    %p390 = pneg %p384
    %p391 = scmp.eq.s32.totalorder %s23, 5
    %p392 = por %p390, %p391
    %p393 = scmp.ne.s32.totalorder %s385, %s388
    %p394 = scmp.eq.s32.totalorder %s23, 0
    %p395 = por %p393, %p394
    %p396 = scmp.ne.s32.totalorder %s385, %s388
    %p397 = scmp.eq.s32.totalorder %s28, 5
    %p398 = por %p396, %p397
    %p399 = scmp.ne.s32.totalorder %s388, %s389
    %p400 = scmp.eq.s32.totalorder %s28, 0
    %p401 = por %p399, %p400
    %p402 = scmp.ne.s32.totalorder %s388, %s389
    %p403 = scmp.eq.s32.totalorder %s29, 5
    %p404 = por %p402, %p403
    %p406 = scmp.ne.s32.totalorder %s389, %s405
    %p407 = scmp.eq.s32.totalorder %s29, 0
    %p408 = por %p406, %p407
    %s409 = ssub.s32 %s30, %s42
    %p410 = scmp.eq.s32.totalorder %s409, 0
    %s412 = sadd.s32 %s411, 1
    %s413 = scalar_select %p410, %s411, %s412
    %p416 = pneg %p410
    %p417 = scmp.eq.s32.totalorder %s23, 5
    %p418 = por %p416, %p417
    %p419 = scmp.ne.s32.totalorder %s411, %s414
    %p420 = scmp.eq.s32.totalorder %s23, 0
    %p421 = por %p419, %p420
    %p422 = scmp.ne.s32.totalorder %s411, %s414
    %p423 = scmp.eq.s32.totalorder %s28, 5
    %p424 = por %p422, %p423
    %p425 = scmp.ne.s32.totalorder %s414, %s415
    %p426 = scmp.eq.s32.totalorder %s28, 0
    %p427 = por %p425, %p426
    %p428 = scmp.ne.s32.totalorder %s414, %s415
    %p429 = scmp.eq.s32.totalorder %s29, 5
    %p430 = por %p428, %p429
    %p432 = scmp.ne.s32.totalorder %s415, %s431
    %p433 = scmp.eq.s32.totalorder %s29, 0
    %p434 = por %p432, %p433
    %s435 = ssub.s32 %s30, %s42
    %p436 = scmp.eq.s32.totalorder %s435, 0
    %s438 = sadd.s32 %s437, 1
    %s439 = scalar_select %p436, %s437, %s438
    %p442 = pneg %p436
    %p443 = scmp.eq.s32.totalorder %s23, 5
    %p444 = por %p442, %p443
    %p445 = scmp.ne.s32.totalorder %s437, %s440
    %p446 = scmp.eq.s32.totalorder %s23, 0
    %p447 = por %p445, %p446
    %p448 = scmp.ne.s32.totalorder %s437, %s440
    %p449 = scmp.eq.s32.totalorder %s28, 5
    %p450 = por %p448, %p449
    %p451 = scmp.ne.s32.totalorder %s440, %s441
    %p452 = scmp.eq.s32.totalorder %s28, 0
    %p453 = por %p451, %p452
    %p454 = scmp.ne.s32.totalorder %s440, %s441
    %p455 = scmp.eq.s32.totalorder %s29, 5
    %p456 = por %p454, %p455
    %p458 = scmp.ne.s32.totalorder %s441, %s457
    %p459 = scmp.eq.s32.totalorder %s29, 0
    %p460 = por %p458, %p459
    %s461 = ssub.s32 %s30, %s42
    %p462 = scmp.eq.s32.totalorder %s461, 0
    %s464 = sadd.s32 %s463, 1
    %s465 = scalar_select %p462, %s463, %s464
    %p468 = pneg %p462
    %p469 = scmp.eq.s32.totalorder %s23, 5
    %p470 = por %p468, %p469
    %p471 = scmp.ne.s32.totalorder %s463, %s466
    %p472 = scmp.eq.s32.totalorder %s23, 0
    %p473 = por %p471, %p472
    %p474 = scmp.ne.s32.totalorder %s463, %s466
    %p475 = scmp.eq.s32.totalorder %s28, 5
    %p476 = por %p474, %p475
    %p477 = scmp.ne.s32.totalorder %s466, %s467
    %p478 = scmp.eq.s32.totalorder %s28, 0
    %p479 = por %p477, %p478
    %p480 = scmp.ne.s32.totalorder %s466, %s467
    %p481 = scmp.eq.s32.totalorder %s29, 5
    %p482 = por %p480, %p481
    %p484 = scmp.ne.s32.totalorder %s467, %s483
    %p485 = scmp.eq.s32.totalorder %s29, 0
    %p486 = por %p484, %p485
    %s487 = ssub.s32 %s30, %s42
    %s488 = ssub.s32 %s31, %s38
    %s489 = sor.u32 %s487, %s488
    %p490 = scmp.eq.s32.totalorder %s489, 0
    %s492 = sadd.s32 %s491, 1
    %s493 = scalar_select %p490, %s491, %s492
    %p496 = pneg %p490
    %p497 = scmp.eq.s32.totalorder %s23, 5
    %p498 = por %p496, %p497
    %p499 = scmp.ne.s32.totalorder %s491, %s494
    %p500 = scmp.eq.s32.totalorder %s23, 0
    %p501 = por %p499, %p500
    %p502 = scmp.ne.s32.totalorder %s491, %s494
    %p503 = scmp.eq.s32.totalorder %s28, 5
    %p504 = por %p502, %p503
    %p505 = scmp.ne.s32.totalorder %s494, %s495
    %p506 = scmp.eq.s32.totalorder %s28, 0
    %p507 = por %p505, %p506
    %p508 = scmp.ne.s32.totalorder %s494, %s495
    %p509 = scmp.eq.s32.totalorder %s29, 5
    %p510 = por %p508, %p509
    %p512 = scmp.ne.s32.totalorder %s495, %s511
    %p513 = scmp.eq.s32.totalorder %s29, 0
    %p514 = por %p512, %p513
    %p515 = scmp.le.s32.totalorder 1, %s23
    %p516 = scmp.lt.s32.totalorder %s23, 7
    %p517 = pnand %p515, %p516
    %p518 = pneg %p517
    // Predicated region
    $region9: #{model_forward.3} parent=5 // pred_check
      _
    $region10: #{model_forward.3} parent=5 // pred_check_branch
      %520 = sbr.rel (%p517) target = $region12
    $region11: #{model_forward.3} parent=5 // pred_region
      %s521 = ssub.s32 %s23, 1
    $region12: #{model_forward.3} parent=5 // pred_fallthru
      _
    %p522 = scmp.lt.s32.totalorder %s23, 6
    // Predicated region
    $region13: #{model_forward.3} parent=5 // pred_check
      %p523 = pneg %p522
    $region14: #{model_forward.3} parent=5 // pred_check_branch
      %525 = sbr.rel (%p523) target = $region16
    $region15: #{model_forward.3} parent=5 // pred_region
      // Predicated region
      $region17: #{model_forward.3} parent=15 // pred_check
        %p526 = pneg %p57
      $region18: #{model_forward.3} parent=15 // pred_check_branch
        %528 = sbr.rel (%p526) target = $region20
      $region19: #{model_forward.3} parent=15 // pred_region
        %p529 = scmp.lt.s32.totalorder %s30, 2
        %s530 = scalar_select %p529, %s30, 2
        %p531 = scmp.lt.s32.totalorder %s31, 1
        %s532 = scalar_select %p531, %s31, 1
        %s533 = smul.addr %s532, 384
        %s534 = smul.addr %s530, 768
        %s535 = sadd.s32 %s533, %s534
        %s536 = smul.addr %s535, 8
        %s537 = scalar_lea.vmem %s0, %s536
      $region20: #{model_forward.3} parent=15 // pred_fallthru
        _
      // Predicated region
      $region21: #{model_forward.3} parent=15 // pred_check
        %p538 = pneg %p83
      $region22: #{model_forward.3} parent=15 // pred_check_branch
        %540 = sbr.rel (%p538) target = $region24
      $region23: #{model_forward.3} parent=15 // pred_region
        %p541 = scmp.lt.s32.totalorder %s30, 2
        %s542 = scalar_select %p541, %s30, 2
        %s543 = smul.addr %s542, 24
        %s544 = smul.addr %s543, 8
        %s545 = scalar_lea.vmem %s1, %s544
      $region24: #{model_forward.3} parent=15 // pred_fallthru
        _
      // Predicated region
      $region25: #{model_forward.3} parent=15 // pred_check
        %p546 = pneg %p109
      $region26: #{model_forward.3} parent=15 // pred_check_branch
        %548 = sbr.rel (%p546) target = $region28
      $region27: #{model_forward.3} parent=15 // pred_region
        %p549 = scmp.lt.s32.totalorder %s30, 2
        %s550 = scalar_select %p549, %s30, 2
        %s551 = smul.addr %s550, 4
        %s552 = smul.addr %s551, 8
        %s553 = scalar_lea.vmem %s2, %s552
      $region28: #{model_forward.3} parent=15 // pred_fallthru
        _
      // Predicated region
      $region29: #{model_forward.3} parent=15 // pred_check
        %p554 = pneg %p135
      $region30: #{model_forward.3} parent=15 // pred_check_branch
        %556 = sbr.rel (%p554) target = $region32
      $region31: #{model_forward.3} parent=15 // pred_region
        %p557 = scmp.lt.s32.totalorder %s30, 2
        %s558 = scalar_select %p557, %s30, 2
        %s559 = smul.addr %s558, 4
        %s560 = smul.addr %s559, 8
        %s561 = scalar_lea.vmem %s3, %s560
      $region32: #{model_forward.3} parent=15 // pred_fallthru
        _
      // Predicated region
      $region33: #{model_forward.3} parent=15 // pred_check
        %p562 = pneg %p161
      $region34: #{model_forward.3} parent=15 // pred_check_branch
        %564 = sbr.rel (%p562) target = $region36
      $region35: #{model_forward.3} parent=15 // pred_region
        %p565 = scmp.lt.s32.totalorder %s30, 2
        %s566 = scalar_select %p565, %s30, 2
        %s567 = smul.addr %s566, 8
        %s568 = scalar_lea.vmem %s4, %s567
      $region36: #{model_forward.3} parent=15 // pred_fallthru
        _
      // Predicated region
      $region37: #{model_forward.3} parent=15 // pred_check
        %p569 = pneg %p187
      $region38: #{model_forward.3} parent=15 // pred_check_branch
        %571 = sbr.rel (%p569) target = $region40
      $region39: #{model_forward.3} parent=15 // pred_region
        %p572 = scmp.lt.s32.totalorder %s30, 2
        %s573 = scalar_select %p572, %s30, 2
        %s574 = smul.addr %s573, 8
        %s575 = scalar_lea.vmem %s5, %s574
      $region40: #{model_forward.3} parent=15 // pred_fallthru
        _
      // Predicated region
      $region41: #{model_forward.3} parent=15 // pred_check
        %p576 = pneg %p213
      $region42: #{model_forward.3} parent=15 // pred_check_branch
        %578 = sbr.rel (%p576) target = $region44
      $region43: #{model_forward.3} parent=15 // pred_region
        %p579 = scmp.lt.s32.totalorder %s30, 2
        %s580 = scalar_select %p579, %s30, 2
        %s581 = smul.addr %s580, 8
        %s582 = scalar_lea.vmem %s6, %s581
      $region44: #{model_forward.3} parent=15 // pred_fallthru
        _
      // Predicated region
      $region45: #{model_forward.3} parent=15 // pred_check
        %p583 = pneg %p239
      $region46: #{model_forward.3} parent=15 // pred_check_branch
        %585 = sbr.rel (%p583) target = $region48
      $region47: #{model_forward.3} parent=15 // pred_region
        %p586 = scmp.lt.s32.totalorder %s30, 2
        %s587 = scalar_select %p586, %s30, 2
        %s588 = smul.addr %s587, 8
        %s589 = scalar_lea.vmem %s7, %s588
      $region48: #{model_forward.3} parent=15 // pred_fallthru
        _
      // Predicated region
      $region49: #{model_forward.3} parent=15 // pred_check
        %p590 = pneg %p265
      $region50: #{model_forward.3} parent=15 // pred_check_branch
        %592 = sbr.rel (%p590) target = $region52
      $region51: #{model_forward.3} parent=15 // pred_region
        %p593 = scmp.lt.s32.totalorder %s30, 2
        %s594 = scalar_select %p593, %s30, 2
        %s595 = scalar_lea.vmem %s8, %s594
      $region52: #{model_forward.3} parent=15 // pred_fallthru
        _
      // Predicated region
      $region53: #{model_forward.3} parent=15 // pred_check
        %p596 = pneg %p291
      $region54: #{model_forward.3} parent=15 // pred_check_branch
        %598 = sbr.rel (%p596) target = $region56
      $region55: #{model_forward.3} parent=15 // pred_region
        %p599 = scmp.lt.s32.totalorder %s30, 2
        %s600 = scalar_select %p599, %s30, 2
        %s601 = smul.addr %s600, 4
        %s602 = smul.addr %s601, 8
        %s603 = scalar_lea.vmem %s9, %s602
      $region56: #{model_forward.3} parent=15 // pred_fallthru
        _
      // Predicated region
      $region57: #{model_forward.3} parent=15 // pred_check
        %p604 = pneg %p317
      $region58: #{model_forward.3} parent=15 // pred_check_branch
        %606 = sbr.rel (%p604) target = $region60
      $region59: #{model_forward.3} parent=15 // pred_region
        %p607 = scmp.lt.s32.totalorder %s30, 2
        %s608 = scalar_select %p607, %s30, 2
        %s609 = smul.addr %s608, 4
        %s610 = smul.addr %s609, 8
        %s611 = scalar_lea.vmem %s10, %s610
      $region60: #{model_forward.3} parent=15 // pred_fallthru
        _
      // Predicated region
      $region61: #{model_forward.3} parent=15 // pred_check
        %p612 = pneg %p343
      $region62: #{model_forward.3} parent=15 // pred_check_branch
        %614 = sbr.rel (%p612) target = $region64
      $region63: #{model_forward.3} parent=15 // pred_region
        %p615 = scmp.lt.s32.totalorder %s30, 2
        %s616 = scalar_select %p615, %s30, 2
        %s617 = smul.addr %s616, 4
        %s618 = smul.addr %s617, 8
        %s619 = scalar_lea.vmem %s11, %s618
      $region64: #{model_forward.3} parent=15 // pred_fallthru
        _
      // Predicated region
      $region65: #{model_forward.3} parent=15 // pred_check
        %p620 = pneg %p369
      $region66: #{model_forward.3} parent=15 // pred_check_branch
        %622 = sbr.rel (%p620) target = $region68
      $region67: #{model_forward.3} parent=15 // pred_region
        %p623 = scmp.lt.s32.totalorder %s30, 2
        %s624 = scalar_select %p623, %s30, 2
        %s625 = smul.addr %s624, 4
        %s626 = smul.addr %s625, 8
        %s627 = scalar_lea.vmem %s12, %s626
      $region68: #{model_forward.3} parent=15 // pred_fallthru
        _
      // Predicated region
      $region69: #{model_forward.3} parent=15 // pred_check
        %p628 = pneg %p395
      $region70: #{model_forward.3} parent=15 // pred_check_branch
        %630 = sbr.rel (%p628) target = $region72
      $region71: #{model_forward.3} parent=15 // pred_region
        %p631 = scmp.lt.s32.totalorder %s30, 2
        %s632 = scalar_select %p631, %s30, 2
        %s633 = smul.addr %s632, 4
        %s634 = smul.addr %s633, 8
        %s635 = scalar_lea.vmem %s13, %s634
      $region72: #{model_forward.3} parent=15 // pred_fallthru
        _
      // Predicated region
      $region73: #{model_forward.3} parent=15 // pred_check
        %p636 = pneg %p421
      $region74: #{model_forward.3} parent=15 // pred_check_branch
        %638 = sbr.rel (%p636) target = $region76
      $region75: #{model_forward.3} parent=15 // pred_region
        %p639 = scmp.lt.s32.totalorder %s30, 2
        %s640 = scalar_select %p639, %s30, 2
        %s641 = smul.addr %s640, 4
        %s642 = smul.addr %s641, 8
        %s643 = scalar_lea.vmem %s14, %s642
      $region76: #{model_forward.3} parent=15 // pred_fallthru
        _
      // Predicated region
      $region77: #{model_forward.3} parent=15 // pred_check
        %p644 = pneg %p447
      $region78: #{model_forward.3} parent=15 // pred_check_branch
        %646 = sbr.rel (%p644) target = $region80
      $region79: #{model_forward.3} parent=15 // pred_region
        %p647 = scmp.lt.s32.totalorder %s30, 2
        %s648 = scalar_select %p647, %s30, 2
        %s649 = scalar_lea.vmem %s15, %s648
      $region80: #{model_forward.3} parent=15 // pred_fallthru
        _
      // Predicated region
      $region81: #{model_forward.3} parent=15 // pred_check
        %p650 = pneg %p473
      $region82: #{model_forward.3} parent=15 // pred_check_branch
        %652 = sbr.rel (%p650) target = $region84
      $region83: #{model_forward.3} parent=15 // pred_region
        %p653 = scmp.lt.s32.totalorder %s30, 2
        %s654 = scalar_select %p653, %s30, 2
        %s655 = scalar_lea.vmem %s16, %s654
      $region84: #{model_forward.3} parent=15 // pred_fallthru
        _
    $region16: #{model_forward.3} parent=5 // pred_fallthru
      _
    %p656 = scmp.le.s32.totalorder 1, %s23
    %p657 = scmp.lt.s32.totalorder %s23, 7
    %p658 = pnand %p656, %p657
    %p659 = pneg %p658
    // Predicated region
    $region85: #{model_forward.3} parent=5 // pred_check
      _
    $region86: #{model_forward.3} parent=5 // pred_check_branch
      %661 = sbr.rel (%p658) target = $region88
    $region87: #{model_forward.3} parent=5 // pred_region
      %s662 = ssub.s32 %s23, 1
      %p663 = scmp.lt.s32.totalorder %s32, 2
      %s664 = scalar_select %p663, %s32, 2
      %p665 = scmp.lt.s32.totalorder %s33, 1
      %s666 = scalar_select %p665, %s33, 1
      %s667 = smul.addr %s666, 384
      %s668 = smul.addr %s664, 768
      %s669 = sadd.s32 %s667, %s668
      %s670 = smul.addr %s669, 8
      %s671 = scalar_lea.vmem %s0, %s670
      %p672 = pneg %p63
      %p673 = pneg %p60
      %p674 = scmp.lt.s32.totalorder %s32, 2
      %s675 = scalar_select %p674, %s32, 2
      %s676 = smul.addr %s675, 24
      %s677 = smul.addr %s676, 8
      %s678 = scalar_lea.vmem %s1, %s677
      %p679 = pneg %p89
      %p680 = pneg %p86
      %p681 = scmp.lt.s32.totalorder %s32, 2
      %s682 = scalar_select %p681, %s32, 2
      %s683 = smul.addr %s682, 4
      %s684 = smul.addr %s683, 8
      %s685 = scalar_lea.vmem %s2, %s684
      %p686 = pneg %p115
      %p687 = pneg %p112
      %p688 = scmp.lt.s32.totalorder %s32, 2
      %s689 = scalar_select %p688, %s32, 2
      %s690 = smul.addr %s689, 4
      %s691 = smul.addr %s690, 8
      %s692 = scalar_lea.vmem %s3, %s691
      %p693 = pneg %p141
      %p694 = pneg %p138
      %p695 = scmp.lt.s32.totalorder %s32, 2
      %s696 = scalar_select %p695, %s32, 2
      %s697 = smul.addr %s696, 8
      %s698 = scalar_lea.vmem %s4, %s697
      %p699 = pneg %p167
      %p700 = pneg %p164
      %p701 = scmp.lt.s32.totalorder %s32, 2
      %s702 = scalar_select %p701, %s32, 2
      %s703 = smul.addr %s702, 8
      %s704 = scalar_lea.vmem %s5, %s703
      %p705 = pneg %p193
      %p706 = pneg %p190
      %p707 = scmp.lt.s32.totalorder %s32, 2
      %s708 = scalar_select %p707, %s32, 2
      %s709 = smul.addr %s708, 8
      %s710 = scalar_lea.vmem %s6, %s709
      %p711 = pneg %p219
      %p712 = pneg %p216
      %p713 = scmp.lt.s32.totalorder %s32, 2
      %s714 = scalar_select %p713, %s32, 2
      %s715 = smul.addr %s714, 8
      %s716 = scalar_lea.vmem %s7, %s715
      %p717 = pneg %p245
      %p718 = pneg %p242
      %p719 = scmp.lt.s32.totalorder %s32, 2
      %s720 = scalar_select %p719, %s32, 2
      %s721 = scalar_lea.vmem %s8, %s720
      %p722 = pneg %p271
      %p723 = pneg %p268
      %p724 = scmp.lt.s32.totalorder %s32, 2
      %s725 = scalar_select %p724, %s32, 2
      %s726 = smul.addr %s725, 4
      %s727 = smul.addr %s726, 8
      %s728 = scalar_lea.vmem %s9, %s727
      %p729 = pneg %p297
      %p730 = pneg %p294
      %p731 = scmp.lt.s32.totalorder %s32, 2
      %s732 = scalar_select %p731, %s32, 2
      %s733 = smul.addr %s732, 4
      %s734 = smul.addr %s733, 8
      %s735 = scalar_lea.vmem %s10, %s734
      %p736 = pneg %p323
      %p737 = pneg %p320
      %p738 = scmp.lt.s32.totalorder %s32, 2
      %s739 = scalar_select %p738, %s32, 2
      %s740 = smul.addr %s739, 4
      %s741 = smul.addr %s740, 8
      %s742 = scalar_lea.vmem %s11, %s741
      %p743 = pneg %p349
      %p744 = pneg %p346
      %p745 = scmp.lt.s32.totalorder %s32, 2
      %s746 = scalar_select %p745, %s32, 2
      %s747 = smul.addr %s746, 4
      %s748 = smul.addr %s747, 8
      %s749 = scalar_lea.vmem %s12, %s748
      %p750 = pneg %p375
      %p751 = pneg %p372
      %p752 = scmp.lt.s32.totalorder %s32, 2
      %s753 = scalar_select %p752, %s32, 2
      %s754 = smul.addr %s753, 4
      %s755 = smul.addr %s754, 8
      %s756 = scalar_lea.vmem %s13, %s755
      %p757 = pneg %p401
      %p758 = pneg %p398
      %p759 = scmp.lt.s32.totalorder %s32, 2
      %s760 = scalar_select %p759, %s32, 2
      %s761 = smul.addr %s760, 4
      %s762 = smul.addr %s761, 8
      %s763 = scalar_lea.vmem %s14, %s762
      %p764 = pneg %p427
      %p765 = pneg %p424
      %p766 = scmp.lt.s32.totalorder %s32, 2
      %s767 = scalar_select %p766, %s32, 2
      %s768 = scalar_lea.vmem %s15, %s767
      %p769 = pneg %p453
      %p770 = pneg %p450
      %p771 = scmp.lt.s32.totalorder %s32, 2
      %s772 = scalar_select %p771, %s32, 2
      %s773 = scalar_lea.vmem %s16, %s772
      %p774 = pneg %p479
      %p775 = pneg %p476
      %p776 = pneg %p507
      %p777 = pneg %p504
      %p778 = scmp.lt.s32.totalorder %s32, 2
      %s779 = scalar_select %p778, %s32, 2
      %p780 = scmp.lt.s32.totalorder %s33, 1
      %s781 = scalar_select %p780, %s33, 1
      %s782 = smul.addr %s779, 2
      %s783 = sadd.s32 %s781, %s782
      %s784 = scalar_lea.vmem %s17, %s783
      %p785 = scmp.lt.s32.totalorder %s32, 2
      %s786 = scalar_select %p785, %s32, 2
      %p787 = scmp.lt.s32.totalorder %s33, 1
      %s788 = scalar_select %p787, %s33, 1
      %s789 = smul.addr %s788, 384
      %s790 = smul.addr %s786, 768
      %s791 = sadd.s32 %s789, %s790
      %s792 = smul.addr %s791, 8
      %s793 = scalar_lea.vmem %s0, %s792
      %p794 = scmp.lt.s32.totalorder %s32, 2
      %s795 = scalar_select %p794, %s32, 2
      %s796 = smul.addr %s795, 24
      %s797 = smul.addr %s796, 8
      %s798 = scalar_lea.vmem %s1, %s797
      %p799 = scmp.lt.s32.totalorder %s32, 2
      %s800 = scalar_select %p799, %s32, 2
      %s801 = smul.addr %s800, 4
      %s802 = smul.addr %s801, 8
      %s803 = scalar_lea.vmem %s2, %s802
      %p804 = scmp.lt.s32.totalorder %s32, 2
      %s805 = scalar_select %p804, %s32, 2
      %s806 = smul.addr %s805, 4
      %s807 = smul.addr %s806, 8
      %s808 = scalar_lea.vmem %s3, %s807
      %p809 = scmp.lt.s32.totalorder %s32, 2
      %s810 = scalar_select %p809, %s32, 2
      %s811 = smul.addr %s810, 8
      %s812 = scalar_lea.vmem %s4, %s811
      %p813 = scmp.lt.s32.totalorder %s32, 2
      %s814 = scalar_select %p813, %s32, 2
      %s815 = smul.addr %s814, 8
      %s816 = scalar_lea.vmem %s5, %s815
      %p817 = scmp.lt.s32.totalorder %s32, 2
      %s818 = scalar_select %p817, %s32, 2
      %s819 = smul.addr %s818, 8
      %s820 = scalar_lea.vmem %s6, %s819
      %p821 = scmp.lt.s32.totalorder %s32, 2
      %s822 = scalar_select %p821, %s32, 2
      %s823 = smul.addr %s822, 8
      %s824 = scalar_lea.vmem %s7, %s823
      %p825 = scmp.lt.s32.totalorder %s32, 2
      %s826 = scalar_select %p825, %s32, 2
      %s827 = scalar_lea.vmem %s8, %s826
      %p828 = scmp.lt.s32.totalorder %s32, 2
      %s829 = scalar_select %p828, %s32, 2
      %s830 = smul.addr %s829, 4
      %s831 = smul.addr %s830, 8
      %s832 = scalar_lea.vmem %s9, %s831
      %p833 = scmp.lt.s32.totalorder %s32, 2
      %s834 = scalar_select %p833, %s32, 2
      %s835 = smul.addr %s834, 4
      %s836 = smul.addr %s835, 8
      %s837 = scalar_lea.vmem %s10, %s836
      %p838 = scmp.lt.s32.totalorder %s32, 2
      %s839 = scalar_select %p838, %s32, 2
      %s840 = smul.addr %s839, 4
      %s841 = smul.addr %s840, 8
      %s842 = scalar_lea.vmem %s11, %s841
      %p843 = scmp.lt.s32.totalorder %s32, 2
      %s844 = scalar_select %p843, %s32, 2
      %s845 = smul.addr %s844, 4
      %s846 = smul.addr %s845, 8
      %s847 = scalar_lea.vmem %s12, %s846
      %p848 = scmp.lt.s32.totalorder %s32, 2
      %s849 = scalar_select %p848, %s32, 2
      %s850 = smul.addr %s849, 4
      %s851 = smul.addr %s850, 8
      %s852 = scalar_lea.vmem %s13, %s851
      %p853 = scmp.lt.s32.totalorder %s32, 2
      %s854 = scalar_select %p853, %s32, 2
      %s855 = smul.addr %s854, 4
      %s856 = smul.addr %s855, 8
      %s857 = scalar_lea.vmem %s14, %s856
      %p858 = scmp.lt.s32.totalorder %s32, 2
      %s859 = scalar_select %p858, %s32, 2
      %s860 = scalar_lea.vmem %s15, %s859
      %p861 = scmp.lt.s32.totalorder %s32, 2
      %s862 = scalar_select %p861, %s32, 2
      %s863 = scalar_lea.vmem %s16, %s862
      %p864 = scmp.lt.s32.totalorder %s32, 2
      %s865 = scalar_select %p864, %s32, 2
      %p866 = scmp.lt.s32.totalorder %s33, 1
      %s867 = scalar_select %p866, %s33, 1
      %s868 = smul.addr %s865, 2
      %s869 = sadd.s32 %s867, %s868
      %s870 = scalar_lea.vmem %s17, %s869
      %v871 = vld [vmem:[%s798] sm:$0xff]
      %v872 = vld [vmem:[%s798 + $0x8] sm:$0xff]
      %v873 = vld [vmem:[%s798 + $0x10] sm:$0xff]
      %v874 = vld [vmem:[%s798 + $0x18] sm:$0xff]
      %v875 = vld [vmem:[%s798 + $0x20] sm:$0xff]
      %v876 = vld [vmem:[%s798 + $0x28] sm:$0xff]
      %v877 = vld [vmem:[%s798 + $0x30] sm:$0x3f]
      %v878 = vld [vmem:[%s798 + $0x38] sm:$0x3f]
      %v879 = vld [vmem:[%s793] sm:$0xff]
      %v880 = vld [vmem:[%s793 + $0x8] sm:$0xff]
      %v881 = vld [vmem:[%s793 + $0x10] sm:$0xff]
      %v882 = vld [vmem:[%s793 + $0x18] sm:$0xff]
      %v883 = vld [vmem:[%s793 + $0x20] sm:$0xff]
      %v884 = vld [vmem:[%s793 + $0x28] sm:$0xff]
      %v885 = vld [vmem:[%s793 + $0x30] sm:$0xff]
      %v886 = vld [vmem:[%s793 + $0x38] sm:$0xff]
      %v887 = vld [vmem:[%s793 + $0x40] sm:$0xff]
      %v888 = vld [vmem:[%s793 + $0x48] sm:$0xff]
      %v889 = vld [vmem:[%s793 + $0x50] sm:$0xff]
      %v890 = vld [vmem:[%s793 + $0x58] sm:$0xff]
      %v891 = vld [vmem:[%s793 + $0x60] sm:$0xff]
      %v892 = vld [vmem:[%s793 + $0x68] sm:$0xff]
      %v893 = vld [vmem:[%s793 + $0x70] sm:$0xff]
      %v894 = vld [vmem:[%s793 + $0x78] sm:$0xff]
      %v895 = vld [vmem:[%s793 + $0x80] sm:$0xff]
      %v896 = vld [vmem:[%s793 + $0x88] sm:$0xff]
      %v897 = vld [vmem:[%s793 + $0x90] sm:$0xff]
      %v898 = vld [vmem:[%s793 + $0x98] sm:$0xff]
      %v899 = vld [vmem:[%s793 + $0xa0] sm:$0xff]
      %v900 = vld [vmem:[%s793 + $0xa8] sm:$0xff]
      %v901 = vld [vmem:[%s793 + $0xb0] sm:$0xff]
      %v902 = vld [vmem:[%s793 + $0xb8] sm:$0xff]
      %v903 = vld [vmem:[%s793 + $0xc0] sm:$0xff]
      %v904 = vld [vmem:[%s793 + $0xc8] sm:$0xff]
      %v905 = vld [vmem:[%s793 + $0xd0] sm:$0xff]
      %v906 = vld [vmem:[%s793 + $0xd8] sm:$0xff]
      %v907 = vld [vmem:[%s793 + $0xe0] sm:$0xff]
      %v908 = vld [vmem:[%s793 + $0xe8] sm:$0xff]
      %v909 = vld [vmem:[%s793 + $0xf0] sm:$0xff]
      %v910 = vld [vmem:[%s793 + $0xf8] sm:$0x3]
      %s911 = scalar_lea.vmem %s798, 64
      %v912 = vld [vmem:[%s911] sm:$0xff]
      %v913 = vld [vmem:[%s911 + $0x8] sm:$0xff]
      %v914 = vld [vmem:[%s911 + $0x10] sm:$0xff]
      %v915 = vld [vmem:[%s911 + $0x18] sm:$0xff]
      %v916 = vld [vmem:[%s911 + $0x20] sm:$0xff]
      %v917 = vld [vmem:[%s911 + $0x28] sm:$0xff]
      %v918 = vld [vmem:[%s911 + $0x30] sm:$0x3f]
      %v919 = vld [vmem:[%s911 + $0x38] sm:$0x3f]
      %s920 = scalar_lea.vmem %s793, 256
      %v921 = vld [vmem:[%s920] sm:$0xff]
      %v922 = vld [vmem:[%s920 + $0x8] sm:$0xff]
      %v923 = vld [vmem:[%s920 + $0x10] sm:$0xff]
      %v924 = vld [vmem:[%s920 + $0x18] sm:$0xff]
      %v925 = vld [vmem:[%s920 + $0x20] sm:$0xff]
      %v926 = vld [vmem:[%s920 + $0x28] sm:$0xff]
      %v927 = vld [vmem:[%s920 + $0x30] sm:$0xff]
      %v928 = vld [vmem:[%s920 + $0x38] sm:$0xff]
      %v929 = vld [vmem:[%s920 + $0x40] sm:$0xff]
      %v930 = vld [vmem:[%s920 + $0x48] sm:$0xff]
      %v931 = vld [vmem:[%s920 + $0x50] sm:$0xff]
      %v932 = vld [vmem:[%s920 + $0x58] sm:$0xff]
      %v933 = vld [vmem:[%s920 + $0x60] sm:$0xff]
      %v934 = vld [vmem:[%s920 + $0x68] sm:$0xff]
      %v935 = vld [vmem:[%s920 + $0x70] sm:$0xff]
      %v936 = vld [vmem:[%s920 + $0x78] sm:$0xff]
      %v937 = vld [vmem:[%s920 + $0x80] sm:$0xff]
      %v938 = vld [vmem:[%s920 + $0x88] sm:$0xff]
      %v939 = vld [vmem:[%s920 + $0x90] sm:$0xff]
      %v940 = vld [vmem:[%s920 + $0x98] sm:$0xff]
      %v941 = vld [vmem:[%s920 + $0xa0] sm:$0xff]
      %v942 = vld [vmem:[%s920 + $0xa8] sm:$0xff]
      %v943 = vld [vmem:[%s920 + $0xb0] sm:$0xff]
      %v944 = vld [vmem:[%s920 + $0xb8] sm:$0xff]
      %v945 = vld [vmem:[%s920 + $0xc0] sm:$0xff]
      %v946 = vld [vmem:[%s920 + $0xc8] sm:$0xff]
      %v947 = vld [vmem:[%s920 + $0xd0] sm:$0xff]
      %v948 = vld [vmem:[%s920 + $0xd8] sm:$0xff]
      %v949 = vld [vmem:[%s920 + $0xe0] sm:$0xff]
      %v950 = vld [vmem:[%s920 + $0xe8] sm:$0xff]
      %v951 = vld [vmem:[%s920 + $0xf0] sm:$0xff]
      %v952 = vld [vmem:[%s920 + $0xf8] sm:$0x3]
      %vm953 = vcmask 998400
      %v955 = vsel %vm953, %v913, 0
      %v958 = vsel %vm953, %v915, 0
      %v961 = vsel %vm953, %v917, 0
      %v964 = vsel %vm953, %v919, 0
      %vm966 = vcmask 1041408
      %v968 = vsel %vm966, %v952, 0
      %970 = vmatpush.msra.mxu0 %v936
      %971 = vmatpush.msra.mxu0 %v935
      %972 = vmatpush.msra.mxu0 %v934
      %973 = vmatpush.msra.mxu0 %v933
      %974 = vmatpush.msra.mxu0 %v932
      %975 = vmatpush.msra.mxu0 %v931
      %976 = vmatpush.msra.mxu0 %v930
      %977 = vmatpush.msra.mxu0 %v929
      %978 = vmatpush.msra.mxu0 %v928
      %979 = vmatpush.msra.mxu0 %v927
      %980 = vmatpush.msra.mxu0 %v926
      %981 = vmatpush.msra.mxu0 %v925
      %982 = vmatpush.msra.mxu0 %v924
      %983 = vmatpush.msra.mxu0 %v923
      %984 = vmatpush.msra.mxu0 %v922
      %985 = vmatpush.msra.mxu0 %v921
      %986 = vmatmul.f32.gmra.mxu0 %v912
      %v987 = vpop.f32.mrf.mxu0
      %v988 = vadd.f32 0.0, %v987
      %989 = vmatmul.f32.gmra.mxu0 %v914
      %v990 = vpop.f32.mrf.mxu0
      %v991 = vadd.f32 0.0, %v990
      %992 = vmatmul.f32.gmra.mxu0 %v916
      %v993 = vpop.f32.mrf.mxu0
      %v994 = vadd.f32 0.0, %v993
      %995 = vmatmul.f32.gmra.mxu0 %v918
      %v996 = vpop.f32.mrf.mxu0
      %v997 = vadd.f32 0.0, %v996
      %998 = vdwg.mxu0
      %999 = vmatpush.msra.mxu0 %v968
      %1000 = vmatpush.msra.mxu0 %v951
      %1001 = vmatpush.msra.mxu0 %v950
      %1002 = vmatpush.msra.mxu0 %v949
      %1003 = vmatpush.msra.mxu0 %v948
      %1004 = vmatpush.msra.mxu0 %v947
      %1005 = vmatpush.msra.mxu0 %v946
      %1006 = vmatpush.msra.mxu0 %v945
      %1007 = vmatpush.msra.mxu0 %v944
      %1008 = vmatpush.msra.mxu0 %v943
      %1009 = vmatpush.msra.mxu0 %v942
      %1010 = vmatpush.msra.mxu0 %v941
      %1011 = vmatpush.msra.mxu0 %v940
      %1012 = vmatpush.msra.mxu0 %v939
      %1013 = vmatpush.msra.mxu0 %v938
      %1014 = vmatpush.msra.mxu0 %v937
      %1015 = vmatmul.f32.gmra.mxu0 %v955
      %v1016 = vpop.f32.mrf.mxu0
      %v1017 = vadd.f32 %v988, %v1016
      %1018 = vmatmul.f32.gmra.mxu0 %v958
      %v1019 = vpop.f32.mrf.mxu0
      %v1020 = vadd.f32 %v991, %v1019
      %1021 = vmatmul.f32.gmra.mxu0 %v961
      %v1022 = vpop.f32.mrf.mxu0
      %v1023 = vadd.f32 %v994, %v1022
      %1024 = vmatmul.f32.gmra.mxu0 %v964
      %v1025 = vpop.f32.mrf.mxu0
      %v1026 = vadd.f32 %v997, %v1025
      %1027 = vdwg.mxu0
      %v1029 = vsel %vm953, %v872, 0
      %v1032 = vsel %vm953, %v874, 0
      %v1035 = vsel %vm953, %v876, 0
      %v1038 = vsel %vm953, %v878, 0
      %v1041 = vsel %vm966, %v910, 0
      %1043 = vmatpush.msra.mxu0 %v894
      %1044 = vmatpush.msra.mxu0 %v893
      %1045 = vmatpush.msra.mxu0 %v892
      %1046 = vmatpush.msra.mxu0 %v891
      %1047 = vmatpush.msra.mxu0 %v890
      %1048 = vmatpush.msra.mxu0 %v889
      %1049 = vmatpush.msra.mxu0 %v888
      %1050 = vmatpush.msra.mxu0 %v887
      %1051 = vmatpush.msra.mxu0 %v886
      %1052 = vmatpush.msra.mxu0 %v885
      %1053 = vmatpush.msra.mxu0 %v884
      %1054 = vmatpush.msra.mxu0 %v883
      %1055 = vmatpush.msra.mxu0 %v882
      %1056 = vmatpush.msra.mxu0 %v881
      %1057 = vmatpush.msra.mxu0 %v880
      %1058 = vmatpush.msra.mxu0 %v879
      %1059 = vmatmul.f32.gmra.mxu0 %v871
      %v1060 = vpop.f32.mrf.mxu0
      %v1061 = vadd.f32 %v1017, %v1060
      %1062 = vmatmul.f32.gmra.mxu0 %v873
      %v1063 = vpop.f32.mrf.mxu0
      %v1064 = vadd.f32 %v1020, %v1063
      %1065 = vmatmul.f32.gmra.mxu0 %v875
      %v1066 = vpop.f32.mrf.mxu0
      %v1067 = vadd.f32 %v1023, %v1066
      %1068 = vmatmul.f32.gmra.mxu0 %v877
      %v1069 = vpop.f32.mrf.mxu0
      %v1070 = vadd.f32 %v1026, %v1069
      %1071 = vdwg.mxu0
      %1072 = vmatpush.msra.mxu0 %v1041
      %1073 = vmatpush.msra.mxu0 %v909
      %1074 = vmatpush.msra.mxu0 %v908
      %1075 = vmatpush.msra.mxu0 %v907
      %1076 = vmatpush.msra.mxu0 %v906
      %1077 = vmatpush.msra.mxu0 %v905
      %1078 = vmatpush.msra.mxu0 %v904
      %1079 = vmatpush.msra.mxu0 %v903
      %1080 = vmatpush.msra.mxu0 %v902
      %1081 = vmatpush.msra.mxu0 %v901
      %1082 = vmatpush.msra.mxu0 %v900
      %1083 = vmatpush.msra.mxu0 %v899
      %1084 = vmatpush.msra.mxu0 %v898
      %1085 = vmatpush.msra.mxu0 %v897
      %1086 = vmatpush.msra.mxu0 %v896
      %1087 = vmatpush.msra.mxu0 %v895
      %1088 = vmatmul.f32.gmra.mxu0 %v1029
      %v1089 = vpop.f32.mrf.mxu0
      %v1090 = vadd.f32 %v1061, %v1089
      %1091 = vmatmul.f32.gmra.mxu0 %v1032
      %v1092 = vpop.f32.mrf.mxu0
      %v1093 = vadd.f32 %v1064, %v1092
      %1094 = vmatmul.f32.gmra.mxu0 %v1035
      %v1095 = vpop.f32.mrf.mxu0
      %v1096 = vadd.f32 %v1067, %v1095
      %1097 = vmatmul.f32.gmra.mxu0 %v1038
      %v1098 = vpop.f32.mrf.mxu0
      %v1099 = vadd.f32 %v1070, %v1098
      %1100 = vdwg.mxu0
      %s1101 = scalar_lea.vmem %s798, 128
      %v1102 = vld [vmem:[%s1101] sm:$0xff]
      %v1103 = vld [vmem:[%s1101 + $0x8] sm:$0xff]
      %v1104 = vld [vmem:[%s1101 + $0x10] sm:$0xff]
      %v1105 = vld [vmem:[%s1101 + $0x18] sm:$0xff]
      %v1106 = vld [vmem:[%s1101 + $0x20] sm:$0xff]
      %v1107 = vld [vmem:[%s1101 + $0x28] sm:$0xff]
      %v1108 = vld [vmem:[%s1101 + $0x30] sm:$0x3f]
      %v1109 = vld [vmem:[%s1101 + $0x38] sm:$0x3f]
      %s1110 = scalar_lea.vmem %s793, 512
      %v1111 = vld [vmem:[%s1110] sm:$0xff]
      %v1112 = vld [vmem:[%s1110 + $0x8] sm:$0xff]
      %v1113 = vld [vmem:[%s1110 + $0x10] sm:$0xff]
      %v1114 = vld [vmem:[%s1110 + $0x18] sm:$0xff]
      %v1115 = vld [vmem:[%s1110 + $0x20] sm:$0xff]
      %v1116 = vld [vmem:[%s1110 + $0x28] sm:$0xff]
      %v1117 = vld [vmem:[%s1110 + $0x30] sm:$0xff]
      %v1118 = vld [vmem:[%s1110 + $0x38] sm:$0xff]
      %v1119 = vld [vmem:[%s1110 + $0x40] sm:$0xff]
      %v1120 = vld [vmem:[%s1110 + $0x48] sm:$0xff]
      %v1121 = vld [vmem:[%s1110 + $0x50] sm:$0xff]
      %v1122 = vld [vmem:[%s1110 + $0x58] sm:$0xff]
      %v1123 = vld [vmem:[%s1110 + $0x60] sm:$0xff]
      %v1124 = vld [vmem:[%s1110 + $0x68] sm:$0xff]
      %v1125 = vld [vmem:[%s1110 + $0x70] sm:$0xff]
      %v1126 = vld [vmem:[%s1110 + $0x78] sm:$0xff]
      %v1127 = vld [vmem:[%s1110 + $0x80] sm:$0xff]
      %v1128 = vld [vmem:[%s1110 + $0x88] sm:$0xff]
      %v1129 = vld [vmem:[%s1110 + $0x90] sm:$0xff]
      %v1130 = vld [vmem:[%s1110 + $0x98] sm:$0xff]
      %v1131 = vld [vmem:[%s1110 + $0xa0] sm:$0xff]
      %v1132 = vld [vmem:[%s1110 + $0xa8] sm:$0xff]
      %v1133 = vld [vmem:[%s1110 + $0xb0] sm:$0xff]
      %v1134 = vld [vmem:[%s1110 + $0xb8] sm:$0xff]
      %v1135 = vld [vmem:[%s1110 + $0xc0] sm:$0xff]
      %v1136 = vld [vmem:[%s1110 + $0xc8] sm:$0xff]
      %v1137 = vld [vmem:[%s1110 + $0xd0] sm:$0xff]
      %v1138 = vld [vmem:[%s1110 + $0xd8] sm:$0xff]
      %v1139 = vld [vmem:[%s1110 + $0xe0] sm:$0xff]
      %v1140 = vld [vmem:[%s1110 + $0xe8] sm:$0xff]
      %v1141 = vld [vmem:[%s1110 + $0xf0] sm:$0xff]
      %v1142 = vld [vmem:[%s1110 + $0xf8] sm:$0x3]
      %v1144 = vsel %vm953, %v1103, 0
      %v1147 = vsel %vm953, %v1105, 0
      %v1150 = vsel %vm953, %v1107, 0
      %v1153 = vsel %vm953, %v1109, 0
      %v1156 = vsel %vm966, %v1142, 0
      %1158 = vmatpush.msra.mxu0 %v1126
      %1159 = vmatpush.msra.mxu0 %v1125
      %1160 = vmatpush.msra.mxu0 %v1124
      %1161 = vmatpush.msra.mxu0 %v1123
      %1162 = vmatpush.msra.mxu0 %v1122
      %1163 = vmatpush.msra.mxu0 %v1121
      %1164 = vmatpush.msra.mxu0 %v1120
      %1165 = vmatpush.msra.mxu0 %v1119
      %1166 = vmatpush.msra.mxu0 %v1118
      %1167 = vmatpush.msra.mxu0 %v1117
      %1168 = vmatpush.msra.mxu0 %v1116
      %1169 = vmatpush.msra.mxu0 %v1115
      %1170 = vmatpush.msra.mxu0 %v1114
      %1171 = vmatpush.msra.mxu0 %v1113
      %1172 = vmatpush.msra.mxu0 %v1112
      %1173 = vmatpush.msra.mxu0 %v1111
      %1174 = vmatmul.f32.gmra.mxu0 %v1102
      %v1175 = vpop.f32.mrf.mxu0
      %v1176 = vadd.f32 0.0, %v1175
      %1177 = vmatmul.f32.gmra.mxu0 %v1104
      %v1178 = vpop.f32.mrf.mxu0
      %v1179 = vadd.f32 0.0, %v1178
      %1180 = vmatmul.f32.gmra.mxu0 %v1106
      %v1181 = vpop.f32.mrf.mxu0
      %v1182 = vadd.f32 0.0, %v1181
      %1183 = vmatmul.f32.gmra.mxu0 %v1108
      %v1184 = vpop.f32.mrf.mxu0
      %v1185 = vadd.f32 0.0, %v1184
      %1186 = vdwg.mxu0
      %1187 = vmatpush.msra.mxu0 %v1156
      %1188 = vmatpush.msra.mxu0 %v1141
      %1189 = vmatpush.msra.mxu0 %v1140
      %1190 = vmatpush.msra.mxu0 %v1139
      %1191 = vmatpush.msra.mxu0 %v1138
      %1192 = vmatpush.msra.mxu0 %v1137
      %1193 = vmatpush.msra.mxu0 %v1136
      %1194 = vmatpush.msra.mxu0 %v1135
      %1195 = vmatpush.msra.mxu0 %v1134
      %1196 = vmatpush.msra.mxu0 %v1133
      %1197 = vmatpush.msra.mxu0 %v1132
      %1198 = vmatpush.msra.mxu0 %v1131
      %1199 = vmatpush.msra.mxu0 %v1130
      %1200 = vmatpush.msra.mxu0 %v1129
      %1201 = vmatpush.msra.mxu0 %v1128
      %1202 = vmatpush.msra.mxu0 %v1127
      %1203 = vmatmul.f32.gmra.mxu0 %v1144
      %v1204 = vpop.f32.mrf.mxu0
      %v1205 = vadd.f32 %v1176, %v1204
      %1206 = vmatmul.f32.gmra.mxu0 %v1147
      %v1207 = vpop.f32.mrf.mxu0
      %v1208 = vadd.f32 %v1179, %v1207
      %1209 = vmatmul.f32.gmra.mxu0 %v1150
      %v1210 = vpop.f32.mrf.mxu0
      %v1211 = vadd.f32 %v1182, %v1210
      %1212 = vmatmul.f32.gmra.mxu0 %v1153
      %v1213 = vpop.f32.mrf.mxu0
      %v1214 = vadd.f32 %v1185, %v1213
      %1215 = vdwg.mxu0
      %v1216 = vadd.f32 %v1090, %v1205
      %v1217 = vadd.f32 %v1093, %v1208
      %v1218 = vadd.f32 %v1096, %v1211
      %v1219 = vadd.f32 %v1099, %v1214
      %s1220 = scalar_lea.vmem %s793, 768
      %v1221 = vld [vmem:[%s1220] sm:$0xff]
      %v1222 = vld [vmem:[%s1220 + $0x8] sm:$0xff]
      %v1223 = vld [vmem:[%s1220 + $0x10] sm:$0xff]
      %v1224 = vld [vmem:[%s1220 + $0x18] sm:$0xff]
      %v1225 = vld [vmem:[%s1220 + $0x20] sm:$0xff]
      %v1226 = vld [vmem:[%s1220 + $0x28] sm:$0xff]
      %v1227 = vld [vmem:[%s1220 + $0x30] sm:$0xff]
      %v1228 = vld [vmem:[%s1220 + $0x38] sm:$0xff]
      %v1229 = vld [vmem:[%s1220 + $0x40] sm:$0xff]
      %v1230 = vld [vmem:[%s1220 + $0x48] sm:$0xff]
      %v1231 = vld [vmem:[%s1220 + $0x50] sm:$0xff]
      %v1232 = vld [vmem:[%s1220 + $0x58] sm:$0xff]
      %v1233 = vld [vmem:[%s1220 + $0x60] sm:$0xff]
      %v1234 = vld [vmem:[%s1220 + $0x68] sm:$0xff]
      %v1235 = vld [vmem:[%s1220 + $0x70] sm:$0xff]
      %v1236 = vld [vmem:[%s1220 + $0x78] sm:$0xff]
      %v1237 = vld [vmem:[%s1220 + $0x80] sm:$0xff]
      %v1238 = vld [vmem:[%s1220 + $0x88] sm:$0xff]
      %v1239 = vld [vmem:[%s1220 + $0x90] sm:$0xff]
      %v1240 = vld [vmem:[%s1220 + $0x98] sm:$0xff]
      %v1241 = vld [vmem:[%s1220 + $0xa0] sm:$0xff]
      %v1242 = vld [vmem:[%s1220 + $0xa8] sm:$0xff]
      %v1243 = vld [vmem:[%s1220 + $0xb0] sm:$0xff]
      %v1244 = vld [vmem:[%s1220 + $0xb8] sm:$0xff]
      %v1245 = vld [vmem:[%s1220 + $0xc0] sm:$0xff]
      %v1246 = vld [vmem:[%s1220 + $0xc8] sm:$0xff]
      %v1247 = vld [vmem:[%s1220 + $0xd0] sm:$0xff]
      %v1248 = vld [vmem:[%s1220 + $0xd8] sm:$0xff]
      %v1249 = vld [vmem:[%s1220 + $0xe0] sm:$0xff]
      %v1250 = vld [vmem:[%s1220 + $0xe8] sm:$0xff]
      %v1251 = vld [vmem:[%s1220 + $0xf0] sm:$0xff]
      %v1252 = vld [vmem:[%s1220 + $0xf8] sm:$0x3]
      %s1253 = scalar_lea.vmem %s793, 1024
      %v1254 = vld [vmem:[%s1253] sm:$0xff]
      %v1255 = vld [vmem:[%s1253 + $0x8] sm:$0xff]
      %v1256 = vld [vmem:[%s1253 + $0x10] sm:$0xff]
      %v1257 = vld [vmem:[%s1253 + $0x18] sm:$0xff]
      %v1258 = vld [vmem:[%s1253 + $0x20] sm:$0xff]
      %v1259 = vld [vmem:[%s1253 + $0x28] sm:$0xff]
      %v1260 = vld [vmem:[%s1253 + $0x30] sm:$0xff]
      %v1261 = vld [vmem:[%s1253 + $0x38] sm:$0xff]
      %v1262 = vld [vmem:[%s1253 + $0x40] sm:$0xff]
      %v1263 = vld [vmem:[%s1253 + $0x48] sm:$0xff]
      %v1264 = vld [vmem:[%s1253 + $0x50] sm:$0xff]
      %v1265 = vld [vmem:[%s1253 + $0x58] sm:$0xff]
      %v1266 = vld [vmem:[%s1253 + $0x60] sm:$0xff]
      %v1267 = vld [vmem:[%s1253 + $0x68] sm:$0xff]
      %v1268 = vld [vmem:[%s1253 + $0x70] sm:$0xff]
      %v1269 = vld [vmem:[%s1253 + $0x78] sm:$0xff]
      %v1270 = vld [vmem:[%s1253 + $0x80] sm:$0xff]
      %v1271 = vld [vmem:[%s1253 + $0x88] sm:$0xff]
      %v1272 = vld [vmem:[%s1253 + $0x90] sm:$0xff]
      %v1273 = vld [vmem:[%s1253 + $0x98] sm:$0xff]
      %v1274 = vld [vmem:[%s1253 + $0xa0] sm:$0xff]
      %v1275 = vld [vmem:[%s1253 + $0xa8] sm:$0xff]
      %v1276 = vld [vmem:[%s1253 + $0xb0] sm:$0xff]
      %v1277 = vld [vmem:[%s1253 + $0xb8] sm:$0xff]
      %v1278 = vld [vmem:[%s1253 + $0xc0] sm:$0xff]
      %v1279 = vld [vmem:[%s1253 + $0xc8] sm:$0xff]
      %v1280 = vld [vmem:[%s1253 + $0xd0] sm:$0xff]
      %v1281 = vld [vmem:[%s1253 + $0xd8] sm:$0xff]
      %v1282 = vld [vmem:[%s1253 + $0xe0] sm:$0xff]
      %v1283 = vld [vmem:[%s1253 + $0xe8] sm:$0xff]
      %v1284 = vld [vmem:[%s1253 + $0xf0] sm:$0xff]
      %v1285 = vld [vmem:[%s1253 + $0xf8] sm:$0x3]
      %v1287 = vsel %vm966, %v1285, 0
      %1289 = vmatpush.msra.mxu0 %v1269
      %1290 = vmatpush.msra.mxu0 %v1268
      %1291 = vmatpush.msra.mxu0 %v1267
      %1292 = vmatpush.msra.mxu0 %v1266
      %1293 = vmatpush.msra.mxu0 %v1265
      %1294 = vmatpush.msra.mxu0 %v1264
      %1295 = vmatpush.msra.mxu0 %v1263
      %1296 = vmatpush.msra.mxu0 %v1262
      %1297 = vmatpush.msra.mxu0 %v1261
      %1298 = vmatpush.msra.mxu0 %v1260
      %1299 = vmatpush.msra.mxu0 %v1259
      %1300 = vmatpush.msra.mxu0 %v1258
      %1301 = vmatpush.msra.mxu0 %v1257
      %1302 = vmatpush.msra.mxu0 %v1256
      %1303 = vmatpush.msra.mxu0 %v1255
      %1304 = vmatpush.msra.mxu0 %v1254
      %1305 = vmatmul.f32.gmra.mxu0 %v912
      %v1306 = vpop.f32.mrf.mxu0
      %v1307 = vadd.f32 0.0, %v1306
      %1308 = vmatmul.f32.gmra.mxu0 %v914
      %v1309 = vpop.f32.mrf.mxu0
      %v1310 = vadd.f32 0.0, %v1309
      %1311 = vmatmul.f32.gmra.mxu0 %v916
      %v1312 = vpop.f32.mrf.mxu0
      %v1313 = vadd.f32 0.0, %v1312
      %1314 = vmatmul.f32.gmra.mxu0 %v918
      %v1315 = vpop.f32.mrf.mxu0
      %v1316 = vadd.f32 0.0, %v1315
      %1317 = vdwg.mxu0
      %1318 = vmatpush.msra.mxu0 %v1287
      %1319 = vmatpush.msra.mxu0 %v1284
      %1320 = vmatpush.msra.mxu0 %v1283
      %1321 = vmatpush.msra.mxu0 %v1282
      %1322 = vmatpush.msra.mxu0 %v1281
      %1323 = vmatpush.msra.mxu0 %v1280
      %1324 = vmatpush.msra.mxu0 %v1279
      %1325 = vmatpush.msra.mxu0 %v1278
      %1326 = vmatpush.msra.mxu0 %v1277
      %1327 = vmatpush.msra.mxu0 %v1276
      %1328 = vmatpush.msra.mxu0 %v1275
      %1329 = vmatpush.msra.mxu0 %v1274
      %1330 = vmatpush.msra.mxu0 %v1273
      %1331 = vmatpush.msra.mxu0 %v1272
      %1332 = vmatpush.msra.mxu0 %v1271
      %1333 = vmatpush.msra.mxu0 %v1270
      %1334 = vmatmul.f32.gmra.mxu0 %v955
      %v1335 = vpop.f32.mrf.mxu0
      %v1336 = vadd.f32 %v1307, %v1335
      %1337 = vmatmul.f32.gmra.mxu0 %v958
      %v1338 = vpop.f32.mrf.mxu0
      %v1339 = vadd.f32 %v1310, %v1338
      %1340 = vmatmul.f32.gmra.mxu0 %v961
      %v1341 = vpop.f32.mrf.mxu0
      %v1342 = vadd.f32 %v1313, %v1341
      %1343 = vmatmul.f32.gmra.mxu0 %v964
      %v1344 = vpop.f32.mrf.mxu0
      %v1345 = vadd.f32 %v1316, %v1344
      %1346 = vdwg.mxu0
      %v1348 = vsel %vm966, %v1252, 0
      %1350 = vmatpush.msra.mxu0 %v1236
      %1351 = vmatpush.msra.mxu0 %v1235
      %1352 = vmatpush.msra.mxu0 %v1234
      %1353 = vmatpush.msra.mxu0 %v1233
      %1354 = vmatpush.msra.mxu0 %v1232
      %1355 = vmatpush.msra.mxu0 %v1231
      %1356 = vmatpush.msra.mxu0 %v1230
      %1357 = vmatpush.msra.mxu0 %v1229
      %1358 = vmatpush.msra.mxu0 %v1228
      %1359 = vmatpush.msra.mxu0 %v1227
      %1360 = vmatpush.msra.mxu0 %v1226
      %1361 = vmatpush.msra.mxu0 %v1225
      %1362 = vmatpush.msra.mxu0 %v1224
      %1363 = vmatpush.msra.mxu0 %v1223
      %1364 = vmatpush.msra.mxu0 %v1222
      %1365 = vmatpush.msra.mxu0 %v1221
      %1366 = vmatmul.f32.gmra.mxu0 %v871
      %v1367 = vpop.f32.mrf.mxu0
      %v1368 = vadd.f32 %v1336, %v1367
      %1369 = vmatmul.f32.gmra.mxu0 %v873
      %v1370 = vpop.f32.mrf.mxu0
      %v1371 = vadd.f32 %v1339, %v1370
      %1372 = vmatmul.f32.gmra.mxu0 %v875
      %v1373 = vpop.f32.mrf.mxu0
      %v1374 = vadd.f32 %v1342, %v1373
      %1375 = vmatmul.f32.gmra.mxu0 %v877
      %v1376 = vpop.f32.mrf.mxu0
      %v1377 = vadd.f32 %v1345, %v1376
      %1378 = vdwg.mxu0
      %1379 = vmatpush.msra.mxu0 %v1348
      %1380 = vmatpush.msra.mxu0 %v1251
      %1381 = vmatpush.msra.mxu0 %v1250
      %1382 = vmatpush.msra.mxu0 %v1249
      %1383 = vmatpush.msra.mxu0 %v1248
      %1384 = vmatpush.msra.mxu0 %v1247
      %1385 = vmatpush.msra.mxu0 %v1246
      %1386 = vmatpush.msra.mxu0 %v1245
      %1387 = vmatpush.msra.mxu0 %v1244
      %1388 = vmatpush.msra.mxu0 %v1243
      %1389 = vmatpush.msra.mxu0 %v1242
      %1390 = vmatpush.msra.mxu0 %v1241
      %1391 = vmatpush.msra.mxu0 %v1240
      %1392 = vmatpush.msra.mxu0 %v1239
      %1393 = vmatpush.msra.mxu0 %v1238
      %1394 = vmatpush.msra.mxu0 %v1237
      %1395 = vmatmul.f32.gmra.mxu0 %v1029
      %v1396 = vpop.f32.mrf.mxu0
      %v1397 = vadd.f32 %v1368, %v1396
      %1398 = vmatmul.f32.gmra.mxu0 %v1032
      %v1399 = vpop.f32.mrf.mxu0
      %v1400 = vadd.f32 %v1371, %v1399
      %1401 = vmatmul.f32.gmra.mxu0 %v1035
      %v1402 = vpop.f32.mrf.mxu0
      %v1403 = vadd.f32 %v1374, %v1402
      %1404 = vmatmul.f32.gmra.mxu0 %v1038
      %v1405 = vpop.f32.mrf.mxu0
      %v1406 = vadd.f32 %v1377, %v1405
      %1407 = vdwg.mxu0
      %s1408 = scalar_lea.vmem %s793, 1280
      %v1409 = vld [vmem:[%s1408] sm:$0xff]
      %v1410 = vld [vmem:[%s1408 + $0x8] sm:$0xff]
      %v1411 = vld [vmem:[%s1408 + $0x10] sm:$0xff]
      %v1412 = vld [vmem:[%s1408 + $0x18] sm:$0xff]
      %v1413 = vld [vmem:[%s1408 + $0x20] sm:$0xff]
      %v1414 = vld [vmem:[%s1408 + $0x28] sm:$0xff]
      %v1415 = vld [vmem:[%s1408 + $0x30] sm:$0xff]
      %v1416 = vld [vmem:[%s1408 + $0x38] sm:$0xff]
      %v1417 = vld [vmem:[%s1408 + $0x40] sm:$0xff]
      %v1418 = vld [vmem:[%s1408 + $0x48] sm:$0xff]
      %v1419 = vld [vmem:[%s1408 + $0x50] sm:$0xff]
      %v1420 = vld [vmem:[%s1408 + $0x58] sm:$0xff]
      %v1421 = vld [vmem:[%s1408 + $0x60] sm:$0xff]
      %v1422 = vld [vmem:[%s1408 + $0x68] sm:$0xff]
      %v1423 = vld [vmem:[%s1408 + $0x70] sm:$0xff]
      %v1424 = vld [vmem:[%s1408 + $0x78] sm:$0xff]
      %v1425 = vld [vmem:[%s1408 + $0x80] sm:$0xff]
      %v1426 = vld [vmem:[%s1408 + $0x88] sm:$0xff]
      %v1427 = vld [vmem:[%s1408 + $0x90] sm:$0xff]
      %v1428 = vld [vmem:[%s1408 + $0x98] sm:$0xff]
      %v1429 = vld [vmem:[%s1408 + $0xa0] sm:$0xff]
      %v1430 = vld [vmem:[%s1408 + $0xa8] sm:$0xff]
      %v1431 = vld [vmem:[%s1408 + $0xb0] sm:$0xff]
      %v1432 = vld [vmem:[%s1408 + $0xb8] sm:$0xff]
      %v1433 = vld [vmem:[%s1408 + $0xc0] sm:$0xff]
      %v1434 = vld [vmem:[%s1408 + $0xc8] sm:$0xff]
      %v1435 = vld [vmem:[%s1408 + $0xd0] sm:$0xff]
      %v1436 = vld [vmem:[%s1408 + $0xd8] sm:$0xff]
      %v1437 = vld [vmem:[%s1408 + $0xe0] sm:$0xff]
      %v1438 = vld [vmem:[%s1408 + $0xe8] sm:$0xff]
      %v1439 = vld [vmem:[%s1408 + $0xf0] sm:$0xff]
      %v1440 = vld [vmem:[%s1408 + $0xf8] sm:$0x3]
      %v1442 = vsel %vm966, %v1440, 0
      %1444 = vmatpush.msra.mxu0 %v1424
      %1445 = vmatpush.msra.mxu0 %v1423
      %1446 = vmatpush.msra.mxu0 %v1422
      %1447 = vmatpush.msra.mxu0 %v1421
      %1448 = vmatpush.msra.mxu0 %v1420
      %1449 = vmatpush.msra.mxu0 %v1419
      %1450 = vmatpush.msra.mxu0 %v1418
      %1451 = vmatpush.msra.mxu0 %v1417
      %1452 = vmatpush.msra.mxu0 %v1416
      %1453 = vmatpush.msra.mxu0 %v1415
      %1454 = vmatpush.msra.mxu0 %v1414
      %1455 = vmatpush.msra.mxu0 %v1413
      %1456 = vmatpush.msra.mxu0 %v1412
      %1457 = vmatpush.msra.mxu0 %v1411
      %1458 = vmatpush.msra.mxu0 %v1410
      %1459 = vmatpush.msra.mxu0 %v1409
      %1460 = vmatmul.f32.gmra.mxu0 %v1102
      %v1461 = vpop.f32.mrf.mxu0
      %v1462 = vadd.f32 0.0, %v1461
      %1463 = vmatmul.f32.gmra.mxu0 %v1104
      %v1464 = vpop.f32.mrf.mxu0
      %v1465 = vadd.f32 0.0, %v1464
      %1466 = vmatmul.f32.gmra.mxu0 %v1106
      %v1467 = vpop.f32.mrf.mxu0
      %v1468 = vadd.f32 0.0, %v1467
      %1469 = vmatmul.f32.gmra.mxu0 %v1108
      %v1470 = vpop.f32.mrf.mxu0
      %v1471 = vadd.f32 0.0, %v1470
      %1472 = vdwg.mxu0
      %1473 = vmatpush.msra.mxu0 %v1442
      %1474 = vmatpush.msra.mxu0 %v1439
      %1475 = vmatpush.msra.mxu0 %v1438
      %1476 = vmatpush.msra.mxu0 %v1437
      %1477 = vmatpush.msra.mxu0 %v1436
      %1478 = vmatpush.msra.mxu0 %v1435
      %1479 = vmatpush.msra.mxu0 %v1434
      %1480 = vmatpush.msra.mxu0 %v1433
      %1481 = vmatpush.msra.mxu0 %v1432
      %1482 = vmatpush.msra.mxu0 %v1431
      %1483 = vmatpush.msra.mxu0 %v1430
      %1484 = vmatpush.msra.mxu0 %v1429
      %1485 = vmatpush.msra.mxu0 %v1428
      %1486 = vmatpush.msra.mxu0 %v1427
      %1487 = vmatpush.msra.mxu0 %v1426
      %1488 = vmatpush.msra.mxu0 %v1425
      %1489 = vmatmul.f32.gmra.mxu0 %v1144
      %v1490 = vpop.f32.mrf.mxu0
      %v1491 = vadd.f32 %v1462, %v1490
      %1492 = vmatmul.f32.gmra.mxu0 %v1147
      %v1493 = vpop.f32.mrf.mxu0
      %v1494 = vadd.f32 %v1465, %v1493
      %1495 = vmatmul.f32.gmra.mxu0 %v1150
      %v1496 = vpop.f32.mrf.mxu0
      %v1497 = vadd.f32 %v1468, %v1496
      %1498 = vmatmul.f32.gmra.mxu0 %v1153
      %v1499 = vpop.f32.mrf.mxu0
      %v1500 = vadd.f32 %v1471, %v1499
      %1501 = vdwg.mxu0
      %v1502 = vadd.f32 %v1397, %v1491
      %v1503 = vadd.f32 %v1400, %v1494
      %v1504 = vadd.f32 %v1403, %v1497
      %v1505 = vadd.f32 %v1406, %v1500
      %v1506 = vmax.f32 %v1216, %v1502
      %v1507 = vmax.f32 %v1217, %v1503
      %v1508 = vmax.f32 %v1218, %v1504
      %v1509 = vmax.f32 %v1219, %v1505
      %s1510 = scalar_lea.vmem %s793, 1536
      %v1511 = vld [vmem:[%s1510] sm:$0xff]
      %v1512 = vld [vmem:[%s1510 + $0x8] sm:$0xff]
      %v1513 = vld [vmem:[%s1510 + $0x10] sm:$0xff]
      %v1514 = vld [vmem:[%s1510 + $0x18] sm:$0xff]
      %v1515 = vld [vmem:[%s1510 + $0x20] sm:$0xff]
      %v1516 = vld [vmem:[%s1510 + $0x28] sm:$0xff]
      %v1517 = vld [vmem:[%s1510 + $0x30] sm:$0xff]
      %v1518 = vld [vmem:[%s1510 + $0x38] sm:$0xff]
      %v1519 = vld [vmem:[%s1510 + $0x40] sm:$0xff]
      %v1520 = vld [vmem:[%s1510 + $0x48] sm:$0xff]
      %v1521 = vld [vmem:[%s1510 + $0x50] sm:$0xff]
      %v1522 = vld [vmem:[%s1510 + $0x58] sm:$0xff]
      %v1523 = vld [vmem:[%s1510 + $0x60] sm:$0xff]
      %v1524 = vld [vmem:[%s1510 + $0x68] sm:$0xff]
      %v1525 = vld [vmem:[%s1510 + $0x70] sm:$0xff]
      %v1526 = vld [vmem:[%s1510 + $0x78] sm:$0xff]
      %v1527 = vld [vmem:[%s1510 + $0x80] sm:$0xff]
      %v1528 = vld [vmem:[%s1510 + $0x88] sm:$0xff]
      %v1529 = vld [vmem:[%s1510 + $0x90] sm:$0xff]
      %v1530 = vld [vmem:[%s1510 + $0x98] sm:$0xff]
      %v1531 = vld [vmem:[%s1510 + $0xa0] sm:$0xff]
      %v1532 = vld [vmem:[%s1510 + $0xa8] sm:$0xff]
      %v1533 = vld [vmem:[%s1510 + $0xb0] sm:$0xff]
      %v1534 = vld [vmem:[%s1510 + $0xb8] sm:$0xff]
      %v1535 = vld [vmem:[%s1510 + $0xc0] sm:$0xff]
      %v1536 = vld [vmem:[%s1510 + $0xc8] sm:$0xff]
      %v1537 = vld [vmem:[%s1510 + $0xd0] sm:$0xff]
      %v1538 = vld [vmem:[%s1510 + $0xd8] sm:$0xff]
      %v1539 = vld [vmem:[%s1510 + $0xe0] sm:$0xff]
      %v1540 = vld [vmem:[%s1510 + $0xe8] sm:$0xff]
      %v1541 = vld [vmem:[%s1510 + $0xf0] sm:$0xff]
      %v1542 = vld [vmem:[%s1510 + $0xf8] sm:$0x3]
      %s1543 = scalar_lea.vmem %s793, 1792
      %v1544 = vld [vmem:[%s1543] sm:$0xff]
      %v1545 = vld [vmem:[%s1543 + $0x8] sm:$0xff]
      %v1546 = vld [vmem:[%s1543 + $0x10] sm:$0xff]
      %v1547 = vld [vmem:[%s1543 + $0x18] sm:$0xff]
      %v1548 = vld [vmem:[%s1543 + $0x20] sm:$0xff]
      %v1549 = vld [vmem:[%s1543 + $0x28] sm:$0xff]
      %v1550 = vld [vmem:[%s1543 + $0x30] sm:$0xff]
      %v1551 = vld [vmem:[%s1543 + $0x38] sm:$0xff]
      %v1552 = vld [vmem:[%s1543 + $0x40] sm:$0xff]
      %v1553 = vld [vmem:[%s1543 + $0x48] sm:$0xff]
      %v1554 = vld [vmem:[%s1543 + $0x50] sm:$0xff]
      %v1555 = vld [vmem:[%s1543 + $0x58] sm:$0xff]
      %v1556 = vld [vmem:[%s1543 + $0x60] sm:$0xff]
      %v1557 = vld [vmem:[%s1543 + $0x68] sm:$0xff]
      %v1558 = vld [vmem:[%s1543 + $0x70] sm:$0xff]
      %v1559 = vld [vmem:[%s1543 + $0x78] sm:$0xff]
      %v1560 = vld [vmem:[%s1543 + $0x80] sm:$0xff]
      %v1561 = vld [vmem:[%s1543 + $0x88] sm:$0xff]
      %v1562 = vld [vmem:[%s1543 + $0x90] sm:$0xff]
      %v1563 = vld [vmem:[%s1543 + $0x98] sm:$0xff]
      %v1564 = vld [vmem:[%s1543 + $0xa0] sm:$0xff]
      %v1565 = vld [vmem:[%s1543 + $0xa8] sm:$0xff]
      %v1566 = vld [vmem:[%s1543 + $0xb0] sm:$0xff]
      %v1567 = vld [vmem:[%s1543 + $0xb8] sm:$0xff]
      %v1568 = vld [vmem:[%s1543 + $0xc0] sm:$0xff]
      %v1569 = vld [vmem:[%s1543 + $0xc8] sm:$0xff]
      %v1570 = vld [vmem:[%s1543 + $0xd0] sm:$0xff]
      %v1571 = vld [vmem:[%s1543 + $0xd8] sm:$0xff]
      %v1572 = vld [vmem:[%s1543 + $0xe0] sm:$0xff]
      %v1573 = vld [vmem:[%s1543 + $0xe8] sm:$0xff]
      %v1574 = vld [vmem:[%s1543 + $0xf0] sm:$0xff]
      %v1575 = vld [vmem:[%s1543 + $0xf8] sm:$0x3]
      %v1577 = vsel %vm966, %v1575, 0
      %1579 = vmatpush.msra.mxu0 %v1559
      %1580 = vmatpush.msra.mxu0 %v1558
      %1581 = vmatpush.msra.mxu0 %v1557
      %1582 = vmatpush.msra.mxu0 %v1556
      %1583 = vmatpush.msra.mxu0 %v1555
      %1584 = vmatpush.msra.mxu0 %v1554
      %1585 = vmatpush.msra.mxu0 %v1553
      %1586 = vmatpush.msra.mxu0 %v1552
      %1587 = vmatpush.msra.mxu0 %v1551
      %1588 = vmatpush.msra.mxu0 %v1550
      %1589 = vmatpush.msra.mxu0 %v1549
      %1590 = vmatpush.msra.mxu0 %v1548
      %1591 = vmatpush.msra.mxu0 %v1547
      %1592 = vmatpush.msra.mxu0 %v1546
      %1593 = vmatpush.msra.mxu0 %v1545
      %1594 = vmatpush.msra.mxu0 %v1544
      %1595 = vmatmul.f32.gmra.mxu0 %v912
      %v1596 = vpop.f32.mrf.mxu0
      %v1597 = vadd.f32 0.0, %v1596
      %1598 = vmatmul.f32.gmra.mxu0 %v914
      %v1599 = vpop.f32.mrf.mxu0
      %v1600 = vadd.f32 0.0, %v1599
      %1601 = vmatmul.f32.gmra.mxu0 %v916
      %v1602 = vpop.f32.mrf.mxu0
      %v1603 = vadd.f32 0.0, %v1602
      %1604 = vmatmul.f32.gmra.mxu0 %v918
      %v1605 = vpop.f32.mrf.mxu0
      %v1606 = vadd.f32 0.0, %v1605
      %1607 = vdwg.mxu0
      %1608 = vmatpush.msra.mxu0 %v1577
      %1609 = vmatpush.msra.mxu0 %v1574
      %1610 = vmatpush.msra.mxu0 %v1573
      %1611 = vmatpush.msra.mxu0 %v1572
      %1612 = vmatpush.msra.mxu0 %v1571
      %1613 = vmatpush.msra.mxu0 %v1570
      %1614 = vmatpush.msra.mxu0 %v1569
      %1615 = vmatpush.msra.mxu0 %v1568
      %1616 = vmatpush.msra.mxu0 %v1567
      %1617 = vmatpush.msra.mxu0 %v1566
      %1618 = vmatpush.msra.mxu0 %v1565
      %1619 = vmatpush.msra.mxu0 %v1564
      %1620 = vmatpush.msra.mxu0 %v1563
      %1621 = vmatpush.msra.mxu0 %v1562
      %1622 = vmatpush.msra.mxu0 %v1561
      %1623 = vmatpush.msra.mxu0 %v1560
      %1624 = vmatmul.f32.gmra.mxu0 %v955
      %v1625 = vpop.f32.mrf.mxu0
      %v1626 = vadd.f32 %v1597, %v1625
      %1627 = vmatmul.f32.gmra.mxu0 %v958
      %v1628 = vpop.f32.mrf.mxu0
      %v1629 = vadd.f32 %v1600, %v1628
      %1630 = vmatmul.f32.gmra.mxu0 %v961
      %v1631 = vpop.f32.mrf.mxu0
      %v1632 = vadd.f32 %v1603, %v1631
      %1633 = vmatmul.f32.gmra.mxu0 %v964
      %v1634 = vpop.f32.mrf.mxu0
      %v1635 = vadd.f32 %v1606, %v1634
      %1636 = vdwg.mxu0
      %v1638 = vsel %vm966, %v1542, 0
      %1640 = vmatpush.msra.mxu0 %v1526
      %1641 = vmatpush.msra.mxu0 %v1525
      %1642 = vmatpush.msra.mxu0 %v1524
      %1643 = vmatpush.msra.mxu0 %v1523
      %1644 = vmatpush.msra.mxu0 %v1522
      %1645 = vmatpush.msra.mxu0 %v1521
      %1646 = vmatpush.msra.mxu0 %v1520
      %1647 = vmatpush.msra.mxu0 %v1519
      %1648 = vmatpush.msra.mxu0 %v1518
      %1649 = vmatpush.msra.mxu0 %v1517
      %1650 = vmatpush.msra.mxu0 %v1516
      %1651 = vmatpush.msra.mxu0 %v1515
      %1652 = vmatpush.msra.mxu0 %v1514
      %1653 = vmatpush.msra.mxu0 %v1513
      %1654 = vmatpush.msra.mxu0 %v1512
      %1655 = vmatpush.msra.mxu0 %v1511
      %1656 = vmatmul.f32.gmra.mxu0 %v871
      %v1657 = vpop.f32.mrf.mxu0
      %v1658 = vadd.f32 %v1626, %v1657
      %1659 = vmatmul.f32.gmra.mxu0 %v873
      %v1660 = vpop.f32.mrf.mxu0
      %v1661 = vadd.f32 %v1629, %v1660
      %1662 = vmatmul.f32.gmra.mxu0 %v875
      %v1663 = vpop.f32.mrf.mxu0
      %v1664 = vadd.f32 %v1632, %v1663
      %1665 = vmatmul.f32.gmra.mxu0 %v877
      %v1666 = vpop.f32.mrf.mxu0
      %v1667 = vadd.f32 %v1635, %v1666
      %1668 = vdwg.mxu0
      %1669 = vmatpush.msra.mxu0 %v1638
      %1670 = vmatpush.msra.mxu0 %v1541
      %1671 = vmatpush.msra.mxu0 %v1540
      %1672 = vmatpush.msra.mxu0 %v1539
      %1673 = vmatpush.msra.mxu0 %v1538
      %1674 = vmatpush.msra.mxu0 %v1537
      %1675 = vmatpush.msra.mxu0 %v1536
      %1676 = vmatpush.msra.mxu0 %v1535
      %1677 = vmatpush.msra.mxu0 %v1534
      %1678 = vmatpush.msra.mxu0 %v1533
      %1679 = vmatpush.msra.mxu0 %v1532
      %1680 = vmatpush.msra.mxu0 %v1531
      %1681 = vmatpush.msra.mxu0 %v1530
      %1682 = vmatpush.msra.mxu0 %v1529
      %1683 = vmatpush.msra.mxu0 %v1528
      %1684 = vmatpush.msra.mxu0 %v1527
      %1685 = vmatmul.f32.gmra.mxu0 %v1029
      %v1686 = vpop.f32.mrf.mxu0
      %v1687 = vadd.f32 %v1658, %v1686
      %1688 = vmatmul.f32.gmra.mxu0 %v1032
      %v1689 = vpop.f32.mrf.mxu0
      %v1690 = vadd.f32 %v1661, %v1689
      %1691 = vmatmul.f32.gmra.mxu0 %v1035
      %v1692 = vpop.f32.mrf.mxu0
      %v1693 = vadd.f32 %v1664, %v1692
      %1694 = vmatmul.f32.gmra.mxu0 %v1038
      %v1695 = vpop.f32.mrf.mxu0
      %v1696 = vadd.f32 %v1667, %v1695
      %1697 = vdwg.mxu0
      %s1698 = scalar_lea.vmem %s793, 2048
      %v1699 = vld [vmem:[%s1698] sm:$0xff]
      %v1700 = vld [vmem:[%s1698 + $0x8] sm:$0xff]
      %v1701 = vld [vmem:[%s1698 + $0x10] sm:$0xff]
      %v1702 = vld [vmem:[%s1698 + $0x18] sm:$0xff]
      %v1703 = vld [vmem:[%s1698 + $0x20] sm:$0xff]
      %v1704 = vld [vmem:[%s1698 + $0x28] sm:$0xff]
      %v1705 = vld [vmem:[%s1698 + $0x30] sm:$0xff]
      %v1706 = vld [vmem:[%s1698 + $0x38] sm:$0xff]
      %v1707 = vld [vmem:[%s1698 + $0x40] sm:$0xff]
      %v1708 = vld [vmem:[%s1698 + $0x48] sm:$0xff]
      %v1709 = vld [vmem:[%s1698 + $0x50] sm:$0xff]
      %v1710 = vld [vmem:[%s1698 + $0x58] sm:$0xff]
      %v1711 = vld [vmem:[%s1698 + $0x60] sm:$0xff]
      %v1712 = vld [vmem:[%s1698 + $0x68] sm:$0xff]
      %v1713 = vld [vmem:[%s1698 + $0x70] sm:$0xff]
      %v1714 = vld [vmem:[%s1698 + $0x78] sm:$0xff]
      %v1715 = vld [vmem:[%s1698 + $0x80] sm:$0xff]
      %v1716 = vld [vmem:[%s1698 + $0x88] sm:$0xff]
      %v1717 = vld [vmem:[%s1698 + $0x90] sm:$0xff]
      %v1718 = vld [vmem:[%s1698 + $0x98] sm:$0xff]
      %v1719 = vld [vmem:[%s1698 + $0xa0] sm:$0xff]
      %v1720 = vld [vmem:[%s1698 + $0xa8] sm:$0xff]
      %v1721 = vld [vmem:[%s1698 + $0xb0] sm:$0xff]
      %v1722 = vld [vmem:[%s1698 + $0xb8] sm:$0xff]
      %v1723 = vld [vmem:[%s1698 + $0xc0] sm:$0xff]
      %v1724 = vld [vmem:[%s1698 + $0xc8] sm:$0xff]
      %v1725 = vld [vmem:[%s1698 + $0xd0] sm:$0xff]
      %v1726 = vld [vmem:[%s1698 + $0xd8] sm:$0xff]
      %v1727 = vld [vmem:[%s1698 + $0xe0] sm:$0xff]
      %v1728 = vld [vmem:[%s1698 + $0xe8] sm:$0xff]
      %v1729 = vld [vmem:[%s1698 + $0xf0] sm:$0xff]
      %v1730 = vld [vmem:[%s1698 + $0xf8] sm:$0x3]
      %v1732 = vsel %vm966, %v1730, 0
      %1734 = vmatpush.msra.mxu0 %v1714
      %1735 = vmatpush.msra.mxu0 %v1713
      %1736 = vmatpush.msra.mxu0 %v1712
      %1737 = vmatpush.msra.mxu0 %v1711
      %1738 = vmatpush.msra.mxu0 %v1710
      %1739 = vmatpush.msra.mxu0 %v1709
      %1740 = vmatpush.msra.mxu0 %v1708
      %1741 = vmatpush.msra.mxu0 %v1707
      %1742 = vmatpush.msra.mxu0 %v1706
      %1743 = vmatpush.msra.mxu0 %v1705
      %1744 = vmatpush.msra.mxu0 %v1704
      %1745 = vmatpush.msra.mxu0 %v1703
      %1746 = vmatpush.msra.mxu0 %v1702
      %1747 = vmatpush.msra.mxu0 %v1701
      %1748 = vmatpush.msra.mxu0 %v1700
      %1749 = vmatpush.msra.mxu0 %v1699
      %1750 = vmatmul.f32.gmra.mxu0 %v1102
      %v1751 = vpop.f32.mrf.mxu0
      %v1752 = vadd.f32 0.0, %v1751
      %1753 = vmatmul.f32.gmra.mxu0 %v1104
      %v1754 = vpop.f32.mrf.mxu0
      %v1755 = vadd.f32 0.0, %v1754
      %1756 = vmatmul.f32.gmra.mxu0 %v1106
      %v1757 = vpop.f32.mrf.mxu0
      %v1758 = vadd.f32 0.0, %v1757
      %1759 = vmatmul.f32.gmra.mxu0 %v1108
      %v1760 = vpop.f32.mrf.mxu0
      %v1761 = vadd.f32 0.0, %v1760
      %1762 = vdwg.mxu0
      %1763 = vmatpush.msra.mxu0 %v1732
      %1764 = vmatpush.msra.mxu0 %v1729
      %1765 = vmatpush.msra.mxu0 %v1728
      %1766 = vmatpush.msra.mxu0 %v1727
      %1767 = vmatpush.msra.mxu0 %v1726
      %1768 = vmatpush.msra.mxu0 %v1725
      %1769 = vmatpush.msra.mxu0 %v1724
      %1770 = vmatpush.msra.mxu0 %v1723
      %1771 = vmatpush.msra.mxu0 %v1722
      %1772 = vmatpush.msra.mxu0 %v1721
      %1773 = vmatpush.msra.mxu0 %v1720
      %1774 = vmatpush.msra.mxu0 %v1719
      %1775 = vmatpush.msra.mxu0 %v1718
      %1776 = vmatpush.msra.mxu0 %v1717
      %1777 = vmatpush.msra.mxu0 %v1716
      %1778 = vmatpush.msra.mxu0 %v1715
      %1779 = vmatmul.f32.gmra.mxu0 %v1144
      %v1780 = vpop.f32.mrf.mxu0
      %v1781 = vadd.f32 %v1752, %v1780
      %1782 = vmatmul.f32.gmra.mxu0 %v1147
      %v1783 = vpop.f32.mrf.mxu0
      %v1784 = vadd.f32 %v1755, %v1783
      %1785 = vmatmul.f32.gmra.mxu0 %v1150
      %v1786 = vpop.f32.mrf.mxu0
      %v1787 = vadd.f32 %v1758, %v1786
      %1788 = vmatmul.f32.gmra.mxu0 %v1153
      %v1789 = vpop.f32.mrf.mxu0
      %v1790 = vadd.f32 %v1761, %v1789
      %1791 = vdwg.mxu0
      %v1792 = vadd.f32 %v1687, %v1781
      %v1793 = vadd.f32 %v1690, %v1784
      %v1794 = vadd.f32 %v1693, %v1787
      %v1795 = vadd.f32 %v1696, %v1790
      %v1796 = vmax.f32 %v1506, %v1792
      %v1797 = vmax.f32 %v1507, %v1793
      %v1798 = vmax.f32 %v1508, %v1794
      %v1799 = vmax.f32 %v1509, %v1795
      %s1800 = scalar_lea.vmem %s793, 2304
      %v1801 = vld [vmem:[%s1800] sm:$0xff]
      %v1802 = vld [vmem:[%s1800 + $0x8] sm:$0xff]
      %v1803 = vld [vmem:[%s1800 + $0x10] sm:$0xff]
      %v1804 = vld [vmem:[%s1800 + $0x18] sm:$0xff]
      %v1805 = vld [vmem:[%s1800 + $0x20] sm:$0xff]
      %v1806 = vld [vmem:[%s1800 + $0x28] sm:$0xff]
      %v1807 = vld [vmem:[%s1800 + $0x30] sm:$0xff]
      %v1808 = vld [vmem:[%s1800 + $0x38] sm:$0xff]
      %v1809 = vld [vmem:[%s1800 + $0x40] sm:$0xff]
      %v1810 = vld [vmem:[%s1800 + $0x48] sm:$0xff]
      %v1811 = vld [vmem:[%s1800 + $0x50] sm:$0xff]
      %v1812 = vld [vmem:[%s1800 + $0x58] sm:$0xff]
      %v1813 = vld [vmem:[%s1800 + $0x60] sm:$0xff]
      %v1814 = vld [vmem:[%s1800 + $0x68] sm:$0xff]
      %v1815 = vld [vmem:[%s1800 + $0x70] sm:$0xff]
      %v1816 = vld [vmem:[%s1800 + $0x78] sm:$0xff]
      %v1817 = vld [vmem:[%s1800 + $0x80] sm:$0xff]
      %v1818 = vld [vmem:[%s1800 + $0x88] sm:$0xff]
      %v1819 = vld [vmem:[%s1800 + $0x90] sm:$0xff]
      %v1820 = vld [vmem:[%s1800 + $0x98] sm:$0xff]
      %v1821 = vld [vmem:[%s1800 + $0xa0] sm:$0xff]
      %v1822 = vld [vmem:[%s1800 + $0xa8] sm:$0xff]
      %v1823 = vld [vmem:[%s1800 + $0xb0] sm:$0xff]
      %v1824 = vld [vmem:[%s1800 + $0xb8] sm:$0xff]
      %v1825 = vld [vmem:[%s1800 + $0xc0] sm:$0xff]
      %v1826 = vld [vmem:[%s1800 + $0xc8] sm:$0xff]
      %v1827 = vld [vmem:[%s1800 + $0xd0] sm:$0xff]
      %v1828 = vld [vmem:[%s1800 + $0xd8] sm:$0xff]
      %v1829 = vld [vmem:[%s1800 + $0xe0] sm:$0xff]
      %v1830 = vld [vmem:[%s1800 + $0xe8] sm:$0xff]
      %v1831 = vld [vmem:[%s1800 + $0xf0] sm:$0xff]
      %v1832 = vld [vmem:[%s1800 + $0xf8] sm:$0x3]
      %s1833 = scalar_lea.vmem %s793, 2560
      %v1834 = vld [vmem:[%s1833] sm:$0xff]
      %v1835 = vld [vmem:[%s1833 + $0x8] sm:$0xff]
      %v1836 = vld [vmem:[%s1833 + $0x10] sm:$0xff]
      %v1837 = vld [vmem:[%s1833 + $0x18] sm:$0xff]
      %v1838 = vld [vmem:[%s1833 + $0x20] sm:$0xff]
      %v1839 = vld [vmem:[%s1833 + $0x28] sm:$0xff]
      %v1840 = vld [vmem:[%s1833 + $0x30] sm:$0xff]
      %v1841 = vld [vmem:[%s1833 + $0x38] sm:$0xff]
      %v1842 = vld [vmem:[%s1833 + $0x40] sm:$0xff]
      %v1843 = vld [vmem:[%s1833 + $0x48] sm:$0xff]
      %v1844 = vld [vmem:[%s1833 + $0x50] sm:$0xff]
      %v1845 = vld [vmem:[%s1833 + $0x58] sm:$0xff]
      %v1846 = vld [vmem:[%s1833 + $0x60] sm:$0xff]
      %v1847 = vld [vmem:[%s1833 + $0x68] sm:$0xff]
      %v1848 = vld [vmem:[%s1833 + $0x70] sm:$0xff]
      %v1849 = vld [vmem:[%s1833 + $0x78] sm:$0xff]
      %v1850 = vld [vmem:[%s1833 + $0x80] sm:$0xff]
      %v1851 = vld [vmem:[%s1833 + $0x88] sm:$0xff]
      %v1852 = vld [vmem:[%s1833 + $0x90] sm:$0xff]
      %v1853 = vld [vmem:[%s1833 + $0x98] sm:$0xff]
      %v1854 = vld [vmem:[%s1833 + $0xa0] sm:$0xff]
      %v1855 = vld [vmem:[%s1833 + $0xa8] sm:$0xff]
      %v1856 = vld [vmem:[%s1833 + $0xb0] sm:$0xff]
      %v1857 = vld [vmem:[%s1833 + $0xb8] sm:$0xff]
      %v1858 = vld [vmem:[%s1833 + $0xc0] sm:$0xff]
      %v1859 = vld [vmem:[%s1833 + $0xc8] sm:$0xff]
      %v1860 = vld [vmem:[%s1833 + $0xd0] sm:$0xff]
      %v1861 = vld [vmem:[%s1833 + $0xd8] sm:$0xff]
      %v1862 = vld [vmem:[%s1833 + $0xe0] sm:$0xff]
      %v1863 = vld [vmem:[%s1833 + $0xe8] sm:$0xff]
      %v1864 = vld [vmem:[%s1833 + $0xf0] sm:$0xff]
      %v1865 = vld [vmem:[%s1833 + $0xf8] sm:$0x3]
      %v1867 = vsel %vm966, %v1865, 0
      %1869 = vmatpush.msra.mxu0 %v1849
      %1870 = vmatpush.msra.mxu0 %v1848
      %1871 = vmatpush.msra.mxu0 %v1847
      %1872 = vmatpush.msra.mxu0 %v1846
      %1873 = vmatpush.msra.mxu0 %v1845
      %1874 = vmatpush.msra.mxu0 %v1844
      %1875 = vmatpush.msra.mxu0 %v1843
      %1876 = vmatpush.msra.mxu0 %v1842
      %1877 = vmatpush.msra.mxu0 %v1841
      %1878 = vmatpush.msra.mxu0 %v1840
      %1879 = vmatpush.msra.mxu0 %v1839
      %1880 = vmatpush.msra.mxu0 %v1838
      %1881 = vmatpush.msra.mxu0 %v1837
      %1882 = vmatpush.msra.mxu0 %v1836
      %1883 = vmatpush.msra.mxu0 %v1835
      %1884 = vmatpush.msra.mxu0 %v1834
      %1885 = vmatmul.f32.gmra.mxu0 %v912
      %v1886 = vpop.f32.mrf.mxu0
      %v1887 = vadd.f32 0.0, %v1886
      %1888 = vmatmul.f32.gmra.mxu0 %v914
      %v1889 = vpop.f32.mrf.mxu0
      %v1890 = vadd.f32 0.0, %v1889
      %1891 = vmatmul.f32.gmra.mxu0 %v916
      %v1892 = vpop.f32.mrf.mxu0
      %v1893 = vadd.f32 0.0, %v1892
      %1894 = vmatmul.f32.gmra.mxu0 %v918
      %v1895 = vpop.f32.mrf.mxu0
      %v1896 = vadd.f32 0.0, %v1895
      %1897 = vdwg.mxu0
      %1898 = vmatpush.msra.mxu0 %v1867
      %1899 = vmatpush.msra.mxu0 %v1864
      %1900 = vmatpush.msra.mxu0 %v1863
      %1901 = vmatpush.msra.mxu0 %v1862
      %1902 = vmatpush.msra.mxu0 %v1861
      %1903 = vmatpush.msra.mxu0 %v1860
      %1904 = vmatpush.msra.mxu0 %v1859
      %1905 = vmatpush.msra.mxu0 %v1858
      %1906 = vmatpush.msra.mxu0 %v1857
      %1907 = vmatpush.msra.mxu0 %v1856
      %1908 = vmatpush.msra.mxu0 %v1855
      %1909 = vmatpush.msra.mxu0 %v1854
      %1910 = vmatpush.msra.mxu0 %v1853
      %1911 = vmatpush.msra.mxu0 %v1852
      %1912 = vmatpush.msra.mxu0 %v1851
      %1913 = vmatpush.msra.mxu0 %v1850
      %1914 = vmatmul.f32.gmra.mxu0 %v955
      %v1915 = vpop.f32.mrf.mxu0
      %v1916 = vadd.f32 %v1887, %v1915
      %1917 = vmatmul.f32.gmra.mxu0 %v958
      %v1918 = vpop.f32.mrf.mxu0
      %v1919 = vadd.f32 %v1890, %v1918
      %1920 = vmatmul.f32.gmra.mxu0 %v961
      %v1921 = vpop.f32.mrf.mxu0
      %v1922 = vadd.f32 %v1893, %v1921
      %1923 = vmatmul.f32.gmra.mxu0 %v964
      %v1924 = vpop.f32.mrf.mxu0
      %v1925 = vadd.f32 %v1896, %v1924
      %1926 = vdwg.mxu0
      %v1928 = vsel %vm966, %v1832, 0
      %1930 = vmatpush.msra.mxu0 %v1816
      %1931 = vmatpush.msra.mxu0 %v1815
      %1932 = vmatpush.msra.mxu0 %v1814
      %1933 = vmatpush.msra.mxu0 %v1813
      %1934 = vmatpush.msra.mxu0 %v1812
      %1935 = vmatpush.msra.mxu0 %v1811
      %1936 = vmatpush.msra.mxu0 %v1810
      %1937 = vmatpush.msra.mxu0 %v1809
      %1938 = vmatpush.msra.mxu0 %v1808
      %1939 = vmatpush.msra.mxu0 %v1807
      %1940 = vmatpush.msra.mxu0 %v1806
      %1941 = vmatpush.msra.mxu0 %v1805
      %1942 = vmatpush.msra.mxu0 %v1804
      %1943 = vmatpush.msra.mxu0 %v1803
      %1944 = vmatpush.msra.mxu0 %v1802
      %1945 = vmatpush.msra.mxu0 %v1801
      %1946 = vmatmul.f32.gmra.mxu0 %v871
      %v1947 = vpop.f32.mrf.mxu0
      %v1948 = vadd.f32 %v1916, %v1947
      %1949 = vmatmul.f32.gmra.mxu0 %v873
      %v1950 = vpop.f32.mrf.mxu0
      %v1951 = vadd.f32 %v1919, %v1950
      %1952 = vmatmul.f32.gmra.mxu0 %v875
      %v1953 = vpop.f32.mrf.mxu0
      %v1954 = vadd.f32 %v1922, %v1953
      %1955 = vmatmul.f32.gmra.mxu0 %v877
      %v1956 = vpop.f32.mrf.mxu0
      %v1957 = vadd.f32 %v1925, %v1956
      %1958 = vdwg.mxu0
      %1959 = vmatpush.msra.mxu0 %v1928
      %1960 = vmatpush.msra.mxu0 %v1831
      %1961 = vmatpush.msra.mxu0 %v1830
      %1962 = vmatpush.msra.mxu0 %v1829
      %1963 = vmatpush.msra.mxu0 %v1828
      %1964 = vmatpush.msra.mxu0 %v1827
      %1965 = vmatpush.msra.mxu0 %v1826
      %1966 = vmatpush.msra.mxu0 %v1825
      %1967 = vmatpush.msra.mxu0 %v1824
      %1968 = vmatpush.msra.mxu0 %v1823
      %1969 = vmatpush.msra.mxu0 %v1822
      %1970 = vmatpush.msra.mxu0 %v1821
      %1971 = vmatpush.msra.mxu0 %v1820
      %1972 = vmatpush.msra.mxu0 %v1819
      %1973 = vmatpush.msra.mxu0 %v1818
      %1974 = vmatpush.msra.mxu0 %v1817
      %1975 = vmatmul.f32.gmra.mxu0 %v1029
      %v1976 = vpop.f32.mrf.mxu0
      %v1977 = vadd.f32 %v1948, %v1976
      %1978 = vmatmul.f32.gmra.mxu0 %v1032
      %v1979 = vpop.f32.mrf.mxu0
      %v1980 = vadd.f32 %v1951, %v1979
      %1981 = vmatmul.f32.gmra.mxu0 %v1035
      %v1982 = vpop.f32.mrf.mxu0
      %v1983 = vadd.f32 %v1954, %v1982
      %1984 = vmatmul.f32.gmra.mxu0 %v1038
      %v1985 = vpop.f32.mrf.mxu0
      %v1986 = vadd.f32 %v1957, %v1985
      %1987 = vdwg.mxu0
      %s1988 = scalar_lea.vmem %s793, 2816
      %v1989 = vld [vmem:[%s1988] sm:$0xff]
      %v1990 = vld [vmem:[%s1988 + $0x8] sm:$0xff]
      %v1991 = vld [vmem:[%s1988 + $0x10] sm:$0xff]
      %v1992 = vld [vmem:[%s1988 + $0x18] sm:$0xff]
      %v1993 = vld [vmem:[%s1988 + $0x20] sm:$0xff]
      %v1994 = vld [vmem:[%s1988 + $0x28] sm:$0xff]
      %v1995 = vld [vmem:[%s1988 + $0x30] sm:$0xff]
      %v1996 = vld [vmem:[%s1988 + $0x38] sm:$0xff]
      %v1997 = vld [vmem:[%s1988 + $0x40] sm:$0xff]
      %v1998 = vld [vmem:[%s1988 + $0x48] sm:$0xff]
      %v1999 = vld [vmem:[%s1988 + $0x50] sm:$0xff]
      %v2000 = vld [vmem:[%s1988 + $0x58] sm:$0xff]
      %v2001 = vld [vmem:[%s1988 + $0x60] sm:$0xff]
      %v2002 = vld [vmem:[%s1988 + $0x68] sm:$0xff]
      %v2003 = vld [vmem:[%s1988 + $0x70] sm:$0xff]
      %v2004 = vld [vmem:[%s1988 + $0x78] sm:$0xff]
      %v2005 = vld [vmem:[%s1988 + $0x80] sm:$0xff]
      %v2006 = vld [vmem:[%s1988 + $0x88] sm:$0xff]
      %v2007 = vld [vmem:[%s1988 + $0x90] sm:$0xff]
      %v2008 = vld [vmem:[%s1988 + $0x98] sm:$0xff]
      %v2009 = vld [vmem:[%s1988 + $0xa0] sm:$0xff]
      %v2010 = vld [vmem:[%s1988 + $0xa8] sm:$0xff]
      %v2011 = vld [vmem:[%s1988 + $0xb0] sm:$0xff]
      %v2012 = vld [vmem:[%s1988 + $0xb8] sm:$0xff]
      %v2013 = vld [vmem:[%s1988 + $0xc0] sm:$0xff]
      %v2014 = vld [vmem:[%s1988 + $0xc8] sm:$0xff]
      %v2015 = vld [vmem:[%s1988 + $0xd0] sm:$0xff]
      %v2016 = vld [vmem:[%s1988 + $0xd8] sm:$0xff]
      %v2017 = vld [vmem:[%s1988 + $0xe0] sm:$0xff]
      %v2018 = vld [vmem:[%s1988 + $0xe8] sm:$0xff]
      %v2019 = vld [vmem:[%s1988 + $0xf0] sm:$0xff]
      %v2020 = vld [vmem:[%s1988 + $0xf8] sm:$0x3]
      %v2022 = vsel %vm966, %v2020, 0
      %2024 = vmatpush.msra.mxu0 %v2004
      %2025 = vmatpush.msra.mxu0 %v2003
      %2026 = vmatpush.msra.mxu0 %v2002
      %2027 = vmatpush.msra.mxu0 %v2001
      %2028 = vmatpush.msra.mxu0 %v2000
      %2029 = vmatpush.msra.mxu0 %v1999
      %2030 = vmatpush.msra.mxu0 %v1998
      %2031 = vmatpush.msra.mxu0 %v1997
      %2032 = vmatpush.msra.mxu0 %v1996
      %2033 = vmatpush.msra.mxu0 %v1995
      %2034 = vmatpush.msra.mxu0 %v1994
      %2035 = vmatpush.msra.mxu0 %v1993
      %2036 = vmatpush.msra.mxu0 %v1992
      %2037 = vmatpush.msra.mxu0 %v1991
      %2038 = vmatpush.msra.mxu0 %v1990
      %2039 = vmatpush.msra.mxu0 %v1989
      %2040 = vmatmul.f32.gmra.mxu0 %v1102
      %v2041 = vpop.f32.mrf.mxu0
      %v2042 = vadd.f32 0.0, %v2041
      %2043 = vmatmul.f32.gmra.mxu0 %v1104
      %v2044 = vpop.f32.mrf.mxu0
      %v2045 = vadd.f32 0.0, %v2044
      %2046 = vmatmul.f32.gmra.mxu0 %v1106
      %v2047 = vpop.f32.mrf.mxu0
      %v2048 = vadd.f32 0.0, %v2047
      %2049 = vmatmul.f32.gmra.mxu0 %v1108
      %v2050 = vpop.f32.mrf.mxu0
      %v2051 = vadd.f32 0.0, %v2050
      %2052 = vdwg.mxu0
      %2053 = vmatpush.msra.mxu0 %v2022
      %2054 = vmatpush.msra.mxu0 %v2019
      %2055 = vmatpush.msra.mxu0 %v2018
      %2056 = vmatpush.msra.mxu0 %v2017
      %2057 = vmatpush.msra.mxu0 %v2016
      %2058 = vmatpush.msra.mxu0 %v2015
      %2059 = vmatpush.msra.mxu0 %v2014
      %2060 = vmatpush.msra.mxu0 %v2013
      %2061 = vmatpush.msra.mxu0 %v2012
      %2062 = vmatpush.msra.mxu0 %v2011
      %2063 = vmatpush.msra.mxu0 %v2010
      %2064 = vmatpush.msra.mxu0 %v2009
      %2065 = vmatpush.msra.mxu0 %v2008
      %2066 = vmatpush.msra.mxu0 %v2007
      %2067 = vmatpush.msra.mxu0 %v2006
      %2068 = vmatpush.msra.mxu0 %v2005
      %2069 = vmatmul.f32.gmra.mxu0 %v1144
      %v2070 = vpop.f32.mrf.mxu0
      %v2071 = vadd.f32 %v2042, %v2070
      %2072 = vmatmul.f32.gmra.mxu0 %v1147
      %v2073 = vpop.f32.mrf.mxu0
      %v2074 = vadd.f32 %v2045, %v2073
      %2075 = vmatmul.f32.gmra.mxu0 %v1150
      %v2076 = vpop.f32.mrf.mxu0
      %v2077 = vadd.f32 %v2048, %v2076
      %2078 = vmatmul.f32.gmra.mxu0 %v1153
      %v2079 = vpop.f32.mrf.mxu0
      %v2080 = vadd.f32 %v2051, %v2079
      %2081 = vdwg.mxu0
      %v2082 = vadd.f32 %v1977, %v2071
      %v2083 = vadd.f32 %v1980, %v2074
      %v2084 = vadd.f32 %v1983, %v2077
      %v2085 = vadd.f32 %v1986, %v2080
      %v2086 = vmax.f32 %v1796, %v2082
      %v2087 = vmax.f32 %v1797, %v2083
      %v2088 = vmax.f32 %v1798, %v2084
      %v2089 = vmax.f32 %v1799, %v2085
      %v2090 = vld [vmem:[%s803] sm:$0xff]
      %v2091 = vld [vmem:[%s803 + $0x8] sm:$0xff]
      %v2092 = vld [vmem:[%s803 + $0x10] sm:$0xff]
      %v2093 = vld [vmem:[%s803 + $0x18] sm:$0x3f]
      %2095 = vset.pattern.permute.xlu0 0
      %2096 = vperm.xlu0 %2095, %v2090
      %v2097 = vpop.permute.xlu0 %2096
      %2100 = vset.pattern.permute.xlu0 0
      %2101 = vperm.xlu0 %2100, %v2091
      %v2102 = vpop.permute.xlu0 %2101
      %2105 = vset.pattern.permute.xlu0 0
      %2106 = vperm.xlu0 %2105, %v2092
      %v2107 = vpop.permute.xlu0 %2106
      %2110 = vset.pattern.permute.xlu0 0
      %2111 = vperm.xlu0 %2110, %v2093
      %v2112 = vpop.permute.xlu0 %2111
      %v2114 = vmul.f32 %v2086, %v2097
      %v2115 = vmul.f32 %v2087, %v2102
      %v2116 = vmul.f32 %v2088, %v2107
      %v2117 = vmul.f32 %v2089, %v2112
      %v2118 = vld [vmem:[%s808] sm:$0xff]
      %v2119 = vld [vmem:[%s808 + $0x8] sm:$0xff]
      %v2120 = vld [vmem:[%s808 + $0x10] sm:$0xff]
      %v2121 = vld [vmem:[%s808 + $0x18] sm:$0x3f]
      %2123 = vset.pattern.permute.xlu0 0
      %2124 = vperm.xlu0 %2123, %v2118
      %v2125 = vpop.permute.xlu0 %2124
      %2128 = vset.pattern.permute.xlu0 0
      %2129 = vperm.xlu0 %2128, %v2119
      %v2130 = vpop.permute.xlu0 %2129
      %2133 = vset.pattern.permute.xlu0 0
      %2134 = vperm.xlu0 %2133, %v2120
      %v2135 = vpop.permute.xlu0 %2134
      %2138 = vset.pattern.permute.xlu0 0
      %2139 = vperm.xlu0 %2138, %v2121
      %v2140 = vpop.permute.xlu0 %2139
      %v2142 = vadd.f32 %v2114, %v2125
      %v2143 = vadd.f32 %v2115, %v2130
      %v2144 = vadd.f32 %v2116, %v2135
      %v2145 = vadd.f32 %v2117, %v2140
      %v2146 = vxor.u32 %v2142, 2147483648
      %v2147 = vxor.u32 %v2143, 2147483648
      %v2148 = vxor.u32 %v2144, 2147483648
      %v2149 = vxor.u32 %v2145, 2147483648
      %v2150 = vmul.f32 %v2146, 1.442695
      %v2151 = vpow.pop %v2150
      %v2152 = vmul.f32 %v2147, 1.442695
      %v2153 = vpow.pop %v2152
      %v2154 = vmul.f32 %v2148, 1.442695
      %v2155 = vpow.pop %v2154
      %v2156 = vmul.f32 %v2149, 1.442695
      %v2157 = vpow.pop %v2156
      %v2158 = vadd.f32 %v2151, 1.0
      %v2159 = vadd.f32 %v2153, 1.0
      %v2160 = vadd.f32 %v2155, 1.0
      %v2161 = vadd.f32 %v2157, 1.0
      %v2162 = vrcp.pop %v2158
      %v2163 = vmul.f32 %v2158, %v2162
      %v2164 = vsub.f32 1.0, %v2163
      %v2165 = vmul.f32 %v2162, %v2164
      %v2166 = vadd.f32 %v2162, %v2165
      %vm2167 = vweird.f32 %v2158
      %vm2168 = vweird.f32 %v2162
      %vm2169 = vmor %vm2167, %vm2168
      %v2170 = vsel %vm2169, %v2162, %v2166
      %v2171 = vand.u32 2147483647, %v2158
      %vm2172 = vcmp.eq.f32.partialorder %v2171, 8.507059e+37
      %v2173 = vand.u32 %v2158, 2147483648
      %v2174 = vor.u32 1.1754944e-38, %v2173
      %v2175 = vsel %vm2172, %v2174, %v2170
      %v2176 = vmul.f32 1.0, %v2175
      %v2177 = vrcp.pop %v2159
      %v2178 = vmul.f32 %v2159, %v2177
      %v2179 = vsub.f32 1.0, %v2178
      %v2180 = vmul.f32 %v2177, %v2179
      %v2181 = vadd.f32 %v2177, %v2180
      %vm2182 = vweird.f32 %v2159
      %vm2183 = vweird.f32 %v2177
      %vm2184 = vmor %vm2182, %vm2183
      %v2185 = vsel %vm2184, %v2177, %v2181
      %v2186 = vand.u32 2147483647, %v2159
      %vm2187 = vcmp.eq.f32.partialorder %v2186, 8.507059e+37
      %v2188 = vand.u32 %v2159, 2147483648
      %v2189 = vor.u32 1.1754944e-38, %v2188
      %v2190 = vsel %vm2187, %v2189, %v2185
      %v2191 = vmul.f32 1.0, %v2190
      %v2192 = vrcp.pop %v2160
      %v2193 = vmul.f32 %v2160, %v2192
      %v2194 = vsub.f32 1.0, %v2193
      %v2195 = vmul.f32 %v2192, %v2194
      %v2196 = vadd.f32 %v2192, %v2195
      %vm2197 = vweird.f32 %v2160
      %vm2198 = vweird.f32 %v2192
      %vm2199 = vmor %vm2197, %vm2198
      %v2200 = vsel %vm2199, %v2192, %v2196
      %v2201 = vand.u32 2147483647, %v2160
      %vm2202 = vcmp.eq.f32.partialorder %v2201, 8.507059e+37
      %v2203 = vand.u32 %v2160, 2147483648
      %v2204 = vor.u32 1.1754944e-38, %v2203
      %v2205 = vsel %vm2202, %v2204, %v2200
      %v2206 = vmul.f32 1.0, %v2205
      %v2207 = vrcp.pop %v2161
      %v2208 = vmul.f32 %v2161, %v2207
      %v2209 = vsub.f32 1.0, %v2208
      %v2210 = vmul.f32 %v2207, %v2209
      %v2211 = vadd.f32 %v2207, %v2210
      %vm2212 = vweird.f32 %v2161
      %vm2213 = vweird.f32 %v2207
      %vm2214 = vmor %vm2212, %vm2213
      %v2215 = vsel %vm2214, %v2207, %v2211
      %v2216 = vand.u32 2147483647, %v2161
      %vm2217 = vcmp.eq.f32.partialorder %v2216, 8.507059e+37
      %v2218 = vand.u32 %v2161, 2147483648
      %v2219 = vor.u32 1.1754944e-38, %v2218
      %v2220 = vsel %vm2217, %v2219, %v2215
      %v2221 = vmul.f32 1.0, %v2220
      %v2222 = vlaneseq
      %v2223 = vand.u32 %v2222, 127
      %vm2224 = vcmp.eq.s32.totalorder %v2223, 40
      %v2225 = vsel %vm2224, 1, 0
      %vm2226 = vcmp.eq.s32.totalorder %v2225, 1
      %v2227 = vsel %vm2226, %v2176, 0.0
      %v2228 = vsel %vm2226, %v2191, 0.0
      %v2229 = vsel %vm2226, %v2206, 0.0
      %v2230 = vsel %vm2226, %v2221, 0.0
      %vm2231 = vcmask 662528
      %v2232 = vsel %vm2231, %v2227, 0.0
      %2233 = vadd.xlane.f32.xlu0 %v2232
      %v2234 = vpop.xlane.xlu0 %2233
      %v2235 = vsel %vm2231, %v2228, 0.0
      %2236 = vadd.xlane.f32.xlu0 %v2235
      %v2237 = vpop.xlane.xlu0 %2236
      %v2238 = vsel %vm2231, %v2229, 0.0
      %2239 = vadd.xlane.f32.xlu0 %v2238
      %v2240 = vpop.xlane.xlu0 %2239
      %vm2241 = vcmask 660480
      %v2242 = vsel %vm2241, %v2230, 0.0
      %2243 = vadd.xlane.f32.xlu0 %v2242
      %v2244 = vpop.xlane.xlu0 %2243
      %v2245 = vld [vmem:[%s812] sm:$0x1f]
      %v2246 = vld [vmem:[%s816] sm:$0x1f]
      %vm2247 = vcmask 244736
      %v2249 = vsel %vm2247, %v2245, 0
      %vm2251 = vcmask 1045504
      %v2253 = vsel %vm2251, %v2244, 0
      %2255 = vmatpush.msra.mxu0 0.0
      %2256 = vmatpush.msra.mxu0 0.0
      %2257 = vmatpush.msra.mxu0 0.0
      %2258 = vmatpush.msra.mxu0 0.0
      %2259 = vmatpush.msra.mxu0 0.0
      %2260 = vmatpush.msra.mxu0 0.0
      %2261 = vmatpush.msra.mxu0 0.0
      %2262 = vmatpush.msra.mxu0 0.0
      %2263 = vmatpush.msra.mxu0 0.0
      %2264 = vmatpush.msra.mxu0 0.0
      %2265 = vmatpush.msra.mxu0 0.0
      %2266 = vmatpush.msra.mxu0 0.0
      %2267 = vmatpush.msra.mxu0 %v2253
      %2268 = vmatpush.msra.mxu0 %v2240
      %2269 = vmatpush.msra.mxu0 %v2237
      %2270 = vmatpush.msra.mxu0 %v2234
      %2271 = vmatmul.f32.gmra.mxu0 %v2249
      %v2272 = vpop.f32.mrf.mxu0
      %v2273 = vadd.f32 %v2246, %v2272
      %2274 = vdwg.mxu0
      %v2275 = vld [vmem:[%s820] sm:$0x1f]
      %v2276 = vld [vmem:[%s824] sm:$0x1f]
      %2278 = vset.pattern.permute.xlu0 0
      %2279 = vperm.xlu0 %2278, %v2276
      %v2280 = vpop.permute.xlu0 %2279
      %v2283 = vsel %vm2247, %v2275, 0
      %v2286 = vsel %vm2251, %v2221, 0
      %2288 = vmatpush.msra.mxu0 0.0
      %2289 = vmatpush.msra.mxu0 0.0
      %2290 = vmatpush.msra.mxu0 0.0
      %2291 = vmatpush.msra.mxu0 0.0
      %2292 = vmatpush.msra.mxu0 0.0
      %2293 = vmatpush.msra.mxu0 0.0
      %2294 = vmatpush.msra.mxu0 0.0
      %2295 = vmatpush.msra.mxu0 0.0
      %2296 = vmatpush.msra.mxu0 0.0
      %2297 = vmatpush.msra.mxu0 0.0
      %2298 = vmatpush.msra.mxu0 0.0
      %2299 = vmatpush.msra.mxu0 0.0
      %2300 = vmatpush.msra.mxu0 %v2286
      %2301 = vmatpush.msra.mxu0 %v2206
      %2302 = vmatpush.msra.mxu0 %v2191
      %2303 = vmatpush.msra.mxu0 %v2176
      %2304 = vmatmul.f32.gmra.mxu0 %v2283
      %v2305 = vpop.f32.mrf.mxu0
      %v2306 = vadd.f32 %v2280, %v2305
      %2307 = vdwg.mxu0
      %2309 = vset.pattern.permute.xlu0 0
      %2310 = vperm.xlu0 %2309, %v2273
      %v2311 = vpop.permute.xlu0 %2310
      %v2313 = vmul.f32 %v2311, %v2306
      %vm2314 = vcmask 659456
      %v2315 = vsel %vm2314, %v2313, 0.0
      %v2316 = vrot.slane %v2315, 4
      %v2317 = vadd.f32 %v2315, %v2316
      %v2318 = vrot.slane %v2317, 2
      %v2319 = vadd.f32 %v2317, %v2318
      %v2320 = vrot.slane %v2319, 1
      %v2321 = vadd.f32 %v2319, %v2320
      %v2322 = vsel %vm2231, %v2321, -inf
      %2323 = vmax.xlane.f32.xlu0 %v2322
      %v2324 = vpop.xlane.xlu0 %2323
      %v2325 = vsub.f32 %v2321, %v2324
      %v2326 = vmul.f32 %v2325, 1.442695
      %v2327 = vpow.pop %v2326
      %v2328 = vsel %vm2231, %v2327, 0.0
      %2329 = vadd.xlane.f32.xlu0 %v2328
      %v2330 = vpop.xlane.xlu0 %2329
      %v2331 = vrcp.pop %v2330
      %v2332 = vmul.f32 %v2330, %v2331
      %v2333 = vsub.f32 1.0, %v2332
      %v2334 = vmul.f32 %v2331, %v2333
      %v2335 = vadd.f32 %v2331, %v2334
      %vm2336 = vweird.f32 %v2330
      %vm2337 = vweird.f32 %v2331
      %vm2338 = vmor %vm2336, %vm2337
      %v2339 = vsel %vm2338, %v2331, %v2335
      %v2340 = vand.u32 2147483647, %v2330
      %vm2341 = vcmp.eq.f32.partialorder %v2340, 8.507059e+37
      %v2342 = vand.u32 %v2330, 2147483648
      %v2343 = vor.u32 1.1754944e-38, %v2342
      %v2344 = vsel %vm2341, %v2343, %v2339
      %v2345 = vmul.f32 %v2327, %v2344
      %v2346 = vmul.f32 %v2176, %v2345
      %v2347 = vmul.f32 %v2191, %v2345
      %v2348 = vmul.f32 %v2206, %v2345
      %v2349 = vmul.f32 %v2221, %v2345
      %v2350 = vsel %vm2231, %v2346, 0.0
      %2351 = vadd.xlane.f32.xlu0 %v2350
      %v2352 = vpop.xlane.xlu0 %2351
      %v2353 = vsel %vm2231, %v2347, 0.0
      %2354 = vadd.xlane.f32.xlu0 %v2353
      %v2355 = vpop.xlane.xlu0 %2354
      %v2356 = vsel %vm2231, %v2348, 0.0
      %2357 = vadd.xlane.f32.xlu0 %v2356
      %v2358 = vpop.xlane.xlu0 %2357
      %v2359 = vsel %vm2241, %v2349, 0.0
      %2360 = vadd.xlane.f32.xlu0 %v2359
      %v2361 = vpop.xlane.xlu0 %2360
      %v2362 = vld [vmem:[%s827] sm:$0x1]
      %v2364 = vperm.slane %v2362, 0
      %v2366 = vmul.f32 %v2364, %v2352
      %v2367 = vmul.f32 %v2364, %v2355
      %v2368 = vmul.f32 %v2364, %v2358
      %v2369 = vmul.f32 %v2364, %v2361
      %v2370 = vadd.f32 %v2366, %v2234
      %v2371 = vadd.f32 %v2367, %v2237
      %v2372 = vadd.f32 %v2368, %v2240
      %v2373 = vadd.f32 %v2369, %v2244
      %v2374 = vld [vmem:[%s832] sm:$0xff]
      %v2375 = vld [vmem:[%s832 + $0x8] sm:$0xff]
      %v2376 = vld [vmem:[%s832 + $0x10] sm:$0xff]
      %v2377 = vld [vmem:[%s832 + $0x18] sm:$0x3f]
      %v2378 = vmul.f32 %v2370, %v2374
      %v2379 = vmul.f32 %v2371, %v2375
      %v2380 = vmul.f32 %v2372, %v2376
      %v2381 = vmul.f32 %v2373, %v2377
      %v2382 = vld [vmem:[%s837] sm:$0xff]
      %v2383 = vld [vmem:[%s837 + $0x8] sm:$0xff]
      %v2384 = vld [vmem:[%s837 + $0x10] sm:$0xff]
      %v2385 = vld [vmem:[%s837 + $0x18] sm:$0x3f]
      %v2386 = vadd.f32 %v2378, %v2382
      %v2387 = vadd.f32 %v2379, %v2383
      %v2388 = vadd.f32 %v2380, %v2384
      %v2389 = vadd.f32 %v2381, %v2385
      %v2390 = vxor.u32 %v2386, 2147483648
      %v2391 = vxor.u32 %v2387, 2147483648
      %v2392 = vxor.u32 %v2388, 2147483648
      %v2393 = vxor.u32 %v2389, 2147483648
      %v2394 = vmul.f32 %v2390, 1.442695
      %v2395 = vpow.pop %v2394
      %v2396 = vmul.f32 %v2391, 1.442695
      %v2397 = vpow.pop %v2396
      %v2398 = vmul.f32 %v2392, 1.442695
      %v2399 = vpow.pop %v2398
      %v2400 = vmul.f32 %v2393, 1.442695
      %v2401 = vpow.pop %v2400
      %v2402 = vadd.f32 %v2395, 1.0
      %v2403 = vadd.f32 %v2397, 1.0
      %v2404 = vadd.f32 %v2399, 1.0
      %v2405 = vadd.f32 %v2401, 1.0
      %v2406 = vrcp.pop %v2402
      %v2407 = vmul.f32 %v2402, %v2406
      %v2408 = vsub.f32 1.0, %v2407
      %v2409 = vmul.f32 %v2406, %v2408
      %v2410 = vadd.f32 %v2406, %v2409
      %vm2411 = vweird.f32 %v2402
      %vm2412 = vweird.f32 %v2406
      %vm2413 = vmor %vm2411, %vm2412
      %v2414 = vsel %vm2413, %v2406, %v2410
      %v2415 = vand.u32 2147483647, %v2402
      %vm2416 = vcmp.eq.f32.partialorder %v2415, 8.507059e+37
      %v2417 = vand.u32 %v2402, 2147483648
      %v2418 = vor.u32 1.1754944e-38, %v2417
      %v2419 = vsel %vm2416, %v2418, %v2414
      %v2420 = vmul.f32 1.0, %v2419
      %v2421 = vrcp.pop %v2403
      %v2422 = vmul.f32 %v2403, %v2421
      %v2423 = vsub.f32 1.0, %v2422
      %v2424 = vmul.f32 %v2421, %v2423
      %v2425 = vadd.f32 %v2421, %v2424
      %vm2426 = vweird.f32 %v2403
      %vm2427 = vweird.f32 %v2421
      %vm2428 = vmor %vm2426, %vm2427
      %v2429 = vsel %vm2428, %v2421, %v2425
      %v2430 = vand.u32 2147483647, %v2403
      %vm2431 = vcmp.eq.f32.partialorder %v2430, 8.507059e+37
      %v2432 = vand.u32 %v2403, 2147483648
      %v2433 = vor.u32 1.1754944e-38, %v2432
      %v2434 = vsel %vm2431, %v2433, %v2429
      %v2435 = vmul.f32 1.0, %v2434
      %v2436 = vrcp.pop %v2404
      %v2437 = vmul.f32 %v2404, %v2436
      %v2438 = vsub.f32 1.0, %v2437
      %v2439 = vmul.f32 %v2436, %v2438
      %v2440 = vadd.f32 %v2436, %v2439
      %vm2441 = vweird.f32 %v2404
      %vm2442 = vweird.f32 %v2436
      %vm2443 = vmor %vm2441, %vm2442
      %v2444 = vsel %vm2443, %v2436, %v2440
      %v2445 = vand.u32 2147483647, %v2404
      %vm2446 = vcmp.eq.f32.partialorder %v2445, 8.507059e+37
      %v2447 = vand.u32 %v2404, 2147483648
      %v2448 = vor.u32 1.1754944e-38, %v2447
      %v2449 = vsel %vm2446, %v2448, %v2444
      %v2450 = vmul.f32 1.0, %v2449
      %v2451 = vrcp.pop %v2405
      %v2452 = vmul.f32 %v2405, %v2451
      %v2453 = vsub.f32 1.0, %v2452
      %v2454 = vmul.f32 %v2451, %v2453
      %v2455 = vadd.f32 %v2451, %v2454
      %vm2456 = vweird.f32 %v2405
      %vm2457 = vweird.f32 %v2451
      %vm2458 = vmor %vm2456, %vm2457
      %v2459 = vsel %vm2458, %v2451, %v2455
      %v2460 = vand.u32 2147483647, %v2405
      %vm2461 = vcmp.eq.f32.partialorder %v2460, 8.507059e+37
      %v2462 = vand.u32 %v2405, 2147483648
      %v2463 = vor.u32 1.1754944e-38, %v2462
      %v2464 = vsel %vm2461, %v2463, %v2459
      %v2465 = vmul.f32 1.0, %v2464
      %v2466 = vld [vmem:[%s842] sm:$0xff]
      %v2467 = vld [vmem:[%s842 + $0x8] sm:$0xff]
      %v2468 = vld [vmem:[%s842 + $0x10] sm:$0xff]
      %v2469 = vld [vmem:[%s842 + $0x18] sm:$0x3f]
      %v2470 = vld [vmem:[%s847] sm:$0xff]
      %v2471 = vld [vmem:[%s847 + $0x8] sm:$0xff]
      %v2472 = vld [vmem:[%s847 + $0x10] sm:$0xff]
      %v2473 = vld [vmem:[%s847 + $0x18] sm:$0x3f]
      %v2475 = vsel %vm2247, %v2466, 0
      %v2478 = vsel %vm2247, %v2467, 0
      %v2481 = vsel %vm2247, %v2468, 0
      %v2484 = vsel %vm2247, %v2469, 0
      %v2487 = vsel %vm2251, %v2465, 0
      %2489 = vmatpush.msra.mxu0 0.0
      %2490 = vmatpush.msra.mxu0 0.0
      %2491 = vmatpush.msra.mxu0 0.0
      %2492 = vmatpush.msra.mxu0 0.0
      %2493 = vmatpush.msra.mxu0 0.0
      %2494 = vmatpush.msra.mxu0 0.0
      %2495 = vmatpush.msra.mxu0 0.0
      %2496 = vmatpush.msra.mxu0 0.0
      %2497 = vmatpush.msra.mxu0 0.0
      %2498 = vmatpush.msra.mxu0 0.0
      %2499 = vmatpush.msra.mxu0 0.0
      %2500 = vmatpush.msra.mxu0 0.0
      %2501 = vmatpush.msra.mxu0 %v2487
      %2502 = vmatpush.msra.mxu0 %v2450
      %2503 = vmatpush.msra.mxu0 %v2435
      %2504 = vmatpush.msra.mxu0 %v2420
      %2505 = vmatmul.f32.gmra.mxu0 %v2475
      %v2506 = vpop.f32.mrf.mxu0
      %v2507 = vadd.f32 %v2470, %v2506
      %2508 = vmatmul.f32.gmra.mxu0 %v2478
      %v2509 = vpop.f32.mrf.mxu0
      %v2510 = vadd.f32 %v2471, %v2509
      %2511 = vmatmul.f32.gmra.mxu0 %v2481
      %v2512 = vpop.f32.mrf.mxu0
      %v2513 = vadd.f32 %v2472, %v2512
      %2514 = vmatmul.f32.gmra.mxu0 %v2484
      %v2515 = vpop.f32.mrf.mxu0
      %v2516 = vadd.f32 %v2473, %v2515
      %2517 = vdwg.mxu0
      %v2518 = vxor.u32 %v2507, 2147483648
      %v2519 = vxor.u32 %v2510, 2147483648
      %v2520 = vxor.u32 %v2513, 2147483648
      %v2521 = vxor.u32 %v2516, 2147483648
      %v2522 = vmul.f32 %v2518, 1.442695
      %v2523 = vpow.pop %v2522
      %v2524 = vmul.f32 %v2519, 1.442695
      %v2525 = vpow.pop %v2524
      %v2526 = vmul.f32 %v2520, 1.442695
      %v2527 = vpow.pop %v2526
      %v2528 = vmul.f32 %v2521, 1.442695
      %v2529 = vpow.pop %v2528
      %v2530 = vadd.f32 %v2523, 1.0
      %v2531 = vadd.f32 %v2525, 1.0
      %v2532 = vadd.f32 %v2527, 1.0
      %v2533 = vadd.f32 %v2529, 1.0
      %v2534 = vrcp.pop %v2530
      %v2535 = vmul.f32 %v2530, %v2534
      %v2536 = vsub.f32 1.0, %v2535
      %v2537 = vmul.f32 %v2534, %v2536
      %v2538 = vadd.f32 %v2534, %v2537
      %vm2539 = vweird.f32 %v2530
      %vm2540 = vweird.f32 %v2534
      %vm2541 = vmor %vm2539, %vm2540
      %v2542 = vsel %vm2541, %v2534, %v2538
      %v2543 = vand.u32 2147483647, %v2530
      %vm2544 = vcmp.eq.f32.partialorder %v2543, 8.507059e+37
      %v2545 = vand.u32 %v2530, 2147483648
      %v2546 = vor.u32 1.1754944e-38, %v2545
      %v2547 = vsel %vm2544, %v2546, %v2542
      %v2548 = vmul.f32 1.0, %v2547
      %v2549 = vrcp.pop %v2531
      %v2550 = vmul.f32 %v2531, %v2549
      %v2551 = vsub.f32 1.0, %v2550
      %v2552 = vmul.f32 %v2549, %v2551
      %v2553 = vadd.f32 %v2549, %v2552
      %vm2554 = vweird.f32 %v2531
      %vm2555 = vweird.f32 %v2549
      %vm2556 = vmor %vm2554, %vm2555
      %v2557 = vsel %vm2556, %v2549, %v2553
      %v2558 = vand.u32 2147483647, %v2531
      %vm2559 = vcmp.eq.f32.partialorder %v2558, 8.507059e+37
      %v2560 = vand.u32 %v2531, 2147483648
      %v2561 = vor.u32 1.1754944e-38, %v2560
      %v2562 = vsel %vm2559, %v2561, %v2557
      %v2563 = vmul.f32 1.0, %v2562
      %v2564 = vrcp.pop %v2532
      %v2565 = vmul.f32 %v2532, %v2564
      %v2566 = vsub.f32 1.0, %v2565
      %v2567 = vmul.f32 %v2564, %v2566
      %v2568 = vadd.f32 %v2564, %v2567
      %vm2569 = vweird.f32 %v2532
      %vm2570 = vweird.f32 %v2564
      %vm2571 = vmor %vm2569, %vm2570
      %v2572 = vsel %vm2571, %v2564, %v2568
      %v2573 = vand.u32 2147483647, %v2532
      %vm2574 = vcmp.eq.f32.partialorder %v2573, 8.507059e+37
      %v2575 = vand.u32 %v2532, 2147483648
      %v2576 = vor.u32 1.1754944e-38, %v2575
      %v2577 = vsel %vm2574, %v2576, %v2572
      %v2578 = vmul.f32 1.0, %v2577
      %v2579 = vrcp.pop %v2533
      %v2580 = vmul.f32 %v2533, %v2579
      %v2581 = vsub.f32 1.0, %v2580
      %v2582 = vmul.f32 %v2579, %v2581
      %v2583 = vadd.f32 %v2579, %v2582
      %vm2584 = vweird.f32 %v2533
      %vm2585 = vweird.f32 %v2579
      %vm2586 = vmor %vm2584, %vm2585
      %v2587 = vsel %vm2586, %v2579, %v2583
      %v2588 = vand.u32 2147483647, %v2533
      %vm2589 = vcmp.eq.f32.partialorder %v2588, 8.507059e+37
      %v2590 = vand.u32 %v2533, 2147483648
      %v2591 = vor.u32 1.1754944e-38, %v2590
      %v2592 = vsel %vm2589, %v2591, %v2587
      %v2593 = vmul.f32 1.0, %v2592
      %v2594 = vld [vmem:[%s852] sm:$0xff]
      %v2595 = vld [vmem:[%s852 + $0x8] sm:$0xff]
      %v2596 = vld [vmem:[%s852 + $0x10] sm:$0xff]
      %v2597 = vld [vmem:[%s852 + $0x18] sm:$0x3f]
      %v2598 = vld [vmem:[%s857] sm:$0xff]
      %v2599 = vld [vmem:[%s857 + $0x8] sm:$0xff]
      %v2600 = vld [vmem:[%s857 + $0x10] sm:$0xff]
      %v2601 = vld [vmem:[%s857 + $0x18] sm:$0x3f]
      %v2603 = vsel %vm2247, %v2594, 0
      %v2606 = vsel %vm2247, %v2595, 0
      %v2609 = vsel %vm2247, %v2596, 0
      %v2612 = vsel %vm2247, %v2597, 0
      %v2615 = vsel %vm2251, %v2593, 0
      %2617 = vmatpush.msra.mxu0 0.0
      %2618 = vmatpush.msra.mxu0 0.0
      %2619 = vmatpush.msra.mxu0 0.0
      %2620 = vmatpush.msra.mxu0 0.0
      %2621 = vmatpush.msra.mxu0 0.0
      %2622 = vmatpush.msra.mxu0 0.0
      %2623 = vmatpush.msra.mxu0 0.0
      %2624 = vmatpush.msra.mxu0 0.0
      %2625 = vmatpush.msra.mxu0 0.0
      %2626 = vmatpush.msra.mxu0 0.0
      %2627 = vmatpush.msra.mxu0 0.0
      %2628 = vmatpush.msra.mxu0 0.0
      %2629 = vmatpush.msra.mxu0 %v2615
      %2630 = vmatpush.msra.mxu0 %v2578
      %2631 = vmatpush.msra.mxu0 %v2563
      %2632 = vmatpush.msra.mxu0 %v2548
      %2633 = vmatmul.f32.gmra.mxu0 %v2603
      %v2634 = vpop.f32.mrf.mxu0
      %v2635 = vadd.f32 %v2598, %v2634
      %2636 = vmatmul.f32.gmra.mxu0 %v2606
      %v2637 = vpop.f32.mrf.mxu0
      %v2638 = vadd.f32 %v2599, %v2637
      %2639 = vmatmul.f32.gmra.mxu0 %v2609
      %v2640 = vpop.f32.mrf.mxu0
      %v2641 = vadd.f32 %v2600, %v2640
      %2642 = vmatmul.f32.gmra.mxu0 %v2612
      %v2643 = vpop.f32.mrf.mxu0
      %v2644 = vadd.f32 %v2601, %v2643
      %2645 = vdwg.mxu0
      %v2646 = vxor.u32 %v2635, 2147483648
      %v2647 = vxor.u32 %v2638, 2147483648
      %v2648 = vxor.u32 %v2641, 2147483648
      %v2649 = vxor.u32 %v2644, 2147483648
      %v2650 = vmul.f32 %v2646, 1.442695
      %v2651 = vpow.pop %v2650
      %v2652 = vmul.f32 %v2647, 1.442695
      %v2653 = vpow.pop %v2652
      %v2654 = vmul.f32 %v2648, 1.442695
      %v2655 = vpow.pop %v2654
      %v2656 = vmul.f32 %v2649, 1.442695
      %v2657 = vpow.pop %v2656
      %v2658 = vadd.f32 %v2651, 1.0
      %v2659 = vadd.f32 %v2653, 1.0
      %v2660 = vadd.f32 %v2655, 1.0
      %v2661 = vadd.f32 %v2657, 1.0
      %v2662 = vrcp.pop %v2658
      %v2663 = vmul.f32 %v2658, %v2662
      %v2664 = vsub.f32 1.0, %v2663
      %v2665 = vmul.f32 %v2662, %v2664
      %v2666 = vadd.f32 %v2662, %v2665
      %vm2667 = vweird.f32 %v2658
      %vm2668 = vweird.f32 %v2662
      %vm2669 = vmor %vm2667, %vm2668
      %v2670 = vsel %vm2669, %v2662, %v2666
      %v2671 = vand.u32 2147483647, %v2658
      %vm2672 = vcmp.eq.f32.partialorder %v2671, 8.507059e+37
      %v2673 = vand.u32 %v2658, 2147483648
      %v2674 = vor.u32 1.1754944e-38, %v2673
      %v2675 = vsel %vm2672, %v2674, %v2670
      %v2676 = vmul.f32 1.0, %v2675
      %v2677 = vrcp.pop %v2659
      %v2678 = vmul.f32 %v2659, %v2677
      %v2679 = vsub.f32 1.0, %v2678
      %v2680 = vmul.f32 %v2677, %v2679
      %v2681 = vadd.f32 %v2677, %v2680
      %vm2682 = vweird.f32 %v2659
      %vm2683 = vweird.f32 %v2677
      %vm2684 = vmor %vm2682, %vm2683
      %v2685 = vsel %vm2684, %v2677, %v2681
      %v2686 = vand.u32 2147483647, %v2659
      %vm2687 = vcmp.eq.f32.partialorder %v2686, 8.507059e+37
      %v2688 = vand.u32 %v2659, 2147483648
      %v2689 = vor.u32 1.1754944e-38, %v2688
      %v2690 = vsel %vm2687, %v2689, %v2685
      %v2691 = vmul.f32 1.0, %v2690
      %v2692 = vrcp.pop %v2660
      %v2693 = vmul.f32 %v2660, %v2692
      %v2694 = vsub.f32 1.0, %v2693
      %v2695 = vmul.f32 %v2692, %v2694
      %v2696 = vadd.f32 %v2692, %v2695
      %vm2697 = vweird.f32 %v2660
      %vm2698 = vweird.f32 %v2692
      %vm2699 = vmor %vm2697, %vm2698
      %v2700 = vsel %vm2699, %v2692, %v2696
      %v2701 = vand.u32 2147483647, %v2660
      %vm2702 = vcmp.eq.f32.partialorder %v2701, 8.507059e+37
      %v2703 = vand.u32 %v2660, 2147483648
      %v2704 = vor.u32 1.1754944e-38, %v2703
      %v2705 = vsel %vm2702, %v2704, %v2700
      %v2706 = vmul.f32 1.0, %v2705
      %v2707 = vrcp.pop %v2661
      %v2708 = vmul.f32 %v2661, %v2707
      %v2709 = vsub.f32 1.0, %v2708
      %v2710 = vmul.f32 %v2707, %v2709
      %v2711 = vadd.f32 %v2707, %v2710
      %vm2712 = vweird.f32 %v2661
      %vm2713 = vweird.f32 %v2707
      %vm2714 = vmor %vm2712, %vm2713
      %v2715 = vsel %vm2714, %v2707, %v2711
      %v2716 = vand.u32 2147483647, %v2661
      %vm2717 = vcmp.eq.f32.partialorder %v2716, 8.507059e+37
      %v2718 = vand.u32 %v2661, 2147483648
      %v2719 = vor.u32 1.1754944e-38, %v2718
      %v2720 = vsel %vm2717, %v2719, %v2715
      %v2721 = vmul.f32 1.0, %v2720
      %v2722 = vld [vmem:[%s860] sm:$0x1]
      %v2723 = vld [vmem:[%s863] sm:$0x1]
      %v2725 = vsel %vm2247, %v2722, 0
      %v2728 = vsel %vm2251, %v2721, 0
      %2730 = vmatpush.msra.mxu0 0.0
      %2731 = vmatpush.msra.mxu0 0.0
      %2732 = vmatpush.msra.mxu0 0.0
      %2733 = vmatpush.msra.mxu0 0.0
      %2734 = vmatpush.msra.mxu0 0.0
      %2735 = vmatpush.msra.mxu0 0.0
      %2736 = vmatpush.msra.mxu0 0.0
      %2737 = vmatpush.msra.mxu0 0.0
      %2738 = vmatpush.msra.mxu0 0.0
      %2739 = vmatpush.msra.mxu0 0.0
      %2740 = vmatpush.msra.mxu0 0.0
      %2741 = vmatpush.msra.mxu0 0.0
      %2742 = vmatpush.msra.mxu0 %v2728
      %2743 = vmatpush.msra.mxu0 %v2706
      %2744 = vmatpush.msra.mxu0 %v2691
      %2745 = vmatpush.msra.mxu0 %v2676
      %2746 = vmatmul.f32.gmra.mxu0 %v2725
      %v2747 = vpop.f32.mrf.mxu0
      %v2748 = vadd.f32 %v2723, %v2747
      %2749 = vdwg.mxu0
      %vm2750 = vcmask 0
      %2751 = vst.msk [vmem:[%s870] sm:$0x1] %vm2750, %v2748
      %p2752 = scmp.lt.s32.totalorder %s32, 2
      %s2753 = scalar_select %p2752, %s32, 2
      %p2754 = scmp.lt.s32.totalorder %s33, 1
      %s2755 = scalar_select %p2754, %s33, 1
      %s2756 = smul.addr %s2753, 2
      %s2757 = sadd.s32 %s2755, %s2756
      %s2758 = scalar_lea.vmem %s17, %s2757
      // Predicated region
      $region89: #{model_forward.3} parent=87 // pred_check
        %p2759 = pneg %p504
      $region90: #{model_forward.3} parent=87 // pred_check_branch
        %2761 = sbr.rel (%p2759) target = $region92
      $region91: #{model_forward.3} parent=87 // pred_region
        _
      $region92: #{model_forward.3} parent=87 // pred_fallthru
        _
    $region88: #{model_forward.3} parent=5 // pred_fallthru
      _
    %p2762 = scmp.le.s32.totalorder 2, %s23
    // Predicated region
    $region93: #{model_forward.3} parent=5 // pred_check
      %p2763 = pneg %p2762
    $region94: #{model_forward.3} parent=5 // pred_check_branch
      %2765 = sbr.rel (%p2763) target = $region96
    $region95: #{model_forward.3} parent=5 // pred_region
      %s2766 = ssub.s32 %s23, 2
      // Predicated region
      $region97: #{model_forward.3} parent=95 // pred_check
        %p2767 = pneg %p510
      $region98: #{model_forward.3} parent=95 // pred_check_branch
        %2769 = sbr.rel (%p2767) target = $region100
      $region99: #{model_forward.3} parent=95 // pred_region
        %p2770 = scmp.lt.s32.totalorder %s34, 2
        %s2771 = scalar_select %p2770, %s34, 2
        %p2772 = scmp.lt.s32.totalorder %s35, 1
        %s2773 = scalar_select %p2772, %s35, 1
        %s2774 = smul.addr %s2771, 2
        %s2775 = sadd.s32 %s2773, %s2774
        %s2776 = scalar_lea.vmem %s17, %s2775
      $region100: #{model_forward.3} parent=95 // pred_fallthru
        _
    $region96: #{model_forward.3} parent=5 // pred_fallthru
      _
  $region6: #{model_forward.3} parent=0 // loop_footer
    %s27 = sadd.s32 1, %s23
  $region7: #{model_forward.3} parent=0 // loop_footer_branch
    %22 = sbr.rel target = $region3
  $region8: #{model_forward.3} parent=0 // loop_exit
    _

</llo_original>
